<compile_context>
chip_gen: v7x
topology: tpu7x:2x2x1
jax: 0.10.0
libtpu: 0.0.40
codegen_flags: <defaults>
</compile_context>

<pallas_src>
import numpy as np
import jax
import jax.numpy as jnp
from jax import lax
from jax.experimental import pallas as pl
from jax.experimental.pallas import tpu as pltpu

EPS = 1e-5            # PyTorch BatchNorm2d default eps
POS = 24              # padded conv1 positions per branch slab
NBR = 4               # branches
P_TOT = NBR * POS     # 96 conv1 position slots per sample
C1, C2 = 32, 64       # per-branch channel counts
N1, N2 = NBR * C1, NBR * C2   # 128 / 256 packed lane widths


# ----------------------------------------------------------------------------- kernel
def forward_kernel(patch_ref, w1_ref, b1_ref, w2_ref, b2_ref,
                   pool_ref, wfc_ref, bfc_ref, o_ref):
    TB = patch_ref.shape[0]
    M = TB * P_TOT

    # conv1 (+folded BN +ReLU) for all 4 branches in one MXU matmul, 128 lanes live.
    x = patch_ref[...].reshape(M, 4)                                    # (M, 4)
    h1 = jnp.dot(x, w1_ref[...], preferred_element_type=jnp.float32)    # (M, 128)
    h1 = jnp.maximum(h1 + b1_ref[...], 0.0)

    # conv2 (+folded BN +ReLU): 3 tap matmuls with block-diagonal (128, 256) weights.
    # Tap t reads h1 shifted up by t rows; rows that read across slab boundaries are
    # junk slots that the pooling mask zeroes out.  (pltpu.roll is a drop-in rotate.)
    acc = jnp.dot(h1, w2_ref[0], preferred_element_type=jnp.float32)    # (M, 256)
    for t in (1, 2):
        acc = acc + jnp.dot(jnp.roll(h1, -t, axis=0), w2_ref[t],
                            preferred_element_type=jnp.float32)
    h2 = jnp.maximum(acc + b2_ref[...], 0.0)                            # (M, 256)

    # Global average pool per (sample, branch): masked mean baked into pool_ref.
    h2 = h2.reshape(TB, P_TOT, N2)
    feats = jnp.sum(h2 * pool_ref[...][None], axis=1)                   # (TB, 256)

    # fc(256 -> 1) + tanh: VPU multiply + cross-lane reduce (no N=1 MXU matmul).
    y = jnp.sum(feats * wfc_ref[...], axis=-1, keepdims=True) + bfc_ref[...]
    y = jnp.tanh(y)                                                     # (TB, 1)

    # Lane-dense store: (TB,1) -> (1,TB) via eye-mask + sublane reduce, replicated over
    # the 8 sublanes of the output block (batch ends up on the lane axis).
    eye = (lax.broadcasted_iota(jnp.int32, (TB, TB), 0) ==
           lax.broadcasted_iota(jnp.int32, (TB, TB), 1)).astype(jnp.float32)
    y_row = jnp.sum(y * eye, axis=0, keepdims=True)                     # (1, TB)
    o_ref[...] = jnp.broadcast_to(y_row[None], (1, 8, TB))


# ------------------------------------------------------------------------------ glue
def diagonal_to_horizontal(x, up=False):
    # TODO(synk): diagonal_to_horizontal is not defined in the provided source;
    # implemented as the standard (anti-)diagonal extraction: every (anti-)diagonal of
    # length >= 4 becomes a zero-padded row -> output (B, 1, n_diag, min(H, W)).
    B, _, H, W = x.shape
    b = x[:, 0]
    if up:
        b = b[:, ::-1, :]
    max_len = min(H, W)
    rows = []
    for off in range(-(H - 1), W):
        length = min(H, W, H + off, W - off)
        if length < 4:
            continue
        d = jnp.diagonal(b, offset=off, axis1=1, axis2=2)               # (B, length)
        rows.append(jnp.pad(d, ((0, 0), (0, max_len - length))))
    return jnp.stack(rows, axis=1)[:, None]                             # (B,1,n_diag,max_len)


def fold_branch(conv1, conv2, bn1, bn2):
    """Fold conv bias + inference BatchNorm into conv weights / biases."""
    (wc1, cb1), (wc2, cb2) = conv1, conv2
    g1, be1, mu1, var1 = bn1
    g2, be2, mu2, var2 = bn2
    s1 = g1 / jnp.sqrt(var1 + EPS)                                      # (32,)
    s2 = g2 / jnp.sqrt(var2 + EPS)                                      # (64,)
    w1 = wc1.reshape(C1, 4).T * s1[None, :]                             # (4, 32)
    b1 = (cb1 - mu1) * s1 + be1                                         # (32,)
    w2 = jnp.transpose(wc2.reshape(C2, C1, 3), (2, 1, 0)) * s2[None, None, :]  # (3,32,64)
    b2 = (cb2 - mu2) * s2 + be2                                         # (64,)
    return w1, b1, w2, b2


def _round_up(n, m):
    return (n + m - 1) // m * m


def _im2col_k4(board):
    """(B, R, L) board, conv axis last -> (B, R*(L-3), 4) conv1 tap matrix."""
    B, R, L = board.shape
    L1 = L - 3
    taps = jnp.stack([board[:, :, t:t + L1] for t in range(4)], axis=-1)  # (B,R,L1,4)
    return taps.reshape(B, R * L1, 4)


def _pool_matrix(geoms):
    """(96, 256) masked-mean weights: branch b's valid conv2 rows -> cols [64b, 64b+64)."""
    pool = np.zeros((P_TOT, N2), np.float32)
    for b, (R, L) in enumerate(geoms):
        L1, L2 = L - 3, L - 5
        for r in range(R):
            for l in range(L2):
                pool[b * POS + r * L1 + l, b * C2:(b + 1) * C2] = 1.0 / (R * L2)
    return jnp.asarray(pool)


@jax.jit
def pallas_forward(x, params):
    B = x.shape[0]

    # Branch boards, conv axis last.
    xh = jnp.transpose(x[:, 0], (0, 2, 1))        # height branch: (B, 7, 6), conv over H
    xw = x[:, 0]                                  # width  branch: (B, 6, 7), conv over W
    xdd = diagonal_to_horizontal(x)[:, 0]         # (B, 6, 6)
    xdu = diagonal_to_horizontal(x, True)[:, 0]   # (B, 6, 6)
    boards = (xh, xw, xdd, xdu)
    geoms = tuple((int(b.shape[1]), int(b.shape[2])) for b in boards)

    # conv1 im2col: one zero-padded 24-position slab per branch -> (B, 96, 4).
    slabs = []
    for bd in boards:
        p = _im2col_k4(bd)
        slabs.append(jnp.pad(p, ((0, 0), (0, POS - p.shape[1]), (0, 0))))
    patches = jnp.concatenate(slabs, axis=1)

    # Fold BN + bias, pack the 4 branches along the lane axis / block-diagonal weights.
    branches = [
        fold_branch(params['height_conv1'], params['height_conv2'], params['bn1'], params['bn2']),
        fold_branch(params['width_conv1'], params['width_conv2'], params['bn1'], params['bn2']),
        fold_branch(params['diag_up_conv1'], params['diag_up_conv2'], params['bn1'], params['bn2']),
        fold_branch(params['diag_down_conv1'], params['diag_down_conv2'], params['bn1'], params['bn2']),
    ]
    w1 = jnp.concatenate([br[0] for br in branches], axis=1)            # (4, 128)
    b1 = jnp.concatenate([br[1] for br in branches]).reshape(1, N1)     # (1, 128)
    w2 = jnp.zeros((3, N1, N2), jnp.float32)                            # per-tap block-diag
    for b, br in enumerate(branches):
        w2 = w2.at[:, b * C1:(b + 1) * C1, b * C2:(b + 1) * C2].set(br[2])
    b2 = jnp.concatenate([br[3] for br in branches]).reshape(1, N2)     # (1, 256)
    pool = _pool_matrix(geoms)                                          # (96, 256)
    wfc = params['fc'][0].reshape(1, N2)                                # (1, 256)
    bfc = params['fc'][1].reshape(1, 1)                                 # (1, 1)

    # Batch tiling: pad to a multiple of the tile and run a parallel 1-D grid.
    # TB <= 32 keeps live f32 intermediates ~15 MB, safe for v7x's 64 MiB VMEM.
    TB = min(32, _round_up(B, 8))
    B_pad = _round_up(B, TB)
    nt = B_pad // TB
    patches = jnp.pad(patches, ((0, B_pad - B), (0, 0), (0, 0)))

    out = pl.pallas_call(
        forward_kernel,
        out_shape=jax.ShapeDtypeStruct((nt, 8, TB), jnp.float32),
        grid=(nt,),
        in_specs=[
            pl.BlockSpec((TB, P_TOT, 4), lambda i: (i, 0, 0)),   # per-tile boards
            pl.BlockSpec((4, N1), lambda i: (0, 0)),             # weights: fetched once
            pl.BlockSpec((1, N1), lambda i: (0, 0)),
            pl.BlockSpec((3, N1, N2), lambda i: (0, 0, 0)),
            pl.BlockSpec((1, N2), lambda i: (0, 0)),
            pl.BlockSpec((P_TOT, N2), lambda i: (0, 0)),
            pl.BlockSpec((1, N2), lambda i: (0, 0)),
            pl.BlockSpec((1, 1), lambda i: (0, 0)),
        ],
        out_specs=pl.BlockSpec((1, 8, TB), lambda i: (i, 0, 0)),
        compiler_params=pltpu.CompilerParams(
            dimension_semantics=("parallel",)),
    )(patches, w1, b1, w2, b2, pool, wfc, bfc)

    return out[:, 0, :].reshape(-1)[:B, None]                           # (B, 1)


# ----------------------------------------------------------------- params & reference
def init_params(key):
    ks = jax.random.split(key, 24)

    def w(k, shape, scale=0.1):
        return scale * jax.random.normal(k, shape, jnp.float32)

    p = {}
    p['height_conv1'] = (w(ks[0], (32, 1, 4, 1)), w(ks[1], (32,)))
    p['height_conv2'] = (w(ks[2], (64, 32, 3, 1)), w(ks[3], (64,)))
    p['width_conv1'] = (w(ks[4], (32, 1, 1, 4)), w(ks[5], (32,)))
    p['width_conv2'] = (w(ks[6], (64, 32, 1, 3)), w(ks[7], (64,)))
    p['diag_up_conv1'] = (w(ks[8], (32, 1, 1, 4)), w(ks[9], (32,)))
    p['diag_up_conv2'] = (w(ks[10], (64, 32, 1, 3)), w(ks[11], (64,)))
    p['diag_down_conv1'] = (w(ks[12], (32, 1, 1, 4)), w(ks[13], (32,)))
    p['diag_down_conv2'] = (w(ks[14], (64, 32, 1, 3)), w(ks[15], (64,)))
    # BatchNorm in inference (running-stats) mode: (gamma, beta, mean, var)
    p['bn1'] = (1.0 + w(ks[16], (32,)), w(ks[17], (32,)),
                w(ks[18], (32,)), 0.5 + jax.random.uniform(ks[19], (32,), jnp.float32))
    p['bn2'] = (1.0 + w(ks[20], (64,)), w(ks[21], (64,)),
                w(ks[22], (64,)), 0.5 + jax.random.uniform(ks[23], (64,), jnp.float32))
    kf1, kf2 = jax.random.split(jax.random.fold_in(key, 99))
    p['fc'] = (w(kf1, (1, 256)), w(kf2, (1,)))
    return p


def reference_forward(x, params):
    """Pure-JAX (lax.conv) mirror of the PyTorch forward, for verification."""
    def conv(inp, w, b):
        y = lax.conv_general_dilated(inp, w, (1, 1), 'VALID',
                                     dimension_numbers=('NCHW', 'OIHW', 'NCHW'))
        return y + b[None, :, None, None]

    def bn(inp, stats):
        g, be, mu, var = stats
        return ((inp - mu[None, :, None, None]) / jnp.sqrt(var[None, :, None, None] + EPS)
                * g[None, :, None, None] + be[None, :, None, None])

    def branch(inp, c1, c2):
        h = jax.nn.relu(bn(conv(inp, *c1), params['bn1']))
        h = jax.nn.relu(bn(conv(h, *c2), params['bn2']))
        return jnp.mean(h, axis=(2, 3))                                 # avg_pool2d(full) + flatten

    h = branch(x, params['height_conv1'], params['height_conv2'])
    w = branch(x, params['width_conv1'], params['width_conv2'])
    dd = branch(diagonal_to_horizontal(x), params['diag_up_conv1'], params['diag_up_conv2'])
    du = branch(diagonal_to_horizontal(x, True), params['diag_down_conv1'], params['diag_down_conv2'])
    f = jnp.concatenate([h, w, dd, du], axis=1)
    return jnp.tanh(f @ params['fc'][0].T + params['fc'][1][None, :])


# ------------------------------------------------------------------------------ main
if __name__ == "__main__":
    key = jax.random.PRNGKey(0)
    pkey, xkey = jax.random.split(key)
    params = init_params(pkey)

    # Connect-4 style board: (batch=2, channels=1, H=6, W=7), cells in {-1, 0, 1}.
    x = jax.random.randint(xkey, (2, 1, 6, 7), -1, 2).astype(jnp.float32)

    out = pallas_forward(x, params)
    out = jax.block_until_ready(out)

    ref = reference_forward(x, params)
    assert out.shape == (2, 1), out.shape
    assert jnp.allclose(out, ref, rtol=1e-3, atol=1e-3), (out, ref)
    print("KERNEL_OK")
</pallas_src>

<mosaic_0001>
module attributes {stable_mosaic.version = 11 : i64} {
  func.func @forward_kernel(%arg0: i32, %arg1: memref<8x96x4xf32, #tpu.memory_space<vmem>>, %arg2: memref<4x128xf32, #tpu.memory_space<vmem>>, %arg3: memref<1x128xf32, #tpu.memory_space<vmem>>, %arg4: memref<3x128x256xf32, #tpu.memory_space<vmem>>, %arg5: memref<1x256xf32, #tpu.memory_space<vmem>>, %arg6: memref<96x256xf32, #tpu.memory_space<vmem>>, %arg7: memref<1x256xf32, #tpu.memory_space<vmem>>, %arg8: memref<1x1xf32, #tpu.memory_space<vmem>>, %arg9: memref<1x8x8xf32, #tpu.memory_space<vmem>>) attributes {dimension_semantics = [#tpu.dimension_semantics<parallel>], iteration_bounds = array<i64: 1>, scalar_prefetch = 0 : i64, scratch_operands = 0 : i64, tpu.core_type = #tpu.core_type<tc>, window_params = [{transform_indices = @transform_0, window_bounds = array<i64: 8, 96, 4>}, {pipeline_mode = #tpu.pipeline_mode<synchronous>, transform_indices = @transform_1, window_bounds = array<i64: 4, 128>}, {pipeline_mode = #tpu.pipeline_mode<synchronous>, transform_indices = @transform_2, window_bounds = array<i64: 1, 128>}, {pipeline_mode = #tpu.pipeline_mode<synchronous>, transform_indices = @transform_3, window_bounds = array<i64: 3, 128, 256>}, {pipeline_mode = #tpu.pipeline_mode<synchronous>, transform_indices = @transform_4, window_bounds = array<i64: 1, 256>}, {pipeline_mode = #tpu.pipeline_mode<synchronous>, transform_indices = @transform_5, window_bounds = array<i64: 96, 256>}, {pipeline_mode = #tpu.pipeline_mode<synchronous>, transform_indices = @transform_6, window_bounds = array<i64: 1, 256>}, {pipeline_mode = #tpu.pipeline_mode<synchronous>, transform_indices = @transform_7, window_bounds = array<i64: 1, 1>}, {transform_indices = @transform_8, window_bounds = array<i64: 1, 8, 8>}]} {
    %c0 = arith.constant 0 : index
    %c0_0 = arith.constant 0 : index
    %c0_1 = arith.constant 0 : index
    %0 = vector.load %arg1[%c0, %c0_0, %c0_1] : memref<8x96x4xf32, #tpu.memory_space<vmem>>, vector<8x96x4xf32>
    %1 = vector.shape_cast %0 : vector<8x96x4xf32> to vector<768x4xf32>
    %c0_2 = arith.constant 0 : index
    %c0_3 = arith.constant 0 : index
    %2 = vector.load %arg2[%c0_2, %c0_3] : memref<4x128xf32, #tpu.memory_space<vmem>>, vector<4x128xf32>
    %cst = arith.constant dense<0.000000e+00> : vector<768x128xf32>
    %3 = tpu.matmul %1, %2, %cst {dimension_numbers = #tpu.dot_dimension_numbers<[1], [0], [0], [1], [0, 0, 1, 1], [], []>} : vector<768x4xf32>, vector<4x128xf32>, vector<768x128xf32> -> vector<768x128xf32>
    %c0_4 = arith.constant 0 : index
    %c0_5 = arith.constant 0 : index
    %4 = vector.load %arg3[%c0_4, %c0_5] : memref<1x128xf32, #tpu.memory_space<vmem>>, vector<1x128xf32>
    %5 = vector.broadcast %4 : vector<1x128xf32> to vector<768x128xf32>
    %6 = arith.addf %3, %5 : vector<768x128xf32>
    %cst_6 = arith.constant 0.000000e+00 : f32
    %7 = vector.broadcast %cst_6 : f32 to vector<768x128xf32>
    %8 = arith.maximumf %6, %7 : vector<768x128xf32>
    %c0_7 = arith.constant 0 : index
    %c0_8 = arith.constant 0 : index
    %c0_9 = arith.constant 0 : index
    %9 = vector.load %arg4[%c0_7, %c0_8, %c0_9] : memref<3x128x256xf32, #tpu.memory_space<vmem>>, vector<1x128x256xf32>
    %10 = vector.shape_cast %9 : vector<1x128x256xf32> to vector<128x256xf32>
    %cst_10 = arith.constant dense<0.000000e+00> : vector<768x256xf32>
    %11 = tpu.matmul %8, %10, %cst_10 {dimension_numbers = #tpu.dot_dimension_numbers<[1], [0], [0], [1], [0, 0, 1, 1], [], []>} : vector<768x128xf32>, vector<128x256xf32>, vector<768x256xf32> -> vector<768x256xf32>
    %12 = vector.extract_strided_slice %8 {offsets = [1, 0], sizes = [767, 128], strides = [1, 1]} : vector<768x128xf32> to vector<767x128xf32>
    %13 = vector.extract_strided_slice %8 {offsets = [0, 0], sizes = [1, 128], strides = [1, 1]} : vector<768x128xf32> to vector<1x128xf32>
    %14 = tpu.concatenate %12, %13 in 0 : vector<767x128xf32>, vector<1x128xf32> -> vector<768x128xf32>
    %c1 = arith.constant 1 : index
    %c0_11 = arith.constant 0 : index
    %c0_12 = arith.constant 0 : index
    %15 = vector.load %arg4[%c1, %c0_11, %c0_12] : memref<3x128x256xf32, #tpu.memory_space<vmem>>, vector<1x128x256xf32>
    %16 = vector.shape_cast %15 : vector<1x128x256xf32> to vector<128x256xf32>
    %cst_13 = arith.constant dense<0.000000e+00> : vector<768x256xf32>
    %17 = tpu.matmul %14, %16, %cst_13 {dimension_numbers = #tpu.dot_dimension_numbers<[1], [0], [0], [1], [0, 0, 1, 1], [], []>} : vector<768x128xf32>, vector<128x256xf32>, vector<768x256xf32> -> vector<768x256xf32>
    %18 = arith.addf %11, %17 : vector<768x256xf32>
    %19 = vector.extract_strided_slice %8 {offsets = [2, 0], sizes = [766, 128], strides = [1, 1]} : vector<768x128xf32> to vector<766x128xf32>
    %20 = vector.extract_strided_slice %8 {offsets = [0, 0], sizes = [2, 128], strides = [1, 1]} : vector<768x128xf32> to vector<2x128xf32>
    %21 = tpu.concatenate %19, %20 in 0 : vector<766x128xf32>, vector<2x128xf32> -> vector<768x128xf32>
    %c2 = arith.constant 2 : index
    %c0_14 = arith.constant 0 : index
    %c0_15 = arith.constant 0 : index
    %22 = vector.load %arg4[%c2, %c0_14, %c0_15] : memref<3x128x256xf32, #tpu.memory_space<vmem>>, vector<1x128x256xf32>
    %23 = vector.shape_cast %22 : vector<1x128x256xf32> to vector<128x256xf32>
    %cst_16 = arith.constant dense<0.000000e+00> : vector<768x256xf32>
    %24 = tpu.matmul %21, %23, %cst_16 {dimension_numbers = #tpu.dot_dimension_numbers<[1], [0], [0], [1], [0, 0, 1, 1], [], []>} : vector<768x128xf32>, vector<128x256xf32>, vector<768x256xf32> -> vector<768x256xf32>
    %25 = arith.addf %18, %24 : vector<768x256xf32>
    %c0_17 = arith.constant 0 : index
    %c0_18 = arith.constant 0 : index
    %26 = vector.load %arg5[%c0_17, %c0_18] : memref<1x256xf32, #tpu.memory_space<vmem>>, vector<1x256xf32>
    %27 = vector.broadcast %26 : vector<1x256xf32> to vector<768x256xf32>
    %28 = arith.addf %25, %27 : vector<768x256xf32>
    %cst_19 = arith.constant 0.000000e+00 : f32
    %29 = vector.broadcast %cst_19 : f32 to vector<768x256xf32>
    %30 = arith.maximumf %28, %29 : vector<768x256xf32>
    %31 = vector.shape_cast %30 : vector<768x256xf32> to vector<8x96x256xf32>
    %c0_20 = arith.constant 0 : index
    %c0_21 = arith.constant 0 : index
    %32 = vector.load %arg6[%c0_20, %c0_21] : memref<96x256xf32, #tpu.memory_space<vmem>>, vector<96x256xf32>
    %33 = vector.shape_cast %32 : vector<96x256xf32> to vector<1x96x256xf32>
    %34 = vector.broadcast %33 : vector<1x96x256xf32> to vector<8x96x256xf32>
    %35 = arith.mulf %31, %34 : vector<8x96x256xf32>
    %cst_22 = arith.constant dense<0.000000e+00> : vector<8x256xf32>
    %36 = vector.multi_reduction <add>, %35, %cst_22 [1] : vector<8x96x256xf32> to vector<8x256xf32>
    %c0_23 = arith.constant 0 : index
    %c0_24 = arith.constant 0 : index
    %37 = vector.load %arg7[%c0_23, %c0_24] : memref<1x256xf32, #tpu.memory_space<vmem>>, vector<1x256xf32>
    %38 = vector.broadcast %37 : vector<1x256xf32> to vector<8x256xf32>
    %39 = arith.mulf %36, %38 : vector<8x256xf32>
    %cst_25 = arith.constant dense<0.000000e+00> : vector<8xf32>
    %40 = vector.multi_reduction <add>, %39, %cst_25 [1] : vector<8x256xf32> to vector<8xf32>
    %41 = vector.shape_cast %40 : vector<8xf32> to vector<8x1xf32>
    %c0_26 = arith.constant 0 : index
    %c0_27 = arith.constant 0 : index
    %42 = vector.load %arg8[%c0_26, %c0_27] : memref<1x1xf32, #tpu.memory_space<vmem>>, vector<1x1xf32>
    %43 = vector.broadcast %42 : vector<1x1xf32> to vector<8x1xf32>
    %44 = arith.addf %41, %43 : vector<8x1xf32>
    %45 = math.tanh %44 : vector<8x1xf32>
    %46 = tpu.iota {dimensions = array<i32: 0>} : vector<8x8xi32>
    %47 = tpu.iota {dimensions = array<i32: 1>} : vector<8x8xi32>
    %48 = arith.cmpi eq, %46, %47 : vector<8x8xi32>
    %49 = arith.extui %48 : vector<8x8xi1> to vector<8x8xi32>
    %50 = arith.sitofp %49 : vector<8x8xi32> to vector<8x8xf32>
    %51 = vector.broadcast %45 : vector<8x1xf32> to vector<8x8xf32>
    %52 = arith.mulf %51, %50 : vector<8x8xf32>
    %cst_28 = arith.constant dense<0.000000e+00> : vector<8xf32>
    %53 = vector.multi_reduction <add>, %52, %cst_28 [0] : vector<8x8xf32> to vector<8xf32>
    %54 = vector.shape_cast %53 : vector<8xf32> to vector<1x8xf32>
    %55 = vector.shape_cast %54 : vector<1x8xf32> to vector<1x1x8xf32>
    %56 = vector.shape_cast %55 : vector<1x1x8xf32> to vector<1x1x8xf32>
    %57 = vector.broadcast %56 : vector<1x1x8xf32> to vector<1x8x8xf32>
    %c0_29 = arith.constant 0 : index
    %c0_30 = arith.constant 0 : index
    %c0_31 = arith.constant 0 : index
    %58 = vector.load %arg9[%c0_29, %c0_30, %c0_31] : memref<1x8x8xf32, #tpu.memory_space<vmem>>, vector<1x8x8xf32>
    tpu.vector_store %arg9[%c0_29, %c0_30, %c0_31], %57 {strides = array<i32>} : memref<1x8x8xf32, #tpu.memory_space<vmem>>, vector<1x8x8xf32>,
    return
  }
  func.func @transform_0(%arg0: i32) -> (i32, i32, i32) {
    %c0_i32 = arith.constant 0 : i32
    %c0_i32_0 = arith.constant 0 : i32
    %c0_i32_1 = arith.constant 0 : i32
    return %arg0, %c0_i32, %c0_i32_0 : i32, i32, i32
  }
  func.func @transform_1(%arg0: i32) -> (i32, i32) {
    %c0_i32 = arith.constant 0 : i32
    %c0_i32_0 = arith.constant 0 : i32
    %c0_i32_1 = arith.constant 0 : i32
    return %c0_i32, %c0_i32_0 : i32, i32
  }
  func.func @transform_2(%arg0: i32) -> (i32, i32) {
    %c0_i32 = arith.constant 0 : i32
    %c0_i32_0 = arith.constant 0 : i32
    %c0_i32_1 = arith.constant 0 : i32
    return %c0_i32, %c0_i32_0 : i32, i32
  }
  func.func @transform_3(%arg0: i32) -> (i32, i32, i32) {
    %c0_i32 = arith.constant 0 : i32
    %c0_i32_0 = arith.constant 0 : i32
    %c0_i32_1 = arith.constant 0 : i32
    %c0_i32_2 = arith.constant 0 : i32
    return %c0_i32, %c0_i32_0, %c0_i32_1 : i32, i32, i32
  }
  func.func @transform_4(%arg0: i32) -> (i32, i32) {
    %c0_i32 = arith.constant 0 : i32
    %c0_i32_0 = arith.constant 0 : i32
    %c0_i32_1 = arith.constant 0 : i32
    return %c0_i32, %c0_i32_0 : i32, i32
  }
  func.func @transform_5(%arg0: i32) -> (i32, i32) {
    %c0_i32 = arith.constant 0 : i32
    %c0_i32_0 = arith.constant 0 : i32
    %c0_i32_1 = arith.constant 0 : i32
    return %c0_i32, %c0_i32_0 : i32, i32
  }
  func.func @transform_6(%arg0: i32) -> (i32, i32) {
    %c0_i32 = arith.constant 0 : i32
    %c0_i32_0 = arith.constant 0 : i32
    %c0_i32_1 = arith.constant 0 : i32
    return %c0_i32, %c0_i32_0 : i32, i32
  }
  func.func @transform_7(%arg0: i32) -> (i32, i32) {
    %c0_i32 = arith.constant 0 : i32
    %c0_i32_0 = arith.constant 0 : i32
    %c0_i32_1 = arith.constant 0 : i32
    return %c0_i32, %c0_i32_0 : i32, i32
  }
  func.func @transform_8(%arg0: i32) -> (i32, i32, i32) {
    %c0_i32 = arith.constant 0 : i32
    %c0_i32_0 = arith.constant 0 : i32
    %c0_i32_1 = arith.constant 0 : i32
    return %arg0, %c0_i32, %c0_i32_0 : i32, i32, i32
  }
}

</mosaic_0001>

<llo_original>
// kernel: pallas_forward.1
$region0: #{pallas_forward.1}
  #allocation0 [shape = 'u32[]', space=smem, size = 0x4, offset = 0x4, fixed_abs, tag = 'smem constant byte address 0x4 - core index']
  #allocation1 [shape = 'u32[144,128]{1,0:T(1,128)}', space=vmem, size = 0x12000, scoped, tag = 'internal scratch']
  #allocation2 [shape = 'f32[1,1]{1,0:T(1,128)S(1)}', space=vmem, size = 0x200, scoped, tag = 'scoped memory for pallas_forward.1']
  %s0 = inlined_call_operand.vmem [shape: f32[8,96,4], index: 0, kind: input, shape index: {}]
  %s1 = inlined_call_operand.vmem [shape: f32[4,128], index: 1, kind: input, shape index: {}]
  %s2 = inlined_call_operand.vmem [shape: f32[1,128], index: 2, kind: input, shape index: {}]
  %s3 = inlined_call_operand.vmem [shape: f32[3,128,256], index: 3, kind: input, shape index: {}]
  %s4 = inlined_call_operand.vmem [shape: f32[1,256], index: 4, kind: input, shape index: {}]
  %s5 = inlined_call_operand.vmem [shape: f32[96,256], index: 5, kind: input, shape index: {}]
  %s6 = inlined_call_operand.vmem [shape: f32[1,256], index: 6, kind: input, shape index: {}]
  %s7 = inlined_call_operand.<no memory space> [shape: f32[1,1], index: 7, kind: input, shape index: {}]
  %s8 = inlined_call_operand.vmem [shape: f32[1,8,8], index: 8, kind: output, shape index: {}]
  %s9 = sld [smem:[#allocation0]]
  $region42: #{pallas_forward.1} parent=0
    _
  %s11 = ssub.s32 1, %s9
  %s12 = scalar_select 0, %s11, %s9
  %v13 = vstv %s7
  %14 = vst [vmem:[#allocation2] sm:$0x1] %v13
  // Predicated region
  $region2: #{pallas_forward.1} parent=0 // pred_check
    _
  $region3: #{pallas_forward.1} parent=0 // pred_check_branch
    %16 = sbr.rel (0) target = $region5
  $region4: #{pallas_forward.1} parent=0 // pred_region
    _
  $region5: #{pallas_forward.1} parent=0 // pred_fallthru
    _
  // Predicated region
  $region6: #{pallas_forward.1} parent=0 // pred_check
    _
  $region7: #{pallas_forward.1} parent=0 // pred_check_branch
    %18 = sbr.rel (0) target = $region9
  $region8: #{pallas_forward.1} parent=0 // pred_region
    _
  $region9: #{pallas_forward.1} parent=0 // pred_fallthru
    _
  // Predicated region
  $region10: #{pallas_forward.1} parent=0 // pred_check
    _
  $region11: #{pallas_forward.1} parent=0 // pred_check_branch
    %20 = sbr.rel (0) target = $region13
  $region12: #{pallas_forward.1} parent=0 // pred_region
    _
  $region13: #{pallas_forward.1} parent=0 // pred_fallthru
    _
  // Predicated region
  $region14: #{pallas_forward.1} parent=0 // pred_check
    _
  $region15: #{pallas_forward.1} parent=0 // pred_check_branch
    %22 = sbr.rel (0) target = $region17
  $region16: #{pallas_forward.1} parent=0 // pred_region
    _
  $region17: #{pallas_forward.1} parent=0 // pred_fallthru
    _
  // Predicated region
  $region18: #{pallas_forward.1} parent=0 // pred_check
    _
  $region19: #{pallas_forward.1} parent=0 // pred_check_branch
    %24 = sbr.rel (0) target = $region21
  $region20: #{pallas_forward.1} parent=0 // pred_region
    _
  $region21: #{pallas_forward.1} parent=0 // pred_fallthru
    _
  // Predicated region
  $region22: #{pallas_forward.1} parent=0 // pred_check
    _
  $region23: #{pallas_forward.1} parent=0 // pred_check_branch
    %26 = sbr.rel (0) target = $region25
  $region24: #{pallas_forward.1} parent=0 // pred_region
    _
  $region25: #{pallas_forward.1} parent=0 // pred_fallthru
    _
  // Predicated region
  $region26: #{pallas_forward.1} parent=0 // pred_check
    _
  $region27: #{pallas_forward.1} parent=0 // pred_check_branch
    %28 = sbr.rel (0) target = $region29
  $region28: #{pallas_forward.1} parent=0 // pred_region
    _
  $region29: #{pallas_forward.1} parent=0 // pred_fallthru
    _
  // Predicated region
  $region30: #{pallas_forward.1} parent=0 // pred_check
    _
  $region31: #{pallas_forward.1} parent=0 // pred_check_branch
    %30 = sbr.rel (0) target = $region33
  $region32: #{pallas_forward.1} parent=0 // pred_region
    _
  $region33: #{pallas_forward.1} parent=0 // pred_fallthru
    _
  %v31 = vld [vmem:[%s0] sm:$0xff]
  %v32 = vld [vmem:[%s0 + $0x8] sm:$0xff]
  %v33 = vld [vmem:[%s0 + $0x10] sm:$0xff]
  %v34 = vld [vmem:[%s0 + $0x18] sm:$0xff]
  %v35 = vld [vmem:[%s0 + $0x20] sm:$0xff]
  %v36 = vld [vmem:[%s0 + $0x28] sm:$0xff]
  %v37 = vld [vmem:[%s0 + $0x30] sm:$0xff]
  %v38 = vld [vmem:[%s0 + $0x38] sm:$0xff]
  %v39 = vld [vmem:[%s0 + $0x40] sm:$0xff]
  %v40 = vld [vmem:[%s0 + $0x48] sm:$0xff]
  %v41 = vld [vmem:[%s0 + $0x50] sm:$0xff]
  %v42 = vld [vmem:[%s0 + $0x58] sm:$0xff]
  %v43 = vld [vmem:[%s0 + $0x60] sm:$0xff]
  %v44 = vld [vmem:[%s0 + $0x68] sm:$0xff]
  %v45 = vld [vmem:[%s0 + $0x70] sm:$0xff]
  %v46 = vld [vmem:[%s0 + $0x78] sm:$0xff]
  %v47 = vld [vmem:[%s0 + $0x80] sm:$0xff]
  %v48 = vld [vmem:[%s0 + $0x88] sm:$0xff]
  %v49 = vld [vmem:[%s0 + $0x90] sm:$0xff]
  %v50 = vld [vmem:[%s0 + $0x98] sm:$0xff]
  %v51 = vld [vmem:[%s0 + $0xa0] sm:$0xff]
  %v52 = vld [vmem:[%s0 + $0xa8] sm:$0xff]
  %v53 = vld [vmem:[%s0 + $0xb0] sm:$0xff]
  %v54 = vld [vmem:[%s0 + $0xb8] sm:$0xff]
  %v55 = vld [vmem:[%s0 + $0xc0] sm:$0xff]
  %v56 = vld [vmem:[%s0 + $0xc8] sm:$0xff]
  %v57 = vld [vmem:[%s0 + $0xd0] sm:$0xff]
  %v58 = vld [vmem:[%s0 + $0xd8] sm:$0xff]
  %v59 = vld [vmem:[%s0 + $0xe0] sm:$0xff]
  %v60 = vld [vmem:[%s0 + $0xe8] sm:$0xff]
  %v61 = vld [vmem:[%s0 + $0xf0] sm:$0xff]
  %v62 = vld [vmem:[%s0 + $0xf8] sm:$0xff]
  %v63 = vld [vmem:[%s0 + $0x100] sm:$0xff]
  %v64 = vld [vmem:[%s0 + $0x108] sm:$0xff]
  %v65 = vld [vmem:[%s0 + $0x110] sm:$0xff]
  %v66 = vld [vmem:[%s0 + $0x118] sm:$0xff]
  %v67 = vld [vmem:[%s0 + $0x120] sm:$0xff]
  %v68 = vld [vmem:[%s0 + $0x128] sm:$0xff]
  %v69 = vld [vmem:[%s0 + $0x130] sm:$0xff]
  %v70 = vld [vmem:[%s0 + $0x138] sm:$0xff]
  %v71 = vld [vmem:[%s0 + $0x140] sm:$0xff]
  %v72 = vld [vmem:[%s0 + $0x148] sm:$0xff]
  %v73 = vld [vmem:[%s0 + $0x150] sm:$0xff]
  %v74 = vld [vmem:[%s0 + $0x158] sm:$0xff]
  %v75 = vld [vmem:[%s0 + $0x160] sm:$0xff]
  %v76 = vld [vmem:[%s0 + $0x168] sm:$0xff]
  %v77 = vld [vmem:[%s0 + $0x170] sm:$0xff]
  %v78 = vld [vmem:[%s0 + $0x178] sm:$0xff]
  %v79 = vld [vmem:[%s0 + $0x180] sm:$0xff]
  %v80 = vld [vmem:[%s0 + $0x188] sm:$0xff]
  %v81 = vld [vmem:[%s0 + $0x190] sm:$0xff]
  %v82 = vld [vmem:[%s0 + $0x198] sm:$0xff]
  %v83 = vld [vmem:[%s0 + $0x1a0] sm:$0xff]
  %v84 = vld [vmem:[%s0 + $0x1a8] sm:$0xff]
  %v85 = vld [vmem:[%s0 + $0x1b0] sm:$0xff]
  %v86 = vld [vmem:[%s0 + $0x1b8] sm:$0xff]
  %v87 = vld [vmem:[%s0 + $0x1c0] sm:$0xff]
  %v88 = vld [vmem:[%s0 + $0x1c8] sm:$0xff]
  %v89 = vld [vmem:[%s0 + $0x1d0] sm:$0xff]
  %v90 = vld [vmem:[%s0 + $0x1d8] sm:$0xff]
  %v91 = vld [vmem:[%s0 + $0x1e0] sm:$0xff]
  %v92 = vld [vmem:[%s0 + $0x1e8] sm:$0xff]
  %v93 = vld [vmem:[%s0 + $0x1f0] sm:$0xff]
  %v94 = vld [vmem:[%s0 + $0x1f8] sm:$0xff]
  %v95 = vld [vmem:[%s0 + $0x200] sm:$0xff]
  %v96 = vld [vmem:[%s0 + $0x208] sm:$0xff]
  %v97 = vld [vmem:[%s0 + $0x210] sm:$0xff]
  %v98 = vld [vmem:[%s0 + $0x218] sm:$0xff]
  %v99 = vld [vmem:[%s0 + $0x220] sm:$0xff]
  %v100 = vld [vmem:[%s0 + $0x228] sm:$0xff]
  %v101 = vld [vmem:[%s0 + $0x230] sm:$0xff]
  %v102 = vld [vmem:[%s0 + $0x238] sm:$0xff]
  %v103 = vld [vmem:[%s0 + $0x240] sm:$0xff]
  %v104 = vld [vmem:[%s0 + $0x248] sm:$0xff]
  %v105 = vld [vmem:[%s0 + $0x250] sm:$0xff]
  %v106 = vld [vmem:[%s0 + $0x258] sm:$0xff]
  %v107 = vld [vmem:[%s0 + $0x260] sm:$0xff]
  %v108 = vld [vmem:[%s0 + $0x268] sm:$0xff]
  %v109 = vld [vmem:[%s0 + $0x270] sm:$0xff]
  %v110 = vld [vmem:[%s0 + $0x278] sm:$0xff]
  %v111 = vld [vmem:[%s0 + $0x280] sm:$0xff]
  %v112 = vld [vmem:[%s0 + $0x288] sm:$0xff]
  %v113 = vld [vmem:[%s0 + $0x290] sm:$0xff]
  %v114 = vld [vmem:[%s0 + $0x298] sm:$0xff]
  %v115 = vld [vmem:[%s0 + $0x2a0] sm:$0xff]
  %v116 = vld [vmem:[%s0 + $0x2a8] sm:$0xff]
  %v117 = vld [vmem:[%s0 + $0x2b0] sm:$0xff]
  %v118 = vld [vmem:[%s0 + $0x2b8] sm:$0xff]
  %v119 = vld [vmem:[%s0 + $0x2c0] sm:$0xff]
  %v120 = vld [vmem:[%s0 + $0x2c8] sm:$0xff]
  %v121 = vld [vmem:[%s0 + $0x2d0] sm:$0xff]
  %v122 = vld [vmem:[%s0 + $0x2d8] sm:$0xff]
  %v123 = vld [vmem:[%s0 + $0x2e0] sm:$0xff]
  %v124 = vld [vmem:[%s0 + $0x2e8] sm:$0xff]
  %v125 = vld [vmem:[%s0 + $0x2f0] sm:$0xff]
  %v126 = vld [vmem:[%s0 + $0x2f8] sm:$0xff]
  %v127 = vld [vmem:[%s1] sm:$0xf]
  %v128 = vld [vmem:[%s2] sm:$0x1]
  %v130 = vlaneseq
  %v131 = vshrl.u32 %v130, 7
  %v132 = vsub.s32 0, %v131
  %v133 = vrot.slane %v128, %v132
  %vm135 = vcmask 31744
  %v137 = vsel %vm135, %v31, 0
  %v140 = vsel %vm135, %v32, 0
  %v143 = vsel %vm135, %v33, 0
  %v146 = vsel %vm135, %v34, 0
  %v149 = vsel %vm135, %v35, 0
  %v152 = vsel %vm135, %v36, 0
  %v155 = vsel %vm135, %v37, 0
  %v158 = vsel %vm135, %v38, 0
  %v161 = vsel %vm135, %v39, 0
  %v164 = vsel %vm135, %v40, 0
  %v167 = vsel %vm135, %v41, 0
  %v170 = vsel %vm135, %v42, 0
  %v173 = vsel %vm135, %v43, 0
  %v176 = vsel %vm135, %v44, 0
  %v179 = vsel %vm135, %v45, 0
  %v182 = vsel %vm135, %v46, 0
  %v185 = vsel %vm135, %v47, 0
  %v188 = vsel %vm135, %v48, 0
  %v191 = vsel %vm135, %v49, 0
  %v194 = vsel %vm135, %v50, 0
  %v197 = vsel %vm135, %v51, 0
  %v200 = vsel %vm135, %v52, 0
  %v203 = vsel %vm135, %v53, 0
  %v206 = vsel %vm135, %v54, 0
  %v209 = vsel %vm135, %v55, 0
  %v212 = vsel %vm135, %v56, 0
  %v215 = vsel %vm135, %v57, 0
  %v218 = vsel %vm135, %v58, 0
  %v221 = vsel %vm135, %v59, 0
  %v224 = vsel %vm135, %v60, 0
  %v227 = vsel %vm135, %v61, 0
  %v230 = vsel %vm135, %v62, 0
  %v233 = vsel %vm135, %v63, 0
  %v236 = vsel %vm135, %v64, 0
  %v239 = vsel %vm135, %v65, 0
  %v242 = vsel %vm135, %v66, 0
  %v245 = vsel %vm135, %v67, 0
  %v248 = vsel %vm135, %v68, 0
  %v251 = vsel %vm135, %v69, 0
  %v254 = vsel %vm135, %v70, 0
  %v257 = vsel %vm135, %v71, 0
  %v260 = vsel %vm135, %v72, 0
  %v263 = vsel %vm135, %v73, 0
  %v266 = vsel %vm135, %v74, 0
  %v269 = vsel %vm135, %v75, 0
  %v272 = vsel %vm135, %v76, 0
  %v275 = vsel %vm135, %v77, 0
  %v278 = vsel %vm135, %v78, 0
  %v281 = vsel %vm135, %v79, 0
  %v284 = vsel %vm135, %v80, 0
  %v287 = vsel %vm135, %v81, 0
  %v290 = vsel %vm135, %v82, 0
  %v293 = vsel %vm135, %v83, 0
  %v296 = vsel %vm135, %v84, 0
  %v299 = vsel %vm135, %v85, 0
  %v302 = vsel %vm135, %v86, 0
  %v305 = vsel %vm135, %v87, 0
  %v308 = vsel %vm135, %v88, 0
  %v311 = vsel %vm135, %v89, 0
  %v314 = vsel %vm135, %v90, 0
  %v317 = vsel %vm135, %v91, 0
  %v320 = vsel %vm135, %v92, 0
  %v323 = vsel %vm135, %v93, 0
  %v326 = vsel %vm135, %v94, 0
  %v329 = vsel %vm135, %v95, 0
  %v332 = vsel %vm135, %v96, 0
  %v335 = vsel %vm135, %v97, 0
  %v338 = vsel %vm135, %v98, 0
  %v341 = vsel %vm135, %v99, 0
  %v344 = vsel %vm135, %v100, 0
  %v347 = vsel %vm135, %v101, 0
  %v350 = vsel %vm135, %v102, 0
  %v353 = vsel %vm135, %v103, 0
  %v356 = vsel %vm135, %v104, 0
  %v359 = vsel %vm135, %v105, 0
  %v362 = vsel %vm135, %v106, 0
  %v365 = vsel %vm135, %v107, 0
  %v368 = vsel %vm135, %v108, 0
  %v371 = vsel %vm135, %v109, 0
  %v374 = vsel %vm135, %v110, 0
  %v377 = vsel %vm135, %v111, 0
  %v380 = vsel %vm135, %v112, 0
  %v383 = vsel %vm135, %v113, 0
  %v386 = vsel %vm135, %v114, 0
  %v389 = vsel %vm135, %v115, 0
  %v392 = vsel %vm135, %v116, 0
  %v395 = vsel %vm135, %v117, 0
  %v398 = vsel %vm135, %v118, 0
  %v401 = vsel %vm135, %v119, 0
  %v404 = vsel %vm135, %v120, 0
  %v407 = vsel %vm135, %v121, 0
  %v410 = vsel %vm135, %v122, 0
  %v413 = vsel %vm135, %v123, 0
  %v416 = vsel %vm135, %v124, 0
  %v419 = vsel %vm135, %v125, 0
  %v422 = vsel %vm135, %v126, 0
  %vm424 = vcmask 1043456
  %v426 = vsel %vm424, %v127, 0
  %428 = vmatprep.subr.mxu0 0.0
  %429 = vmatpush1.msra.mxu0 %v426
  %430 = vmatprep.subr.mxu0 0.0
  %431 = vmatpush1.msra.mxu0 0.0
  %432 = vmatprep.subr.mxu0 0.0
  %433 = vmatpush1.msra.mxu0 0.0
  %434 = vmatprep.subr.mxu0 0.0
  %435 = vmatpush1.msra.mxu0 0.0
  %436 = vmatprep.subr.mxu0 0.0
  %437 = vmatpush1.msra.mxu0 0.0
  %438 = vmatprep.subr.mxu0 0.0
  %439 = vmatpush1.msra.mxu0 0.0
  %440 = vmatprep.subr.mxu0 0.0
  %441 = vmatpush1.msra.mxu0 0.0
  %442 = vmatprep.subr.mxu0 0.0
  %443 = vmatpush1.msra.mxu0 0.0
  %444 = vmatprep.subr.mxu0 0.0
  %445 = vmatpush1.msra.mxu0 0.0
  %446 = vmatprep.subr.mxu0 0.0
  %447 = vmatpush1.msra.mxu0 0.0
  %448 = vmatprep.subr.mxu0 0.0
  %449 = vmatpush1.msra.mxu0 0.0
  %450 = vmatprep.subr.mxu0 0.0
  %451 = vmatpush1.msra.mxu0 0.0
  %452 = vmatprep.subr.mxu0 0.0
  %453 = vmatpush1.msra.mxu0 0.0
  %454 = vmatprep.subr.mxu0 0.0
  %455 = vmatpush1.msra.mxu0 0.0
  %456 = vmatprep.subr.mxu0 0.0
  %457 = vmatpush1.msra.mxu0 0.0
  %458 = vmatprep.subr.mxu0 0.0
  %459 = vmatpush1.msra.mxu0 0.0
  %460 = vmatprep.subr.mxu0 0.0
  %461 = vmatpush1.msra.mxu0 0.0
  %462 = vmatprep.subr.mxu0 0.0
  %463 = vmatpush1.msra.mxu0 0.0
  %464 = vmatprep.subr.mxu0 0.0
  %465 = vmatpush1.msra.mxu0 0.0
  %466 = vmatprep.subr.mxu0 0.0
  %467 = vmatpush1.msra.mxu0 0.0
  %468 = vmatprep.subr.mxu0 0.0
  %469 = vmatpush1.msra.mxu0 0.0
  %470 = vmatprep.subr.mxu0 0.0
  %471 = vmatpush1.msra.mxu0 0.0
  %472 = vmatprep.subr.mxu0 0.0
  %473 = vmatpush1.msra.mxu0 0.0
  %474 = vmatprep.subr.mxu0 0.0
  %475 = vmatpush1.msra.mxu0 0.0
  %476 = vmatprep.subr.mxu0 0.0
  %477 = vmatpush1.msra.mxu0 0.0
  %478 = vmatprep.subr.mxu0 0.0
  %479 = vmatpush1.msra.mxu0 0.0
  %480 = vmatprep.subr.mxu0 0.0
  %481 = vmatpush1.msra.mxu0 0.0
  %482 = vmatprep.subr.mxu0 0.0
  %483 = vmatpush1.msra.mxu0 0.0
  %484 = vmatprep.subr.mxu0 0.0
  %485 = vmatpush1.msra.mxu0 0.0
  %486 = vmatprep.subr.mxu0 0.0
  %487 = vmatpush1.msra.mxu0 0.0
  %488 = vmatprep.subr.mxu0 0.0
  %489 = vmatpush1.msra.mxu0 0.0
  %490 = vmatprep.subr.mxu0 0.0
  %491 = vmatpush1.msra.mxu0 0.0
  %492 = vmatprep.mubr.f32.mxu0 0.0
  %493 = vmatmul.mubr.f32.gmra.mrb[0].mxu0 %v137
  %v494 = vpop.f32.mrb[0].mxu0
  %v495 = vadd.f32 %v133, %v494
  %v496 = vpop.f32.mrb[0].mxu0
  %497 = vmatprep.mubr.f32.mxu0 0.0
  %498 = vmatmul.mubr.f32.gmra.mrb[0].mxu0 %v140
  %v499 = vpop.f32.mrb[0].mxu0
  %v500 = vadd.f32 %v133, %v499
  %v501 = vpop.f32.mrb[0].mxu0
  %502 = vmatprep.mubr.f32.mxu0 0.0
  %503 = vmatmul.mubr.f32.gmra.mrb[0].mxu0 %v143
  %v504 = vpop.f32.mrb[0].mxu0
  %v505 = vadd.f32 %v133, %v504
  %v506 = vpop.f32.mrb[0].mxu0
  %507 = vmatprep.mubr.f32.mxu0 0.0
  %508 = vmatmul.mubr.f32.gmra.mrb[0].mxu0 %v146
  %v509 = vpop.f32.mrb[0].mxu0
  %v510 = vadd.f32 %v133, %v509
  %v511 = vpop.f32.mrb[0].mxu0
  %512 = vmatprep.mubr.f32.mxu0 0.0
  %513 = vmatmul.mubr.f32.gmra.mrb[0].mxu0 %v149
  %v514 = vpop.f32.mrb[0].mxu0
  %v515 = vadd.f32 %v133, %v514
  %v516 = vpop.f32.mrb[0].mxu0
  %517 = vmatprep.mubr.f32.mxu0 0.0
  %518 = vmatmul.mubr.f32.gmra.mrb[0].mxu0 %v152
  %v519 = vpop.f32.mrb[0].mxu0
  %v520 = vadd.f32 %v133, %v519
  %v521 = vpop.f32.mrb[0].mxu0
  %522 = vmatprep.mubr.f32.mxu0 0.0
  %523 = vmatmul.mubr.f32.gmra.mrb[0].mxu0 %v155
  %v524 = vpop.f32.mrb[0].mxu0
  %v525 = vadd.f32 %v133, %v524
  %v526 = vpop.f32.mrb[0].mxu0
  %527 = vmatprep.mubr.f32.mxu0 0.0
  %528 = vmatmul.mubr.f32.gmra.mrb[0].mxu0 %v158
  %v529 = vpop.f32.mrb[0].mxu0
  %v530 = vadd.f32 %v133, %v529
  %v531 = vpop.f32.mrb[0].mxu0
  %532 = vmatprep.mubr.f32.mxu0 0.0
  %533 = vmatmul.mubr.f32.gmra.mrb[0].mxu0 %v161
  %v534 = vpop.f32.mrb[0].mxu0
  %v535 = vadd.f32 %v133, %v534
  %v536 = vpop.f32.mrb[0].mxu0
  %537 = vmatprep.mubr.f32.mxu0 0.0
  %538 = vmatmul.mubr.f32.gmra.mrb[0].mxu0 %v164
  %v539 = vpop.f32.mrb[0].mxu0
  %v540 = vadd.f32 %v133, %v539
  %v541 = vpop.f32.mrb[0].mxu0
  %542 = vmatprep.mubr.f32.mxu0 0.0
  %543 = vmatmul.mubr.f32.gmra.mrb[0].mxu0 %v167
  %v544 = vpop.f32.mrb[0].mxu0
  %v545 = vadd.f32 %v133, %v544
  %v546 = vpop.f32.mrb[0].mxu0
  %547 = vmatprep.mubr.f32.mxu0 0.0
  %548 = vmatmul.mubr.f32.gmra.mrb[0].mxu0 %v170
  %v549 = vpop.f32.mrb[0].mxu0
  %v550 = vadd.f32 %v133, %v549
  %v551 = vpop.f32.mrb[0].mxu0
  %552 = vmatprep.mubr.f32.mxu0 0.0
  %553 = vmatmul.mubr.f32.gmra.mrb[0].mxu0 %v173
  %v554 = vpop.f32.mrb[0].mxu0
  %v555 = vadd.f32 %v133, %v554
  %v556 = vpop.f32.mrb[0].mxu0
  %557 = vmatprep.mubr.f32.mxu0 0.0
  %558 = vmatmul.mubr.f32.gmra.mrb[0].mxu0 %v176
  %v559 = vpop.f32.mrb[0].mxu0
  %v560 = vadd.f32 %v133, %v559
  %v561 = vpop.f32.mrb[0].mxu0
  %562 = vmatprep.mubr.f32.mxu0 0.0
  %563 = vmatmul.mubr.f32.gmra.mrb[0].mxu0 %v179
  %v564 = vpop.f32.mrb[0].mxu0
  %v565 = vadd.f32 %v133, %v564
  %v566 = vpop.f32.mrb[0].mxu0
  %567 = vmatprep.mubr.f32.mxu0 0.0
  %568 = vmatmul.mubr.f32.gmra.mrb[0].mxu0 %v182
  %v569 = vpop.f32.mrb[0].mxu0
  %v570 = vadd.f32 %v133, %v569
  %v571 = vpop.f32.mrb[0].mxu0
  %572 = vmatprep.mubr.f32.mxu0 0.0
  %573 = vmatmul.mubr.f32.gmra.mrb[0].mxu0 %v185
  %v574 = vpop.f32.mrb[0].mxu0
  %v575 = vadd.f32 %v133, %v574
  %v576 = vpop.f32.mrb[0].mxu0
  %577 = vmatprep.mubr.f32.mxu0 0.0
  %578 = vmatmul.mubr.f32.gmra.mrb[0].mxu0 %v188
  %v579 = vpop.f32.mrb[0].mxu0
  %v580 = vadd.f32 %v133, %v579
  %v581 = vpop.f32.mrb[0].mxu0
  %582 = vmatprep.mubr.f32.mxu0 0.0
  %583 = vmatmul.mubr.f32.gmra.mrb[0].mxu0 %v191
  %v584 = vpop.f32.mrb[0].mxu0
  %v585 = vadd.f32 %v133, %v584
  %v586 = vpop.f32.mrb[0].mxu0
  %587 = vmatprep.mubr.f32.mxu0 0.0
  %588 = vmatmul.mubr.f32.gmra.mrb[0].mxu0 %v194
  %v589 = vpop.f32.mrb[0].mxu0
  %v590 = vadd.f32 %v133, %v589
  %v591 = vpop.f32.mrb[0].mxu0
  %592 = vmatprep.mubr.f32.mxu0 0.0
  %593 = vmatmul.mubr.f32.gmra.mrb[0].mxu0 %v197
  %v594 = vpop.f32.mrb[0].mxu0
  %v595 = vadd.f32 %v133, %v594
  %v596 = vpop.f32.mrb[0].mxu0
  %597 = vmatprep.mubr.f32.mxu0 0.0
  %598 = vmatmul.mubr.f32.gmra.mrb[0].mxu0 %v200
  %v599 = vpop.f32.mrb[0].mxu0
  %v600 = vadd.f32 %v133, %v599
  %v601 = vpop.f32.mrb[0].mxu0
  %602 = vmatprep.mubr.f32.mxu0 0.0
  %603 = vmatmul.mubr.f32.gmra.mrb[0].mxu0 %v203
  %v604 = vpop.f32.mrb[0].mxu0
  %v605 = vadd.f32 %v133, %v604
  %v606 = vpop.f32.mrb[0].mxu0
  %607 = vmatprep.mubr.f32.mxu0 0.0
  %608 = vmatmul.mubr.f32.gmra.mrb[0].mxu0 %v206
  %v609 = vpop.f32.mrb[0].mxu0
  %v610 = vadd.f32 %v133, %v609
  %v611 = vpop.f32.mrb[0].mxu0
  %612 = vmatprep.mubr.f32.mxu0 0.0
  %613 = vmatmul.mubr.f32.gmra.mrb[0].mxu0 %v209
  %v614 = vpop.f32.mrb[0].mxu0
  %v615 = vadd.f32 %v133, %v614
  %v616 = vpop.f32.mrb[0].mxu0
  %617 = vmatprep.mubr.f32.mxu0 0.0
  %618 = vmatmul.mubr.f32.gmra.mrb[0].mxu0 %v212
  %v619 = vpop.f32.mrb[0].mxu0
  %v620 = vadd.f32 %v133, %v619
  %v621 = vpop.f32.mrb[0].mxu0
  %622 = vmatprep.mubr.f32.mxu0 0.0
  %623 = vmatmul.mubr.f32.gmra.mrb[0].mxu0 %v215
  %v624 = vpop.f32.mrb[0].mxu0
  %v625 = vadd.f32 %v133, %v624
  %v626 = vpop.f32.mrb[0].mxu0
  %627 = vmatprep.mubr.f32.mxu0 0.0
  %628 = vmatmul.mubr.f32.gmra.mrb[0].mxu0 %v218
  %v629 = vpop.f32.mrb[0].mxu0
  %v630 = vadd.f32 %v133, %v629
  %v631 = vpop.f32.mrb[0].mxu0
  %632 = vmatprep.mubr.f32.mxu0 0.0
  %633 = vmatmul.mubr.f32.gmra.mrb[0].mxu0 %v221
  %v634 = vpop.f32.mrb[0].mxu0
  %v635 = vadd.f32 %v133, %v634
  %v636 = vpop.f32.mrb[0].mxu0
  %637 = vmatprep.mubr.f32.mxu0 0.0
  %638 = vmatmul.mubr.f32.gmra.mrb[0].mxu0 %v224
  %v639 = vpop.f32.mrb[0].mxu0
  %v640 = vadd.f32 %v133, %v639
  %v641 = vpop.f32.mrb[0].mxu0
  %642 = vmatprep.mubr.f32.mxu0 0.0
  %643 = vmatmul.mubr.f32.gmra.mrb[0].mxu0 %v227
  %v644 = vpop.f32.mrb[0].mxu0
  %v645 = vadd.f32 %v133, %v644
  %v646 = vpop.f32.mrb[0].mxu0
  %647 = vmatprep.mubr.f32.mxu0 0.0
  %648 = vmatmul.mubr.f32.gmra.mrb[0].mxu0 %v230
  %v649 = vpop.f32.mrb[0].mxu0
  %v650 = vadd.f32 %v133, %v649
  %v651 = vpop.f32.mrb[0].mxu0
  %652 = vmatprep.mubr.f32.mxu0 0.0
  %653 = vmatmul.mubr.f32.gmra.mrb[0].mxu0 %v233
  %v654 = vpop.f32.mrb[0].mxu0
  %v655 = vadd.f32 %v133, %v654
  %v656 = vpop.f32.mrb[0].mxu0
  %657 = vmatprep.mubr.f32.mxu0 0.0
  %658 = vmatmul.mubr.f32.gmra.mrb[0].mxu0 %v236
  %v659 = vpop.f32.mrb[0].mxu0
  %v660 = vadd.f32 %v133, %v659
  %v661 = vpop.f32.mrb[0].mxu0
  %662 = vmatprep.mubr.f32.mxu0 0.0
  %663 = vmatmul.mubr.f32.gmra.mrb[0].mxu0 %v239
  %v664 = vpop.f32.mrb[0].mxu0
  %v665 = vadd.f32 %v133, %v664
  %v666 = vpop.f32.mrb[0].mxu0
  %667 = vmatprep.mubr.f32.mxu0 0.0
  %668 = vmatmul.mubr.f32.gmra.mrb[0].mxu0 %v242
  %v669 = vpop.f32.mrb[0].mxu0
  %v670 = vadd.f32 %v133, %v669
  %v671 = vpop.f32.mrb[0].mxu0
  %672 = vmatprep.mubr.f32.mxu0 0.0
  %673 = vmatmul.mubr.f32.gmra.mrb[0].mxu0 %v245
  %v674 = vpop.f32.mrb[0].mxu0
  %v675 = vadd.f32 %v133, %v674
  %v676 = vpop.f32.mrb[0].mxu0
  %677 = vmatprep.mubr.f32.mxu0 0.0
  %678 = vmatmul.mubr.f32.gmra.mrb[0].mxu0 %v248
  %v679 = vpop.f32.mrb[0].mxu0
  %v680 = vadd.f32 %v133, %v679
  %v681 = vpop.f32.mrb[0].mxu0
  %682 = vmatprep.mubr.f32.mxu0 0.0
  %683 = vmatmul.mubr.f32.gmra.mrb[0].mxu0 %v251
  %v684 = vpop.f32.mrb[0].mxu0
  %v685 = vadd.f32 %v133, %v684
  %v686 = vpop.f32.mrb[0].mxu0
  %687 = vmatprep.mubr.f32.mxu0 0.0
  %688 = vmatmul.mubr.f32.gmra.mrb[0].mxu0 %v254
  %v689 = vpop.f32.mrb[0].mxu0
  %v690 = vadd.f32 %v133, %v689
  %v691 = vpop.f32.mrb[0].mxu0
  %692 = vmatprep.mubr.f32.mxu0 0.0
  %693 = vmatmul.mubr.f32.gmra.mrb[0].mxu0 %v257
  %v694 = vpop.f32.mrb[0].mxu0
  %v695 = vadd.f32 %v133, %v694
  %v696 = vpop.f32.mrb[0].mxu0
  %697 = vmatprep.mubr.f32.mxu0 0.0
  %698 = vmatmul.mubr.f32.gmra.mrb[0].mxu0 %v260
  %v699 = vpop.f32.mrb[0].mxu0
  %v700 = vadd.f32 %v133, %v699
  %v701 = vpop.f32.mrb[0].mxu0
  %702 = vmatprep.mubr.f32.mxu0 0.0
  %703 = vmatmul.mubr.f32.gmra.mrb[0].mxu0 %v263
  %v704 = vpop.f32.mrb[0].mxu0
  %v705 = vadd.f32 %v133, %v704
  %v706 = vpop.f32.mrb[0].mxu0
  %707 = vmatprep.mubr.f32.mxu0 0.0
  %708 = vmatmul.mubr.f32.gmra.mrb[0].mxu0 %v266
  %v709 = vpop.f32.mrb[0].mxu0
  %v710 = vadd.f32 %v133, %v709
  %v711 = vpop.f32.mrb[0].mxu0
  %712 = vmatprep.mubr.f32.mxu0 0.0
  %713 = vmatmul.mubr.f32.gmra.mrb[0].mxu0 %v269
  %v714 = vpop.f32.mrb[0].mxu0
  %v715 = vadd.f32 %v133, %v714
  %v716 = vpop.f32.mrb[0].mxu0
  %717 = vmatprep.mubr.f32.mxu0 0.0
  %718 = vmatmul.mubr.f32.gmra.mrb[0].mxu0 %v272
  %v719 = vpop.f32.mrb[0].mxu0
  %v720 = vadd.f32 %v133, %v719
  %v721 = vpop.f32.mrb[0].mxu0
  %722 = vmatprep.mubr.f32.mxu0 0.0
  %723 = vmatmul.mubr.f32.gmra.mrb[0].mxu0 %v275
  %v724 = vpop.f32.mrb[0].mxu0
  %v725 = vadd.f32 %v133, %v724
  %v726 = vpop.f32.mrb[0].mxu0
  %727 = vmatprep.mubr.f32.mxu0 0.0
  %728 = vmatmul.mubr.f32.gmra.mrb[0].mxu0 %v278
  %v729 = vpop.f32.mrb[0].mxu0
  %v730 = vadd.f32 %v133, %v729
  %v731 = vpop.f32.mrb[0].mxu0
  %732 = vmatprep.mubr.f32.mxu0 0.0
  %733 = vmatmul.mubr.f32.gmra.mrb[0].mxu0 %v281
  %v734 = vpop.f32.mrb[0].mxu0
  %v735 = vadd.f32 %v133, %v734
  %v736 = vpop.f32.mrb[0].mxu0
  %737 = vmatprep.mubr.f32.mxu0 0.0
  %738 = vmatmul.mubr.f32.gmra.mrb[0].mxu0 %v284
  %v739 = vpop.f32.mrb[0].mxu0
  %v740 = vadd.f32 %v133, %v739
  %v741 = vpop.f32.mrb[0].mxu0
  %742 = vmatprep.mubr.f32.mxu0 0.0
  %743 = vmatmul.mubr.f32.gmra.mrb[0].mxu0 %v287
  %v744 = vpop.f32.mrb[0].mxu0
  %v745 = vadd.f32 %v133, %v744
  %v746 = vpop.f32.mrb[0].mxu0
  %747 = vmatprep.mubr.f32.mxu0 0.0
  %748 = vmatmul.mubr.f32.gmra.mrb[0].mxu0 %v290
  %v749 = vpop.f32.mrb[0].mxu0
  %v750 = vadd.f32 %v133, %v749
  %v751 = vpop.f32.mrb[0].mxu0
  %752 = vmatprep.mubr.f32.mxu0 0.0
  %753 = vmatmul.mubr.f32.gmra.mrb[0].mxu0 %v293
  %v754 = vpop.f32.mrb[0].mxu0
  %v755 = vadd.f32 %v133, %v754
  %v756 = vpop.f32.mrb[0].mxu0
  %757 = vmatprep.mubr.f32.mxu0 0.0
  %758 = vmatmul.mubr.f32.gmra.mrb[0].mxu0 %v296
  %v759 = vpop.f32.mrb[0].mxu0
  %v760 = vadd.f32 %v133, %v759
  %v761 = vpop.f32.mrb[0].mxu0
  %762 = vmatprep.mubr.f32.mxu0 0.0
  %763 = vmatmul.mubr.f32.gmra.mrb[0].mxu0 %v299
  %v764 = vpop.f32.mrb[0].mxu0
  %v765 = vadd.f32 %v133, %v764
  %v766 = vpop.f32.mrb[0].mxu0
  %767 = vmatprep.mubr.f32.mxu0 0.0
  %768 = vmatmul.mubr.f32.gmra.mrb[0].mxu0 %v302
  %v769 = vpop.f32.mrb[0].mxu0
  %v770 = vadd.f32 %v133, %v769
  %v771 = vpop.f32.mrb[0].mxu0
  %772 = vmatprep.mubr.f32.mxu0 0.0
  %773 = vmatmul.mubr.f32.gmra.mrb[0].mxu0 %v305
  %v774 = vpop.f32.mrb[0].mxu0
  %v775 = vadd.f32 %v133, %v774
  %v776 = vpop.f32.mrb[0].mxu0
  %777 = vmatprep.mubr.f32.mxu0 0.0
  %778 = vmatmul.mubr.f32.gmra.mrb[0].mxu0 %v308
  %v779 = vpop.f32.mrb[0].mxu0
  %v780 = vadd.f32 %v133, %v779
  %v781 = vpop.f32.mrb[0].mxu0
  %782 = vmatprep.mubr.f32.mxu0 0.0
  %783 = vmatmul.mubr.f32.gmra.mrb[0].mxu0 %v311
  %v784 = vpop.f32.mrb[0].mxu0
  %v785 = vadd.f32 %v133, %v784
  %v786 = vpop.f32.mrb[0].mxu0
  %787 = vmatprep.mubr.f32.mxu0 0.0
  %788 = vmatmul.mubr.f32.gmra.mrb[0].mxu0 %v314
  %v789 = vpop.f32.mrb[0].mxu0
  %v790 = vadd.f32 %v133, %v789
  %v791 = vpop.f32.mrb[0].mxu0
  %792 = vmatprep.mubr.f32.mxu0 0.0
  %793 = vmatmul.mubr.f32.gmra.mrb[0].mxu0 %v317
  %v794 = vpop.f32.mrb[0].mxu0
  %v795 = vadd.f32 %v133, %v794
  %v796 = vpop.f32.mrb[0].mxu0
  %797 = vmatprep.mubr.f32.mxu0 0.0
  %798 = vmatmul.mubr.f32.gmra.mrb[0].mxu0 %v320
  %v799 = vpop.f32.mrb[0].mxu0
  %v800 = vadd.f32 %v133, %v799
  %v801 = vpop.f32.mrb[0].mxu0
  %802 = vmatprep.mubr.f32.mxu0 0.0
  %803 = vmatmul.mubr.f32.gmra.mrb[0].mxu0 %v323
  %v804 = vpop.f32.mrb[0].mxu0
  %v805 = vadd.f32 %v133, %v804
  %v806 = vpop.f32.mrb[0].mxu0
  %807 = vmatprep.mubr.f32.mxu0 0.0
  %808 = vmatmul.mubr.f32.gmra.mrb[0].mxu0 %v326
  %v809 = vpop.f32.mrb[0].mxu0
  %v810 = vadd.f32 %v133, %v809
  %v811 = vpop.f32.mrb[0].mxu0
  %812 = vmatprep.mubr.f32.mxu0 0.0
  %813 = vmatmul.mubr.f32.gmra.mrb[0].mxu0 %v329
  %v814 = vpop.f32.mrb[0].mxu0
  %v815 = vadd.f32 %v133, %v814
  %v816 = vpop.f32.mrb[0].mxu0
  %817 = vmatprep.mubr.f32.mxu0 0.0
  %818 = vmatmul.mubr.f32.gmra.mrb[0].mxu0 %v332
  %v819 = vpop.f32.mrb[0].mxu0
  %v820 = vadd.f32 %v133, %v819
  %v821 = vpop.f32.mrb[0].mxu0
  %822 = vmatprep.mubr.f32.mxu0 0.0
  %823 = vmatmul.mubr.f32.gmra.mrb[0].mxu0 %v335
  %v824 = vpop.f32.mrb[0].mxu0
  %v825 = vadd.f32 %v133, %v824
  %v826 = vpop.f32.mrb[0].mxu0
  %827 = vmatprep.mubr.f32.mxu0 0.0
  %828 = vmatmul.mubr.f32.gmra.mrb[0].mxu0 %v338
  %v829 = vpop.f32.mrb[0].mxu0
  %v830 = vadd.f32 %v133, %v829
  %v831 = vpop.f32.mrb[0].mxu0
  %832 = vmatprep.mubr.f32.mxu0 0.0
  %833 = vmatmul.mubr.f32.gmra.mrb[0].mxu0 %v341
  %v834 = vpop.f32.mrb[0].mxu0
  %v835 = vadd.f32 %v133, %v834
  %v836 = vpop.f32.mrb[0].mxu0
  %837 = vmatprep.mubr.f32.mxu0 0.0
  %838 = vmatmul.mubr.f32.gmra.mrb[0].mxu0 %v344
  %v839 = vpop.f32.mrb[0].mxu0
  %v840 = vadd.f32 %v133, %v839
  %v841 = vpop.f32.mrb[0].mxu0
  %842 = vmatprep.mubr.f32.mxu0 0.0
  %843 = vmatmul.mubr.f32.gmra.mrb[0].mxu0 %v347
  %v844 = vpop.f32.mrb[0].mxu0
  %v845 = vadd.f32 %v133, %v844
  %v846 = vpop.f32.mrb[0].mxu0
  %847 = vmatprep.mubr.f32.mxu0 0.0
  %848 = vmatmul.mubr.f32.gmra.mrb[0].mxu0 %v350
  %v849 = vpop.f32.mrb[0].mxu0
  %v850 = vadd.f32 %v133, %v849
  %v851 = vpop.f32.mrb[0].mxu0
  %852 = vmatprep.mubr.f32.mxu0 0.0
  %853 = vmatmul.mubr.f32.gmra.mrb[0].mxu0 %v353
  %v854 = vpop.f32.mrb[0].mxu0
  %v855 = vadd.f32 %v133, %v854
  %v856 = vpop.f32.mrb[0].mxu0
  %857 = vmatprep.mubr.f32.mxu0 0.0
  %858 = vmatmul.mubr.f32.gmra.mrb[0].mxu0 %v356
  %v859 = vpop.f32.mrb[0].mxu0
  %v860 = vadd.f32 %v133, %v859
  %v861 = vpop.f32.mrb[0].mxu0
  %862 = vmatprep.mubr.f32.mxu0 0.0
  %863 = vmatmul.mubr.f32.gmra.mrb[0].mxu0 %v359
  %v864 = vpop.f32.mrb[0].mxu0
  %v865 = vadd.f32 %v133, %v864
  %v866 = vpop.f32.mrb[0].mxu0
  %867 = vmatprep.mubr.f32.mxu0 0.0
  %868 = vmatmul.mubr.f32.gmra.mrb[0].mxu0 %v362
  %v869 = vpop.f32.mrb[0].mxu0
  %v870 = vadd.f32 %v133, %v869
  %v871 = vpop.f32.mrb[0].mxu0
  %872 = vmatprep.mubr.f32.mxu0 0.0
  %873 = vmatmul.mubr.f32.gmra.mrb[0].mxu0 %v365
  %v874 = vpop.f32.mrb[0].mxu0
  %v875 = vadd.f32 %v133, %v874
  %v876 = vpop.f32.mrb[0].mxu0
  %877 = vmatprep.mubr.f32.mxu0 0.0
  %878 = vmatmul.mubr.f32.gmra.mrb[0].mxu0 %v368
  %v879 = vpop.f32.mrb[0].mxu0
  %v880 = vadd.f32 %v133, %v879
  %v881 = vpop.f32.mrb[0].mxu0
  %882 = vmatprep.mubr.f32.mxu0 0.0
  %883 = vmatmul.mubr.f32.gmra.mrb[0].mxu0 %v371
  %v884 = vpop.f32.mrb[0].mxu0
  %v885 = vadd.f32 %v133, %v884
  %v886 = vpop.f32.mrb[0].mxu0
  %887 = vmatprep.mubr.f32.mxu0 0.0
  %888 = vmatmul.mubr.f32.gmra.mrb[0].mxu0 %v374
  %v889 = vpop.f32.mrb[0].mxu0
  %v890 = vadd.f32 %v133, %v889
  %v891 = vpop.f32.mrb[0].mxu0
  %892 = vmatprep.mubr.f32.mxu0 0.0
  %893 = vmatmul.mubr.f32.gmra.mrb[0].mxu0 %v377
  %v894 = vpop.f32.mrb[0].mxu0
  %v895 = vadd.f32 %v133, %v894
  %v896 = vpop.f32.mrb[0].mxu0
  %897 = vmatprep.mubr.f32.mxu0 0.0
  %898 = vmatmul.mubr.f32.gmra.mrb[0].mxu0 %v380
  %v899 = vpop.f32.mrb[0].mxu0
  %v900 = vadd.f32 %v133, %v899
  %v901 = vpop.f32.mrb[0].mxu0
  %902 = vmatprep.mubr.f32.mxu0 0.0
  %903 = vmatmul.mubr.f32.gmra.mrb[0].mxu0 %v383
  %v904 = vpop.f32.mrb[0].mxu0
  %v905 = vadd.f32 %v133, %v904
  %v906 = vpop.f32.mrb[0].mxu0
  %907 = vmatprep.mubr.f32.mxu0 0.0
  %908 = vmatmul.mubr.f32.gmra.mrb[0].mxu0 %v386
  %v909 = vpop.f32.mrb[0].mxu0
  %v910 = vadd.f32 %v133, %v909
  %v911 = vpop.f32.mrb[0].mxu0
  %912 = vmatprep.mubr.f32.mxu0 0.0
  %913 = vmatmul.mubr.f32.gmra.mrb[0].mxu0 %v389
  %v914 = vpop.f32.mrb[0].mxu0
  %v915 = vadd.f32 %v133, %v914
  %v916 = vpop.f32.mrb[0].mxu0
  %917 = vmatprep.mubr.f32.mxu0 0.0
  %918 = vmatmul.mubr.f32.gmra.mrb[0].mxu0 %v392
  %v919 = vpop.f32.mrb[0].mxu0
  %v920 = vadd.f32 %v133, %v919
  %v921 = vpop.f32.mrb[0].mxu0
  %922 = vmatprep.mubr.f32.mxu0 0.0
  %923 = vmatmul.mubr.f32.gmra.mrb[0].mxu0 %v395
  %v924 = vpop.f32.mrb[0].mxu0
  %v925 = vadd.f32 %v133, %v924
  %v926 = vpop.f32.mrb[0].mxu0
  %927 = vmatprep.mubr.f32.mxu0 0.0
  %928 = vmatmul.mubr.f32.gmra.mrb[0].mxu0 %v398
  %v929 = vpop.f32.mrb[0].mxu0
  %v930 = vadd.f32 %v133, %v929
  %v931 = vpop.f32.mrb[0].mxu0
  %932 = vmatprep.mubr.f32.mxu0 0.0
  %933 = vmatmul.mubr.f32.gmra.mrb[0].mxu0 %v401
  %v934 = vpop.f32.mrb[0].mxu0
  %v935 = vadd.f32 %v133, %v934
  %v936 = vpop.f32.mrb[0].mxu0
  %937 = vmatprep.mubr.f32.mxu0 0.0
  %938 = vmatmul.mubr.f32.gmra.mrb[0].mxu0 %v404
  %v939 = vpop.f32.mrb[0].mxu0
  %v940 = vadd.f32 %v133, %v939
  %v941 = vpop.f32.mrb[0].mxu0
  %942 = vmatprep.mubr.f32.mxu0 0.0
  %943 = vmatmul.mubr.f32.gmra.mrb[0].mxu0 %v407
  %v944 = vpop.f32.mrb[0].mxu0
  %v945 = vadd.f32 %v133, %v944
  %v946 = vpop.f32.mrb[0].mxu0
  %947 = vmatprep.mubr.f32.mxu0 0.0
  %948 = vmatmul.mubr.f32.gmra.mrb[0].mxu0 %v410
  %v949 = vpop.f32.mrb[0].mxu0
  %v950 = vadd.f32 %v133, %v949
  %v951 = vpop.f32.mrb[0].mxu0
  %952 = vmatprep.mubr.f32.mxu0 0.0
  %953 = vmatmul.mubr.f32.gmra.mrb[0].mxu0 %v413
  %v954 = vpop.f32.mrb[0].mxu0
  %v955 = vadd.f32 %v133, %v954
  %v956 = vpop.f32.mrb[0].mxu0
  %957 = vmatprep.mubr.f32.mxu0 0.0
  %958 = vmatmul.mubr.f32.gmra.mrb[0].mxu0 %v416
  %v959 = vpop.f32.mrb[0].mxu0
  %v960 = vadd.f32 %v133, %v959
  %v961 = vpop.f32.mrb[0].mxu0
  %962 = vmatprep.mubr.f32.mxu0 0.0
  %963 = vmatmul.mubr.f32.gmra.mrb[0].mxu0 %v419
  %v964 = vpop.f32.mrb[0].mxu0
  %v965 = vadd.f32 %v133, %v964
  %v966 = vpop.f32.mrb[0].mxu0
  %967 = vmatprep.mubr.f32.mxu0 0.0
  %968 = vmatmul.mubr.f32.gmra.mrb[0].mxu0 %v422
  %v969 = vpop.f32.mrb[0].mxu0
  %v970 = vadd.f32 %v133, %v969
  %v971 = vpop.f32.mrb[0].mxu0
  %972 = vdwg.mxu0
  %v973 = vmax.f32 %v495, 0.0
  %v974 = vmax.f32 %v500, 0.0
  %v975 = vmax.f32 %v505, 0.0
  %v976 = vmax.f32 %v510, 0.0
  %v977 = vmax.f32 %v515, 0.0
  %v978 = vmax.f32 %v520, 0.0
  %v979 = vmax.f32 %v525, 0.0
  %v980 = vmax.f32 %v530, 0.0
  %v981 = vmax.f32 %v535, 0.0
  %v982 = vmax.f32 %v540, 0.0
  %v983 = vmax.f32 %v545, 0.0
  %v984 = vmax.f32 %v550, 0.0
  %v985 = vmax.f32 %v555, 0.0
  %v986 = vmax.f32 %v560, 0.0
  %v987 = vmax.f32 %v565, 0.0
  %v988 = vmax.f32 %v570, 0.0
  %v989 = vmax.f32 %v575, 0.0
  %v990 = vmax.f32 %v580, 0.0
  %v991 = vmax.f32 %v585, 0.0
  %v992 = vmax.f32 %v590, 0.0
  %v993 = vmax.f32 %v595, 0.0
  %v994 = vmax.f32 %v600, 0.0
  %v995 = vmax.f32 %v605, 0.0
  %v996 = vmax.f32 %v610, 0.0
  %v997 = vmax.f32 %v615, 0.0
  %v998 = vmax.f32 %v620, 0.0
  %v999 = vmax.f32 %v625, 0.0
  %v1000 = vmax.f32 %v630, 0.0
  %v1001 = vmax.f32 %v635, 0.0
  %v1002 = vmax.f32 %v640, 0.0
  %v1003 = vmax.f32 %v645, 0.0
  %v1004 = vmax.f32 %v650, 0.0
  %v1005 = vmax.f32 %v655, 0.0
  %v1006 = vmax.f32 %v660, 0.0
  %v1007 = vmax.f32 %v665, 0.0
  %v1008 = vmax.f32 %v670, 0.0
  %v1009 = vmax.f32 %v675, 0.0
  %v1010 = vmax.f32 %v680, 0.0
  %v1011 = vmax.f32 %v685, 0.0
  %v1012 = vmax.f32 %v690, 0.0
  %v1013 = vmax.f32 %v695, 0.0
  %v1014 = vmax.f32 %v700, 0.0
  %v1015 = vmax.f32 %v705, 0.0
  %v1016 = vmax.f32 %v710, 0.0
  %v1017 = vmax.f32 %v715, 0.0
  %v1018 = vmax.f32 %v720, 0.0
  %v1019 = vmax.f32 %v725, 0.0
  %v1020 = vmax.f32 %v730, 0.0
  %v1021 = vmax.f32 %v735, 0.0
  %v1022 = vmax.f32 %v740, 0.0
  %v1023 = vmax.f32 %v745, 0.0
  %v1024 = vmax.f32 %v750, 0.0
  %v1025 = vmax.f32 %v755, 0.0
  %v1026 = vmax.f32 %v760, 0.0
  %v1027 = vmax.f32 %v765, 0.0
  %v1028 = vmax.f32 %v770, 0.0
  %v1029 = vmax.f32 %v775, 0.0
  %v1030 = vmax.f32 %v780, 0.0
  %v1031 = vmax.f32 %v785, 0.0
  %v1032 = vmax.f32 %v790, 0.0
  %v1033 = vmax.f32 %v795, 0.0
  %v1034 = vmax.f32 %v800, 0.0
  %v1035 = vmax.f32 %v805, 0.0
  %v1036 = vmax.f32 %v810, 0.0
  %v1037 = vmax.f32 %v815, 0.0
  %v1038 = vmax.f32 %v820, 0.0
  %v1039 = vmax.f32 %v825, 0.0
  %v1040 = vmax.f32 %v830, 0.0
  %v1041 = vmax.f32 %v835, 0.0
  %v1042 = vmax.f32 %v840, 0.0
  %v1043 = vmax.f32 %v845, 0.0
  %v1044 = vmax.f32 %v850, 0.0
  %v1045 = vmax.f32 %v855, 0.0
  %v1046 = vmax.f32 %v860, 0.0
  %v1047 = vmax.f32 %v865, 0.0
  %v1048 = vmax.f32 %v870, 0.0
  %v1049 = vmax.f32 %v875, 0.0
  %v1050 = vmax.f32 %v880, 0.0
  %v1051 = vmax.f32 %v885, 0.0
  %v1052 = vmax.f32 %v890, 0.0
  %v1053 = vmax.f32 %v895, 0.0
  %v1054 = vmax.f32 %v900, 0.0
  %v1055 = vmax.f32 %v905, 0.0
  %v1056 = vmax.f32 %v910, 0.0
  %v1057 = vmax.f32 %v915, 0.0
  %v1058 = vmax.f32 %v920, 0.0
  %v1059 = vmax.f32 %v925, 0.0
  %v1060 = vmax.f32 %v930, 0.0
  %v1061 = vmax.f32 %v935, 0.0
  %v1062 = vmax.f32 %v940, 0.0
  %v1063 = vmax.f32 %v945, 0.0
  %v1064 = vmax.f32 %v950, 0.0
  %v1065 = vmax.f32 %v955, 0.0
  %v1066 = vmax.f32 %v960, 0.0
  %v1067 = vmax.f32 %v965, 0.0
  %v1068 = vmax.f32 %v970, 0.0
  %v1069 = vld [vmem:[%s3] sm:$0xff]
  %v1070 = vld [vmem:[%s3 + $0x8] sm:$0xff]
  %v1071 = vld [vmem:[%s3 + $0x10] sm:$0xff]
  %v1072 = vld [vmem:[%s3 + $0x18] sm:$0xff]
  %v1073 = vld [vmem:[%s3 + $0x20] sm:$0xff]
  %v1074 = vld [vmem:[%s3 + $0x28] sm:$0xff]
  %v1075 = vld [vmem:[%s3 + $0x30] sm:$0xff]
  %v1076 = vld [vmem:[%s3 + $0x38] sm:$0xff]
  %v1077 = vld [vmem:[%s3 + $0x40] sm:$0xff]
  %v1078 = vld [vmem:[%s3 + $0x48] sm:$0xff]
  %v1079 = vld [vmem:[%s3 + $0x50] sm:$0xff]
  %v1080 = vld [vmem:[%s3 + $0x58] sm:$0xff]
  %v1081 = vld [vmem:[%s3 + $0x60] sm:$0xff]
  %v1082 = vld [vmem:[%s3 + $0x68] sm:$0xff]
  %v1083 = vld [vmem:[%s3 + $0x70] sm:$0xff]
  %v1084 = vld [vmem:[%s3 + $0x78] sm:$0xff]
  %v1085 = vld [vmem:[%s3 + $0x80] sm:$0xff]
  %v1086 = vld [vmem:[%s3 + $0x88] sm:$0xff]
  %v1087 = vld [vmem:[%s3 + $0x90] sm:$0xff]
  %v1088 = vld [vmem:[%s3 + $0x98] sm:$0xff]
  %v1089 = vld [vmem:[%s3 + $0xa0] sm:$0xff]
  %v1090 = vld [vmem:[%s3 + $0xa8] sm:$0xff]
  %v1091 = vld [vmem:[%s3 + $0xb0] sm:$0xff]
  %v1092 = vld [vmem:[%s3 + $0xb8] sm:$0xff]
  %v1093 = vld [vmem:[%s3 + $0xc0] sm:$0xff]
  %v1094 = vld [vmem:[%s3 + $0xc8] sm:$0xff]
  %v1095 = vld [vmem:[%s3 + $0xd0] sm:$0xff]
  %v1096 = vld [vmem:[%s3 + $0xd8] sm:$0xff]
  %v1097 = vld [vmem:[%s3 + $0xe0] sm:$0xff]
  %v1098 = vld [vmem:[%s3 + $0xe8] sm:$0xff]
  %v1099 = vld [vmem:[%s3 + $0xf0] sm:$0xff]
  %v1100 = vld [vmem:[%s3 + $0xf8] sm:$0xff]
  %vm1197 = vcmask 1046528
  %v1198 = vrot.slane %v973, 1
  %v1199 = vrot.slane %v974, 1
  %v1200 = vsel %vm1197, %v1198, %v1199
  %v1201 = vrot.slane %v975, 1
  %v1202 = vsel %vm1197, %v1199, %v1201
  %v1203 = vrot.slane %v976, 1
  %v1204 = vsel %vm1197, %v1201, %v1203
  %v1205 = vrot.slane %v977, 1
  %v1206 = vsel %vm1197, %v1203, %v1205
  %v1207 = vrot.slane %v978, 1
  %v1208 = vsel %vm1197, %v1205, %v1207
  %v1209 = vrot.slane %v979, 1
  %v1210 = vsel %vm1197, %v1207, %v1209
  %v1211 = vrot.slane %v980, 1
  %v1212 = vsel %vm1197, %v1209, %v1211
  %v1213 = vrot.slane %v981, 1
  %v1214 = vsel %vm1197, %v1211, %v1213
  %v1215 = vrot.slane %v982, 1
  %v1216 = vsel %vm1197, %v1213, %v1215
  %v1217 = vrot.slane %v983, 1
  %v1218 = vsel %vm1197, %v1215, %v1217
  %v1219 = vrot.slane %v984, 1
  %v1220 = vsel %vm1197, %v1217, %v1219
  %v1221 = vrot.slane %v985, 1
  %v1222 = vsel %vm1197, %v1219, %v1221
  %v1223 = vrot.slane %v986, 1
  %v1224 = vsel %vm1197, %v1221, %v1223
  %v1225 = vrot.slane %v987, 1
  %v1226 = vsel %vm1197, %v1223, %v1225
  %v1227 = vrot.slane %v988, 1
  %v1228 = vsel %vm1197, %v1225, %v1227
  %v1229 = vrot.slane %v989, 1
  %v1230 = vsel %vm1197, %v1227, %v1229
  %v1231 = vrot.slane %v990, 1
  %v1232 = vsel %vm1197, %v1229, %v1231
  %v1233 = vrot.slane %v991, 1
  %v1234 = vsel %vm1197, %v1231, %v1233
  %v1235 = vrot.slane %v992, 1
  %v1236 = vsel %vm1197, %v1233, %v1235
  %v1237 = vrot.slane %v993, 1
  %v1238 = vsel %vm1197, %v1235, %v1237
  %v1239 = vrot.slane %v994, 1
  %v1240 = vsel %vm1197, %v1237, %v1239
  %v1241 = vrot.slane %v995, 1
  %v1242 = vsel %vm1197, %v1239, %v1241
  %v1243 = vrot.slane %v996, 1
  %v1244 = vsel %vm1197, %v1241, %v1243
  %v1245 = vrot.slane %v997, 1
  %v1246 = vsel %vm1197, %v1243, %v1245
  %v1247 = vrot.slane %v998, 1
  %v1248 = vsel %vm1197, %v1245, %v1247
  %v1249 = vrot.slane %v999, 1
  %v1250 = vsel %vm1197, %v1247, %v1249
  %v1251 = vrot.slane %v1000, 1
  %v1252 = vsel %vm1197, %v1249, %v1251
  %v1253 = vrot.slane %v1001, 1
  %v1254 = vsel %vm1197, %v1251, %v1253
  %v1255 = vrot.slane %v1002, 1
  %v1256 = vsel %vm1197, %v1253, %v1255
  %v1257 = vrot.slane %v1003, 1
  %v1258 = vsel %vm1197, %v1255, %v1257
  %v1259 = vrot.slane %v1004, 1
  %v1260 = vsel %vm1197, %v1257, %v1259
  %v1261 = vrot.slane %v1005, 1
  %v1262 = vsel %vm1197, %v1259, %v1261
  %v1263 = vrot.slane %v1006, 1
  %v1264 = vsel %vm1197, %v1261, %v1263
  %v1265 = vrot.slane %v1007, 1
  %v1266 = vsel %vm1197, %v1263, %v1265
  %v1267 = vrot.slane %v1008, 1
  %v1268 = vsel %vm1197, %v1265, %v1267
  %v1269 = vrot.slane %v1009, 1
  %v1270 = vsel %vm1197, %v1267, %v1269
  %v1271 = vrot.slane %v1010, 1
  %v1272 = vsel %vm1197, %v1269, %v1271
  %v1273 = vrot.slane %v1011, 1
  %v1274 = vsel %vm1197, %v1271, %v1273
  %v1275 = vrot.slane %v1012, 1
  %v1276 = vsel %vm1197, %v1273, %v1275
  %v1277 = vrot.slane %v1013, 1
  %v1278 = vsel %vm1197, %v1275, %v1277
  %v1279 = vrot.slane %v1014, 1
  %v1280 = vsel %vm1197, %v1277, %v1279
  %v1281 = vrot.slane %v1015, 1
  %v1282 = vsel %vm1197, %v1279, %v1281
  %v1283 = vrot.slane %v1016, 1
  %v1284 = vsel %vm1197, %v1281, %v1283
  %v1285 = vrot.slane %v1017, 1
  %v1286 = vsel %vm1197, %v1283, %v1285
  %v1287 = vrot.slane %v1018, 1
  %v1288 = vsel %vm1197, %v1285, %v1287
  %v1289 = vrot.slane %v1019, 1
  %v1290 = vsel %vm1197, %v1287, %v1289
  %v1291 = vrot.slane %v1020, 1
  %v1292 = vsel %vm1197, %v1289, %v1291
  %v1293 = vrot.slane %v1021, 1
  %v1294 = vsel %vm1197, %v1291, %v1293
  %v1295 = vrot.slane %v1022, 1
  %v1296 = vsel %vm1197, %v1293, %v1295
  %v1297 = vrot.slane %v1023, 1
  %v1298 = vsel %vm1197, %v1295, %v1297
  %v1299 = vrot.slane %v1024, 1
  %v1300 = vsel %vm1197, %v1297, %v1299
  %v1301 = vrot.slane %v1025, 1
  %v1302 = vsel %vm1197, %v1299, %v1301
  %v1303 = vrot.slane %v1026, 1
  %v1304 = vsel %vm1197, %v1301, %v1303
  %v1305 = vrot.slane %v1027, 1
  %v1306 = vsel %vm1197, %v1303, %v1305
  %v1307 = vrot.slane %v1028, 1
  %v1308 = vsel %vm1197, %v1305, %v1307
  %v1309 = vrot.slane %v1029, 1
  %v1310 = vsel %vm1197, %v1307, %v1309
  %v1311 = vrot.slane %v1030, 1
  %v1312 = vsel %vm1197, %v1309, %v1311
  %v1313 = vrot.slane %v1031, 1
  %v1314 = vsel %vm1197, %v1311, %v1313
  %v1315 = vrot.slane %v1032, 1
  %v1316 = vsel %vm1197, %v1313, %v1315
  %v1317 = vrot.slane %v1033, 1
  %v1318 = vsel %vm1197, %v1315, %v1317
  %v1319 = vrot.slane %v1034, 1
  %v1320 = vsel %vm1197, %v1317, %v1319
  %v1321 = vrot.slane %v1035, 1
  %v1322 = vsel %vm1197, %v1319, %v1321
  %v1323 = vrot.slane %v1036, 1
  %v1324 = vsel %vm1197, %v1321, %v1323
  %v1325 = vrot.slane %v1037, 1
  %v1326 = vsel %vm1197, %v1323, %v1325
  %v1327 = vrot.slane %v1038, 1
  %v1328 = vsel %vm1197, %v1325, %v1327
  %v1329 = vrot.slane %v1039, 1
  %v1330 = vsel %vm1197, %v1327, %v1329
  %v1331 = vrot.slane %v1040, 1
  %v1332 = vsel %vm1197, %v1329, %v1331
  %v1333 = vrot.slane %v1041, 1
  %v1334 = vsel %vm1197, %v1331, %v1333
  %v1335 = vrot.slane %v1042, 1
  %v1336 = vsel %vm1197, %v1333, %v1335
  %v1337 = vrot.slane %v1043, 1
  %v1338 = vsel %vm1197, %v1335, %v1337
  %v1339 = vrot.slane %v1044, 1
  %v1340 = vsel %vm1197, %v1337, %v1339
  %v1341 = vrot.slane %v1045, 1
  %v1342 = vsel %vm1197, %v1339, %v1341
  %v1343 = vrot.slane %v1046, 1
  %v1344 = vsel %vm1197, %v1341, %v1343
  %v1345 = vrot.slane %v1047, 1
  %v1346 = vsel %vm1197, %v1343, %v1345
  %v1347 = vrot.slane %v1048, 1
  %v1348 = vsel %vm1197, %v1345, %v1347
  %v1349 = vrot.slane %v1049, 1
  %v1350 = vsel %vm1197, %v1347, %v1349
  %v1351 = vrot.slane %v1050, 1
  %v1352 = vsel %vm1197, %v1349, %v1351
  %v1353 = vrot.slane %v1051, 1
  %v1354 = vsel %vm1197, %v1351, %v1353
  %v1355 = vrot.slane %v1052, 1
  %v1356 = vsel %vm1197, %v1353, %v1355
  %v1357 = vrot.slane %v1053, 1
  %v1358 = vsel %vm1197, %v1355, %v1357
  %v1359 = vrot.slane %v1054, 1
  %v1360 = vsel %vm1197, %v1357, %v1359
  %v1361 = vrot.slane %v1055, 1
  %v1362 = vsel %vm1197, %v1359, %v1361
  %v1363 = vrot.slane %v1056, 1
  %v1364 = vsel %vm1197, %v1361, %v1363
  %v1365 = vrot.slane %v1057, 1
  %v1366 = vsel %vm1197, %v1363, %v1365
  %v1367 = vrot.slane %v1058, 1
  %v1368 = vsel %vm1197, %v1365, %v1367
  %v1369 = vrot.slane %v1059, 1
  %v1370 = vsel %vm1197, %v1367, %v1369
  %v1371 = vrot.slane %v1060, 1
  %v1372 = vsel %vm1197, %v1369, %v1371
  %v1373 = vrot.slane %v1061, 1
  %v1374 = vsel %vm1197, %v1371, %v1373
  %v1375 = vrot.slane %v1062, 1
  %v1376 = vsel %vm1197, %v1373, %v1375
  %v1377 = vrot.slane %v1063, 1
  %v1378 = vsel %vm1197, %v1375, %v1377
  %v1379 = vrot.slane %v1064, 1
  %v1380 = vsel %vm1197, %v1377, %v1379
  %v1381 = vrot.slane %v1065, 1
  %v1382 = vsel %vm1197, %v1379, %v1381
  %v1383 = vrot.slane %v1066, 1
  %v1384 = vsel %vm1197, %v1381, %v1383
  %v1385 = vrot.slane %v1067, 1
  %v1386 = vsel %vm1197, %v1383, %v1385
  %v1387 = vrot.slane %v1068, 1
  %v1388 = vsel %vm1197, %v1385, %v1387
  %v1486 = vsel %vm1197, %v1387, %v1198
  %s1487 = scalar_lea.vmem %s3, 256
  %v1488 = vld [vmem:[%s1487] sm:$0xff]
  %v1489 = vld [vmem:[%s1487 + $0x8] sm:$0xff]
  %v1490 = vld [vmem:[%s1487 + $0x10] sm:$0xff]
  %v1491 = vld [vmem:[%s1487 + $0x18] sm:$0xff]
  %v1492 = vld [vmem:[%s1487 + $0x20] sm:$0xff]
  %v1493 = vld [vmem:[%s1487 + $0x28] sm:$0xff]
  %v1494 = vld [vmem:[%s1487 + $0x30] sm:$0xff]
  %v1495 = vld [vmem:[%s1487 + $0x38] sm:$0xff]
  %v1496 = vld [vmem:[%s1487 + $0x40] sm:$0xff]
  %v1497 = vld [vmem:[%s1487 + $0x48] sm:$0xff]
  %v1498 = vld [vmem:[%s1487 + $0x50] sm:$0xff]
  %v1499 = vld [vmem:[%s1487 + $0x58] sm:$0xff]
  %v1500 = vld [vmem:[%s1487 + $0x60] sm:$0xff]
  %v1501 = vld [vmem:[%s1487 + $0x68] sm:$0xff]
  %v1502 = vld [vmem:[%s1487 + $0x70] sm:$0xff]
  %v1503 = vld [vmem:[%s1487 + $0x78] sm:$0xff]
  %v1504 = vld [vmem:[%s1487 + $0x80] sm:$0xff]
  %v1505 = vld [vmem:[%s1487 + $0x88] sm:$0xff]
  %v1506 = vld [vmem:[%s1487 + $0x90] sm:$0xff]
  %v1507 = vld [vmem:[%s1487 + $0x98] sm:$0xff]
  %v1508 = vld [vmem:[%s1487 + $0xa0] sm:$0xff]
  %v1509 = vld [vmem:[%s1487 + $0xa8] sm:$0xff]
  %v1510 = vld [vmem:[%s1487 + $0xb0] sm:$0xff]
  %v1511 = vld [vmem:[%s1487 + $0xb8] sm:$0xff]
  %v1512 = vld [vmem:[%s1487 + $0xc0] sm:$0xff]
  %v1513 = vld [vmem:[%s1487 + $0xc8] sm:$0xff]
  %v1514 = vld [vmem:[%s1487 + $0xd0] sm:$0xff]
  %v1515 = vld [vmem:[%s1487 + $0xd8] sm:$0xff]
  %v1516 = vld [vmem:[%s1487 + $0xe0] sm:$0xff]
  %v1517 = vld [vmem:[%s1487 + $0xe8] sm:$0xff]
  %v1518 = vld [vmem:[%s1487 + $0xf0] sm:$0xff]
  %v1519 = vld [vmem:[%s1487 + $0xf8] sm:$0xff]
  %1520 = vmatprep.subr.mxu0 %v1489
  %1521 = vmatpush1.msra.mxu0 %v1488
  %1522 = vmatprep.subr.mxu0 %v1491
  %1523 = vmatpush1.msra.mxu0 %v1490
  %1524 = vmatprep.subr.mxu0 %v1493
  %1525 = vmatpush1.msra.mxu0 %v1492
  %1526 = vmatprep.subr.mxu0 %v1495
  %1527 = vmatpush1.msra.mxu0 %v1494
  %1528 = vmatprep.subr.mxu0 %v1497
  %1529 = vmatpush1.msra.mxu0 %v1496
  %1530 = vmatprep.subr.mxu0 %v1499
  %1531 = vmatpush1.msra.mxu0 %v1498
  %1532 = vmatprep.subr.mxu0 %v1501
  %1533 = vmatpush1.msra.mxu0 %v1500
  %1534 = vmatprep.subr.mxu0 %v1503
  %1535 = vmatpush1.msra.mxu0 %v1502
  %1536 = vmatprep.subr.mxu0 %v1505
  %1537 = vmatpush1.msra.mxu0 %v1504
  %1538 = vmatprep.subr.mxu0 %v1507
  %1539 = vmatpush1.msra.mxu0 %v1506
  %1540 = vmatprep.subr.mxu0 %v1509
  %1541 = vmatpush1.msra.mxu0 %v1508
  %1542 = vmatprep.subr.mxu0 %v1511
  %1543 = vmatpush1.msra.mxu0 %v1510
  %1544 = vmatprep.subr.mxu0 %v1513
  %1545 = vmatpush1.msra.mxu0 %v1512
  %1546 = vmatprep.subr.mxu0 %v1515
  %1547 = vmatpush1.msra.mxu0 %v1514
  %1548 = vmatprep.subr.mxu0 %v1517
  %1549 = vmatpush1.msra.mxu0 %v1516
  %1550 = vmatprep.subr.mxu0 %v1519
  %1551 = vmatpush1.msra.mxu0 %v1518
  %1552 = vmatprep.subr.mxu0 0.0
  %1553 = vmatpush1.msra.mxu0 0.0
  %1554 = vmatprep.subr.mxu0 0.0
  %1555 = vmatpush1.msra.mxu0 0.0
  %1556 = vmatprep.subr.mxu0 0.0
  %1557 = vmatpush1.msra.mxu0 0.0
  %1558 = vmatprep.subr.mxu0 0.0
  %1559 = vmatpush1.msra.mxu0 0.0
  %1560 = vmatprep.subr.mxu0 0.0
  %1561 = vmatpush1.msra.mxu0 0.0
  %1562 = vmatprep.subr.mxu0 0.0
  %1563 = vmatpush1.msra.mxu0 0.0
  %1564 = vmatprep.subr.mxu0 0.0
  %1565 = vmatpush1.msra.mxu0 0.0
  %1566 = vmatprep.subr.mxu0 0.0
  %1567 = vmatpush1.msra.mxu0 0.0
  %1568 = vmatprep.subr.mxu0 0.0
  %1569 = vmatpush1.msra.mxu0 0.0
  %1570 = vmatprep.subr.mxu0 0.0
  %1571 = vmatpush1.msra.mxu0 0.0
  %1572 = vmatprep.subr.mxu0 0.0
  %1573 = vmatpush1.msra.mxu0 0.0
  %1574 = vmatprep.subr.mxu0 0.0
  %1575 = vmatpush1.msra.mxu0 0.0
  %1576 = vmatprep.subr.mxu0 0.0
  %1577 = vmatpush1.msra.mxu0 0.0
  %1578 = vmatprep.subr.mxu0 0.0
  %1579 = vmatpush1.msra.mxu0 0.0
  %1580 = vmatprep.subr.mxu0 0.0
  %1581 = vmatpush1.msra.mxu0 0.0
  %1582 = vmatprep.subr.mxu0 0.0
  %1583 = vmatpush1.msra.mxu0 0.0
  %1584 = vmatprep.mubr.f32.mxu0 0.0
  %1585 = vmatmul.mubr.f32.gmra.mrb[0].mxu0 %v1200
  %v1586 = vpop.f32.mrb[0].mxu0
  %v1587 = vadd.f32 0.0, %v1586
  %v1588 = vpop.f32.mrb[0].mxu0
  %v1589 = vadd.f32 0.0, %v1588
  %1590 = vmatprep.mubr.f32.mxu0 0.0
  %1591 = vmatmul.mubr.f32.gmra.mrb[0].mxu0 %v1202
  %v1592 = vpop.f32.mrb[0].mxu0
  %v1593 = vadd.f32 0.0, %v1592
  %v1594 = vpop.f32.mrb[0].mxu0
  %v1595 = vadd.f32 0.0, %v1594
  %1596 = vmatprep.mubr.f32.mxu0 0.0
  %1597 = vmatmul.mubr.f32.gmra.mrb[0].mxu0 %v1204
  %v1598 = vpop.f32.mrb[0].mxu0
  %v1599 = vadd.f32 0.0, %v1598
  %v1600 = vpop.f32.mrb[0].mxu0
  %v1601 = vadd.f32 0.0, %v1600
  %1602 = vmatprep.mubr.f32.mxu0 0.0
  %1603 = vmatmul.mubr.f32.gmra.mrb[0].mxu0 %v1206
  %v1604 = vpop.f32.mrb[0].mxu0
  %v1605 = vadd.f32 0.0, %v1604
  %v1606 = vpop.f32.mrb[0].mxu0
  %v1607 = vadd.f32 0.0, %v1606
  %1608 = vmatprep.mubr.f32.mxu0 0.0
  %1609 = vmatmul.mubr.f32.gmra.mrb[0].mxu0 %v1208
  %v1610 = vpop.f32.mrb[0].mxu0
  %v1611 = vadd.f32 0.0, %v1610
  %v1612 = vpop.f32.mrb[0].mxu0
  %v1613 = vadd.f32 0.0, %v1612
  %1614 = vmatprep.mubr.f32.mxu0 0.0
  %1615 = vmatmul.mubr.f32.gmra.mrb[0].mxu0 %v1210
  %v1616 = vpop.f32.mrb[0].mxu0
  %v1617 = vadd.f32 0.0, %v1616
  %v1618 = vpop.f32.mrb[0].mxu0
  %v1619 = vadd.f32 0.0, %v1618
  %1620 = vmatprep.mubr.f32.mxu0 0.0
  %1621 = vmatmul.mubr.f32.gmra.mrb[0].mxu0 %v1212
  %v1622 = vpop.f32.mrb[0].mxu0
  %v1623 = vadd.f32 0.0, %v1622
  %v1624 = vpop.f32.mrb[0].mxu0
  %v1625 = vadd.f32 0.0, %v1624
  %1626 = vmatprep.mubr.f32.mxu0 0.0
  %1627 = vmatmul.mubr.f32.gmra.mrb[0].mxu0 %v1214
  %v1628 = vpop.f32.mrb[0].mxu0
  %v1629 = vadd.f32 0.0, %v1628
  %v1630 = vpop.f32.mrb[0].mxu0
  %v1631 = vadd.f32 0.0, %v1630
  %1632 = vmatprep.mubr.f32.mxu0 0.0
  %1633 = vmatmul.mubr.f32.gmra.mrb[0].mxu0 %v1216
  %v1634 = vpop.f32.mrb[0].mxu0
  %v1635 = vadd.f32 0.0, %v1634
  %v1636 = vpop.f32.mrb[0].mxu0
  %v1637 = vadd.f32 0.0, %v1636
  %1638 = vmatprep.mubr.f32.mxu0 0.0
  %1639 = vmatmul.mubr.f32.gmra.mrb[0].mxu0 %v1218
  %v1640 = vpop.f32.mrb[0].mxu0
  %v1641 = vadd.f32 0.0, %v1640
  %v1642 = vpop.f32.mrb[0].mxu0
  %v1643 = vadd.f32 0.0, %v1642
  %1644 = vmatprep.mubr.f32.mxu0 0.0
  %1645 = vmatmul.mubr.f32.gmra.mrb[0].mxu0 %v1220
  %v1646 = vpop.f32.mrb[0].mxu0
  %v1647 = vadd.f32 0.0, %v1646
  %v1648 = vpop.f32.mrb[0].mxu0
  %v1649 = vadd.f32 0.0, %v1648
  %1650 = vmatprep.mubr.f32.mxu0 0.0
  %1651 = vmatmul.mubr.f32.gmra.mrb[0].mxu0 %v1222
  %v1652 = vpop.f32.mrb[0].mxu0
  %v1653 = vadd.f32 0.0, %v1652
  %v1654 = vpop.f32.mrb[0].mxu0
  %v1655 = vadd.f32 0.0, %v1654
  %1656 = vmatprep.mubr.f32.mxu0 0.0
  %1657 = vmatmul.mubr.f32.gmra.mrb[0].mxu0 %v1224
  %v1658 = vpop.f32.mrb[0].mxu0
  %v1659 = vadd.f32 0.0, %v1658
  %v1660 = vpop.f32.mrb[0].mxu0
  %v1661 = vadd.f32 0.0, %v1660
  %1662 = vmatprep.mubr.f32.mxu0 0.0
  %1663 = vmatmul.mubr.f32.gmra.mrb[0].mxu0 %v1226
  %v1664 = vpop.f32.mrb[0].mxu0
  %v1665 = vadd.f32 0.0, %v1664
  %v1666 = vpop.f32.mrb[0].mxu0
  %v1667 = vadd.f32 0.0, %v1666
  %1668 = vmatprep.mubr.f32.mxu0 0.0
  %1669 = vmatmul.mubr.f32.gmra.mrb[0].mxu0 %v1228
  %v1670 = vpop.f32.mrb[0].mxu0
  %v1671 = vadd.f32 0.0, %v1670
  %v1672 = vpop.f32.mrb[0].mxu0
  %v1673 = vadd.f32 0.0, %v1672
  %1674 = vmatprep.mubr.f32.mxu0 0.0
  %1675 = vmatmul.mubr.f32.gmra.mrb[0].mxu0 %v1230
  %v1676 = vpop.f32.mrb[0].mxu0
  %v1677 = vadd.f32 0.0, %v1676
  %v1678 = vpop.f32.mrb[0].mxu0
  %v1679 = vadd.f32 0.0, %v1678
  %1680 = vmatprep.mubr.f32.mxu0 0.0
  %1681 = vmatmul.mubr.f32.gmra.mrb[0].mxu0 %v1232
  %v1682 = vpop.f32.mrb[0].mxu0
  %v1683 = vadd.f32 0.0, %v1682
  %v1684 = vpop.f32.mrb[0].mxu0
  %v1685 = vadd.f32 0.0, %v1684
  %1686 = vmatprep.mubr.f32.mxu0 0.0
  %1687 = vmatmul.mubr.f32.gmra.mrb[0].mxu0 %v1234
  %v1688 = vpop.f32.mrb[0].mxu0
  %v1689 = vadd.f32 0.0, %v1688
  %v1690 = vpop.f32.mrb[0].mxu0
  %v1691 = vadd.f32 0.0, %v1690
  %1692 = vmatprep.mubr.f32.mxu0 0.0
  %1693 = vmatmul.mubr.f32.gmra.mrb[0].mxu0 %v1236
  %v1694 = vpop.f32.mrb[0].mxu0
  %v1695 = vadd.f32 0.0, %v1694
  %v1696 = vpop.f32.mrb[0].mxu0
  %v1697 = vadd.f32 0.0, %v1696
  %1698 = vmatprep.mubr.f32.mxu0 0.0
  %1699 = vmatmul.mubr.f32.gmra.mrb[0].mxu0 %v1238
  %v1700 = vpop.f32.mrb[0].mxu0
  %v1701 = vadd.f32 0.0, %v1700
  %v1702 = vpop.f32.mrb[0].mxu0
  %v1703 = vadd.f32 0.0, %v1702
  %1704 = vmatprep.mubr.f32.mxu0 0.0
  %1705 = vmatmul.mubr.f32.gmra.mrb[0].mxu0 %v1240
  %v1706 = vpop.f32.mrb[0].mxu0
  %v1707 = vadd.f32 0.0, %v1706
  %v1708 = vpop.f32.mrb[0].mxu0
  %v1709 = vadd.f32 0.0, %v1708
  %1710 = vmatprep.mubr.f32.mxu0 0.0
  %1711 = vmatmul.mubr.f32.gmra.mrb[0].mxu0 %v1242
  %v1712 = vpop.f32.mrb[0].mxu0
  %v1713 = vadd.f32 0.0, %v1712
  %v1714 = vpop.f32.mrb[0].mxu0
  %v1715 = vadd.f32 0.0, %v1714
  %1716 = vmatprep.mubr.f32.mxu0 0.0
  %1717 = vmatmul.mubr.f32.gmra.mrb[0].mxu0 %v1244
  %v1718 = vpop.f32.mrb[0].mxu0
  %v1719 = vadd.f32 0.0, %v1718
  %v1720 = vpop.f32.mrb[0].mxu0
  %v1721 = vadd.f32 0.0, %v1720
  %1722 = vmatprep.mubr.f32.mxu0 0.0
  %1723 = vmatmul.mubr.f32.gmra.mrb[0].mxu0 %v1246
  %v1724 = vpop.f32.mrb[0].mxu0
  %v1725 = vadd.f32 0.0, %v1724
  %v1726 = vpop.f32.mrb[0].mxu0
  %v1727 = vadd.f32 0.0, %v1726
  %1728 = vmatprep.mubr.f32.mxu0 0.0
  %1729 = vmatmul.mubr.f32.gmra.mrb[0].mxu0 %v1248
  %v1730 = vpop.f32.mrb[0].mxu0
  %v1731 = vadd.f32 0.0, %v1730
  %v1732 = vpop.f32.mrb[0].mxu0
  %v1733 = vadd.f32 0.0, %v1732
  %1734 = vmatprep.mubr.f32.mxu0 0.0
  %1735 = vmatmul.mubr.f32.gmra.mrb[0].mxu0 %v1250
  %v1736 = vpop.f32.mrb[0].mxu0
  %v1737 = vadd.f32 0.0, %v1736
  %v1738 = vpop.f32.mrb[0].mxu0
  %v1739 = vadd.f32 0.0, %v1738
  %1740 = vmatprep.mubr.f32.mxu0 0.0
  %1741 = vmatmul.mubr.f32.gmra.mrb[0].mxu0 %v1252
  %v1742 = vpop.f32.mrb[0].mxu0
  %v1743 = vadd.f32 0.0, %v1742
  %v1744 = vpop.f32.mrb[0].mxu0
  %v1745 = vadd.f32 0.0, %v1744
  %1746 = vmatprep.mubr.f32.mxu0 0.0
  %1747 = vmatmul.mubr.f32.gmra.mrb[0].mxu0 %v1254
  %v1748 = vpop.f32.mrb[0].mxu0
  %v1749 = vadd.f32 0.0, %v1748
  %v1750 = vpop.f32.mrb[0].mxu0
  %v1751 = vadd.f32 0.0, %v1750
  %1752 = vmatprep.mubr.f32.mxu0 0.0
  %1753 = vmatmul.mubr.f32.gmra.mrb[0].mxu0 %v1256
  %v1754 = vpop.f32.mrb[0].mxu0
  %v1755 = vadd.f32 0.0, %v1754
  %v1756 = vpop.f32.mrb[0].mxu0
  %v1757 = vadd.f32 0.0, %v1756
  %1758 = vmatprep.mubr.f32.mxu0 0.0
  %1759 = vmatmul.mubr.f32.gmra.mrb[0].mxu0 %v1258
  %v1760 = vpop.f32.mrb[0].mxu0
  %v1761 = vadd.f32 0.0, %v1760
  %v1762 = vpop.f32.mrb[0].mxu0
  %v1763 = vadd.f32 0.0, %v1762
  %1764 = vmatprep.mubr.f32.mxu0 0.0
  %1765 = vmatmul.mubr.f32.gmra.mrb[0].mxu0 %v1260
  %v1766 = vpop.f32.mrb[0].mxu0
  %v1767 = vadd.f32 0.0, %v1766
  %v1768 = vpop.f32.mrb[0].mxu0
  %v1769 = vadd.f32 0.0, %v1768
  %1770 = vmatprep.mubr.f32.mxu0 0.0
  %1771 = vmatmul.mubr.f32.gmra.mrb[0].mxu0 %v1262
  %v1772 = vpop.f32.mrb[0].mxu0
  %v1773 = vadd.f32 0.0, %v1772
  %v1774 = vpop.f32.mrb[0].mxu0
  %v1775 = vadd.f32 0.0, %v1774
  %1776 = vmatprep.mubr.f32.mxu0 0.0
  %1777 = vmatmul.mubr.f32.gmra.mrb[0].mxu0 %v1264
  %v1778 = vpop.f32.mrb[0].mxu0
  %v1779 = vadd.f32 0.0, %v1778
  %v1780 = vpop.f32.mrb[0].mxu0
  %v1781 = vadd.f32 0.0, %v1780
  %1782 = vmatprep.mubr.f32.mxu0 0.0
  %1783 = vmatmul.mubr.f32.gmra.mrb[0].mxu0 %v1266
  %v1784 = vpop.f32.mrb[0].mxu0
  %v1785 = vadd.f32 0.0, %v1784
  %v1786 = vpop.f32.mrb[0].mxu0
  %v1787 = vadd.f32 0.0, %v1786
  %1788 = vmatprep.mubr.f32.mxu0 0.0
  %1789 = vmatmul.mubr.f32.gmra.mrb[0].mxu0 %v1268
  %v1790 = vpop.f32.mrb[0].mxu0
  %v1791 = vadd.f32 0.0, %v1790
  %v1792 = vpop.f32.mrb[0].mxu0
  %v1793 = vadd.f32 0.0, %v1792
  %1794 = vmatprep.mubr.f32.mxu0 0.0
  %1795 = vmatmul.mubr.f32.gmra.mrb[0].mxu0 %v1270
  %v1796 = vpop.f32.mrb[0].mxu0
  %v1797 = vadd.f32 0.0, %v1796
  %v1798 = vpop.f32.mrb[0].mxu0
  %v1799 = vadd.f32 0.0, %v1798
  %1800 = vmatprep.mubr.f32.mxu0 0.0
  %1801 = vmatmul.mubr.f32.gmra.mrb[0].mxu0 %v1272
  %v1802 = vpop.f32.mrb[0].mxu0
  %v1803 = vadd.f32 0.0, %v1802
  %v1804 = vpop.f32.mrb[0].mxu0
  %v1805 = vadd.f32 0.0, %v1804
  %1806 = vmatprep.mubr.f32.mxu0 0.0
  %1807 = vmatmul.mubr.f32.gmra.mrb[0].mxu0 %v1274
  %v1808 = vpop.f32.mrb[0].mxu0
  %v1809 = vadd.f32 0.0, %v1808
  %v1810 = vpop.f32.mrb[0].mxu0
  %v1811 = vadd.f32 0.0, %v1810
  %1812 = vmatprep.mubr.f32.mxu0 0.0
  %1813 = vmatmul.mubr.f32.gmra.mrb[0].mxu0 %v1276
  %v1814 = vpop.f32.mrb[0].mxu0
  %v1815 = vadd.f32 0.0, %v1814
  %v1816 = vpop.f32.mrb[0].mxu0
  %v1817 = vadd.f32 0.0, %v1816
  %1818 = vmatprep.mubr.f32.mxu0 0.0
  %1819 = vmatmul.mubr.f32.gmra.mrb[0].mxu0 %v1278
  %v1820 = vpop.f32.mrb[0].mxu0
  %v1821 = vadd.f32 0.0, %v1820
  %v1822 = vpop.f32.mrb[0].mxu0
  %v1823 = vadd.f32 0.0, %v1822
  %1824 = vmatprep.mubr.f32.mxu0 0.0
  %1825 = vmatmul.mubr.f32.gmra.mrb[0].mxu0 %v1280
  %v1826 = vpop.f32.mrb[0].mxu0
  %v1827 = vadd.f32 0.0, %v1826
  %v1828 = vpop.f32.mrb[0].mxu0
  %v1829 = vadd.f32 0.0, %v1828
  %1830 = vmatprep.mubr.f32.mxu0 0.0
  %1831 = vmatmul.mubr.f32.gmra.mrb[0].mxu0 %v1282
  %v1832 = vpop.f32.mrb[0].mxu0
  %v1833 = vadd.f32 0.0, %v1832
  %v1834 = vpop.f32.mrb[0].mxu0
  %v1835 = vadd.f32 0.0, %v1834
  %1836 = vmatprep.mubr.f32.mxu0 0.0
  %1837 = vmatmul.mubr.f32.gmra.mrb[0].mxu0 %v1284
  %v1838 = vpop.f32.mrb[0].mxu0
  %v1839 = vadd.f32 0.0, %v1838
  %v1840 = vpop.f32.mrb[0].mxu0
  %v1841 = vadd.f32 0.0, %v1840
  %1842 = vmatprep.mubr.f32.mxu0 0.0
  %1843 = vmatmul.mubr.f32.gmra.mrb[0].mxu0 %v1286
  %v1844 = vpop.f32.mrb[0].mxu0
  %v1845 = vadd.f32 0.0, %v1844
  %v1846 = vpop.f32.mrb[0].mxu0
  %v1847 = vadd.f32 0.0, %v1846
  %1848 = vmatprep.mubr.f32.mxu0 0.0
  %1849 = vmatmul.mubr.f32.gmra.mrb[0].mxu0 %v1288
  %v1850 = vpop.f32.mrb[0].mxu0
  %v1851 = vadd.f32 0.0, %v1850
  %v1852 = vpop.f32.mrb[0].mxu0
  %v1853 = vadd.f32 0.0, %v1852
  %1854 = vmatprep.mubr.f32.mxu0 0.0
  %1855 = vmatmul.mubr.f32.gmra.mrb[0].mxu0 %v1290
  %v1856 = vpop.f32.mrb[0].mxu0
  %v1857 = vadd.f32 0.0, %v1856
  %v1858 = vpop.f32.mrb[0].mxu0
  %v1859 = vadd.f32 0.0, %v1858
  %1860 = vmatprep.mubr.f32.mxu0 0.0
  %1861 = vmatmul.mubr.f32.gmra.mrb[0].mxu0 %v1292
  %v1862 = vpop.f32.mrb[0].mxu0
  %v1863 = vadd.f32 0.0, %v1862
  %v1864 = vpop.f32.mrb[0].mxu0
  %v1865 = vadd.f32 0.0, %v1864
  %1866 = vmatprep.mubr.f32.mxu0 0.0
  %1867 = vmatmul.mubr.f32.gmra.mrb[0].mxu0 %v1294
  %v1868 = vpop.f32.mrb[0].mxu0
  %v1869 = vadd.f32 0.0, %v1868
  %v1870 = vpop.f32.mrb[0].mxu0
  %v1871 = vadd.f32 0.0, %v1870
  %1872 = vmatprep.mubr.f32.mxu0 0.0
  %1873 = vmatmul.mubr.f32.gmra.mrb[0].mxu0 %v1296
  %v1874 = vpop.f32.mrb[0].mxu0
  %v1875 = vadd.f32 0.0, %v1874
  %v1876 = vpop.f32.mrb[0].mxu0
  %v1877 = vadd.f32 0.0, %v1876
  %1878 = vmatprep.mubr.f32.mxu0 0.0
  %1879 = vmatmul.mubr.f32.gmra.mrb[0].mxu0 %v1298
  %v1880 = vpop.f32.mrb[0].mxu0
  %v1881 = vadd.f32 0.0, %v1880
  %v1882 = vpop.f32.mrb[0].mxu0
  %v1883 = vadd.f32 0.0, %v1882
  %1884 = vmatprep.mubr.f32.mxu0 0.0
  %1885 = vmatmul.mubr.f32.gmra.mrb[0].mxu0 %v1300
  %v1886 = vpop.f32.mrb[0].mxu0
  %v1887 = vadd.f32 0.0, %v1886
  %v1888 = vpop.f32.mrb[0].mxu0
  %v1889 = vadd.f32 0.0, %v1888
  %1890 = vmatprep.mubr.f32.mxu0 0.0
  %1891 = vmatmul.mubr.f32.gmra.mrb[0].mxu0 %v1302
  %v1892 = vpop.f32.mrb[0].mxu0
  %v1893 = vadd.f32 0.0, %v1892
  %v1894 = vpop.f32.mrb[0].mxu0
  %v1895 = vadd.f32 0.0, %v1894
  %1896 = vmatprep.mubr.f32.mxu0 0.0
  %1897 = vmatmul.mubr.f32.gmra.mrb[0].mxu0 %v1304
  %v1898 = vpop.f32.mrb[0].mxu0
  %v1899 = vadd.f32 0.0, %v1898
  %v1900 = vpop.f32.mrb[0].mxu0
  %v1901 = vadd.f32 0.0, %v1900
  %1902 = vmatprep.mubr.f32.mxu0 0.0
  %1903 = vmatmul.mubr.f32.gmra.mrb[0].mxu0 %v1306
  %v1904 = vpop.f32.mrb[0].mxu0
  %v1905 = vadd.f32 0.0, %v1904
  %v1906 = vpop.f32.mrb[0].mxu0
  %v1907 = vadd.f32 0.0, %v1906
  %1908 = vmatprep.mubr.f32.mxu0 0.0
  %1909 = vmatmul.mubr.f32.gmra.mrb[0].mxu0 %v1308
  %v1910 = vpop.f32.mrb[0].mxu0
  %v1911 = vadd.f32 0.0, %v1910
  %v1912 = vpop.f32.mrb[0].mxu0
  %v1913 = vadd.f32 0.0, %v1912
  %1914 = vmatprep.mubr.f32.mxu0 0.0
  %1915 = vmatmul.mubr.f32.gmra.mrb[0].mxu0 %v1310
  %v1916 = vpop.f32.mrb[0].mxu0
  %v1917 = vadd.f32 0.0, %v1916
  %v1918 = vpop.f32.mrb[0].mxu0
  %v1919 = vadd.f32 0.0, %v1918
  %1920 = vmatprep.mubr.f32.mxu0 0.0
  %1921 = vmatmul.mubr.f32.gmra.mrb[0].mxu0 %v1312
  %v1922 = vpop.f32.mrb[0].mxu0
  %v1923 = vadd.f32 0.0, %v1922
  %v1924 = vpop.f32.mrb[0].mxu0
  %v1925 = vadd.f32 0.0, %v1924
  %1926 = vmatprep.mubr.f32.mxu0 0.0
  %1927 = vmatmul.mubr.f32.gmra.mrb[0].mxu0 %v1314
  %v1928 = vpop.f32.mrb[0].mxu0
  %v1929 = vadd.f32 0.0, %v1928
  %v1930 = vpop.f32.mrb[0].mxu0
  %v1931 = vadd.f32 0.0, %v1930
  %1932 = vmatprep.mubr.f32.mxu0 0.0
  %1933 = vmatmul.mubr.f32.gmra.mrb[0].mxu0 %v1316
  %v1934 = vpop.f32.mrb[0].mxu0
  %v1935 = vadd.f32 0.0, %v1934
  %v1936 = vpop.f32.mrb[0].mxu0
  %v1937 = vadd.f32 0.0, %v1936
  %1938 = vmatprep.mubr.f32.mxu0 0.0
  %1939 = vmatmul.mubr.f32.gmra.mrb[0].mxu0 %v1318
  %v1940 = vpop.f32.mrb[0].mxu0
  %v1941 = vadd.f32 0.0, %v1940
  %v1942 = vpop.f32.mrb[0].mxu0
  %v1943 = vadd.f32 0.0, %v1942
  %1944 = vmatprep.mubr.f32.mxu0 0.0
  %1945 = vmatmul.mubr.f32.gmra.mrb[0].mxu0 %v1320
  %v1946 = vpop.f32.mrb[0].mxu0
  %v1947 = vadd.f32 0.0, %v1946
  %v1948 = vpop.f32.mrb[0].mxu0
  %v1949 = vadd.f32 0.0, %v1948
  %1950 = vmatprep.mubr.f32.mxu0 0.0
  %1951 = vmatmul.mubr.f32.gmra.mrb[0].mxu0 %v1322
  %v1952 = vpop.f32.mrb[0].mxu0
  %v1953 = vadd.f32 0.0, %v1952
  %v1954 = vpop.f32.mrb[0].mxu0
  %v1955 = vadd.f32 0.0, %v1954
  %1956 = vmatprep.mubr.f32.mxu0 0.0
  %1957 = vmatmul.mubr.f32.gmra.mrb[0].mxu0 %v1324
  %v1958 = vpop.f32.mrb[0].mxu0
  %v1959 = vadd.f32 0.0, %v1958
  %v1960 = vpop.f32.mrb[0].mxu0
  %v1961 = vadd.f32 0.0, %v1960
  %1962 = vmatprep.mubr.f32.mxu0 0.0
  %1963 = vmatmul.mubr.f32.gmra.mrb[0].mxu0 %v1326
  %v1964 = vpop.f32.mrb[0].mxu0
  %v1965 = vadd.f32 0.0, %v1964
  %v1966 = vpop.f32.mrb[0].mxu0
  %v1967 = vadd.f32 0.0, %v1966
  %1968 = vmatprep.mubr.f32.mxu0 0.0
  %1969 = vmatmul.mubr.f32.gmra.mrb[0].mxu0 %v1328
  %v1970 = vpop.f32.mrb[0].mxu0
  %v1971 = vadd.f32 0.0, %v1970
  %v1972 = vpop.f32.mrb[0].mxu0
  %v1973 = vadd.f32 0.0, %v1972
  %1974 = vmatprep.mubr.f32.mxu0 0.0
  %1975 = vmatmul.mubr.f32.gmra.mrb[0].mxu0 %v1330
  %v1976 = vpop.f32.mrb[0].mxu0
  %v1977 = vadd.f32 0.0, %v1976
  %v1978 = vpop.f32.mrb[0].mxu0
  %v1979 = vadd.f32 0.0, %v1978
  %1980 = vmatprep.mubr.f32.mxu0 0.0
  %1981 = vmatmul.mubr.f32.gmra.mrb[0].mxu0 %v1332
  %v1982 = vpop.f32.mrb[0].mxu0
  %v1983 = vadd.f32 0.0, %v1982
  %v1984 = vpop.f32.mrb[0].mxu0
  %v1985 = vadd.f32 0.0, %v1984
  %1986 = vmatprep.mubr.f32.mxu0 0.0
  %1987 = vmatmul.mubr.f32.gmra.mrb[0].mxu0 %v1334
  %v1988 = vpop.f32.mrb[0].mxu0
  %v1989 = vadd.f32 0.0, %v1988
  %v1990 = vpop.f32.mrb[0].mxu0
  %v1991 = vadd.f32 0.0, %v1990
  %1992 = vmatprep.mubr.f32.mxu0 0.0
  %1993 = vmatmul.mubr.f32.gmra.mrb[0].mxu0 %v1336
  %v1994 = vpop.f32.mrb[0].mxu0
  %v1995 = vadd.f32 0.0, %v1994
  %v1996 = vpop.f32.mrb[0].mxu0
  %v1997 = vadd.f32 0.0, %v1996
  %1998 = vmatprep.mubr.f32.mxu0 0.0
  %1999 = vmatmul.mubr.f32.gmra.mrb[0].mxu0 %v1338
  %v2000 = vpop.f32.mrb[0].mxu0
  %v2001 = vadd.f32 0.0, %v2000
  %v2002 = vpop.f32.mrb[0].mxu0
  %v2003 = vadd.f32 0.0, %v2002
  %2004 = vmatprep.mubr.f32.mxu0 0.0
  %2005 = vmatmul.mubr.f32.gmra.mrb[0].mxu0 %v1340
  %v2006 = vpop.f32.mrb[0].mxu0
  %v2007 = vadd.f32 0.0, %v2006
  %v2008 = vpop.f32.mrb[0].mxu0
  %v2009 = vadd.f32 0.0, %v2008
  %2010 = vmatprep.mubr.f32.mxu0 0.0
  %2011 = vmatmul.mubr.f32.gmra.mrb[0].mxu0 %v1342
  %v2012 = vpop.f32.mrb[0].mxu0
  %v2013 = vadd.f32 0.0, %v2012
  %v2014 = vpop.f32.mrb[0].mxu0
  %v2015 = vadd.f32 0.0, %v2014
  %2016 = vmatprep.mubr.f32.mxu0 0.0
  %2017 = vmatmul.mubr.f32.gmra.mrb[0].mxu0 %v1344
  %v2018 = vpop.f32.mrb[0].mxu0
  %v2019 = vadd.f32 0.0, %v2018
  %v2020 = vpop.f32.mrb[0].mxu0
  %v2021 = vadd.f32 0.0, %v2020
  %2022 = vmatprep.mubr.f32.mxu0 0.0
  %2023 = vmatmul.mubr.f32.gmra.mrb[0].mxu0 %v1346
  %v2024 = vpop.f32.mrb[0].mxu0
  %v2025 = vadd.f32 0.0, %v2024
  %v2026 = vpop.f32.mrb[0].mxu0
  %v2027 = vadd.f32 0.0, %v2026
  %2028 = vmatprep.mubr.f32.mxu0 0.0
  %2029 = vmatmul.mubr.f32.gmra.mrb[0].mxu0 %v1348
  %v2030 = vpop.f32.mrb[0].mxu0
  %v2031 = vadd.f32 0.0, %v2030
  %v2032 = vpop.f32.mrb[0].mxu0
  %v2033 = vadd.f32 0.0, %v2032
  %2034 = vmatprep.mubr.f32.mxu0 0.0
  %2035 = vmatmul.mubr.f32.gmra.mrb[0].mxu0 %v1350
  %v2036 = vpop.f32.mrb[0].mxu0
  %v2037 = vadd.f32 0.0, %v2036
  %v2038 = vpop.f32.mrb[0].mxu0
  %v2039 = vadd.f32 0.0, %v2038
  %2040 = vmatprep.mubr.f32.mxu0 0.0
  %2041 = vmatmul.mubr.f32.gmra.mrb[0].mxu0 %v1352
  %v2042 = vpop.f32.mrb[0].mxu0
  %v2043 = vadd.f32 0.0, %v2042
  %v2044 = vpop.f32.mrb[0].mxu0
  %v2045 = vadd.f32 0.0, %v2044
  %2046 = vmatprep.mubr.f32.mxu0 0.0
  %2047 = vmatmul.mubr.f32.gmra.mrb[0].mxu0 %v1354
  %v2048 = vpop.f32.mrb[0].mxu0
  %v2049 = vadd.f32 0.0, %v2048
  %v2050 = vpop.f32.mrb[0].mxu0
  %v2051 = vadd.f32 0.0, %v2050
  %2052 = vmatprep.mubr.f32.mxu0 0.0
  %2053 = vmatmul.mubr.f32.gmra.mrb[0].mxu0 %v1356
  %v2054 = vpop.f32.mrb[0].mxu0
  %v2055 = vadd.f32 0.0, %v2054
  %v2056 = vpop.f32.mrb[0].mxu0
  %v2057 = vadd.f32 0.0, %v2056
  %2058 = vmatprep.mubr.f32.mxu0 0.0
  %2059 = vmatmul.mubr.f32.gmra.mrb[0].mxu0 %v1358
  %v2060 = vpop.f32.mrb[0].mxu0
  %v2061 = vadd.f32 0.0, %v2060
  %v2062 = vpop.f32.mrb[0].mxu0
  %v2063 = vadd.f32 0.0, %v2062
  %2064 = vmatprep.mubr.f32.mxu0 0.0
  %2065 = vmatmul.mubr.f32.gmra.mrb[0].mxu0 %v1360
  %v2066 = vpop.f32.mrb[0].mxu0
  %v2067 = vadd.f32 0.0, %v2066
  %v2068 = vpop.f32.mrb[0].mxu0
  %v2069 = vadd.f32 0.0, %v2068
  %2070 = vmatprep.mubr.f32.mxu0 0.0
  %2071 = vmatmul.mubr.f32.gmra.mrb[0].mxu0 %v1362
  %v2072 = vpop.f32.mrb[0].mxu0
  %v2073 = vadd.f32 0.0, %v2072
  %v2074 = vpop.f32.mrb[0].mxu0
  %v2075 = vadd.f32 0.0, %v2074
  %2076 = vmatprep.mubr.f32.mxu0 0.0
  %2077 = vmatmul.mubr.f32.gmra.mrb[0].mxu0 %v1364
  %v2078 = vpop.f32.mrb[0].mxu0
  %v2079 = vadd.f32 0.0, %v2078
  %v2080 = vpop.f32.mrb[0].mxu0
  %v2081 = vadd.f32 0.0, %v2080
  %2082 = vmatprep.mubr.f32.mxu0 0.0
  %2083 = vmatmul.mubr.f32.gmra.mrb[0].mxu0 %v1366
  %v2084 = vpop.f32.mrb[0].mxu0
  %v2085 = vadd.f32 0.0, %v2084
  %v2086 = vpop.f32.mrb[0].mxu0
  %v2087 = vadd.f32 0.0, %v2086
  %2088 = vmatprep.mubr.f32.mxu0 0.0
  %2089 = vmatmul.mubr.f32.gmra.mrb[0].mxu0 %v1368
  %v2090 = vpop.f32.mrb[0].mxu0
  %v2091 = vadd.f32 0.0, %v2090
  %v2092 = vpop.f32.mrb[0].mxu0
  %v2093 = vadd.f32 0.0, %v2092
  %2094 = vmatprep.mubr.f32.mxu0 0.0
  %2095 = vmatmul.mubr.f32.gmra.mrb[0].mxu0 %v1370
  %v2096 = vpop.f32.mrb[0].mxu0
  %v2097 = vadd.f32 0.0, %v2096
  %v2098 = vpop.f32.mrb[0].mxu0
  %v2099 = vadd.f32 0.0, %v2098
  %2100 = vmatprep.mubr.f32.mxu0 0.0
  %2101 = vmatmul.mubr.f32.gmra.mrb[0].mxu0 %v1372
  %v2102 = vpop.f32.mrb[0].mxu0
  %v2103 = vadd.f32 0.0, %v2102
  %v2104 = vpop.f32.mrb[0].mxu0
  %v2105 = vadd.f32 0.0, %v2104
  %2106 = vmatprep.mubr.f32.mxu0 0.0
  %2107 = vmatmul.mubr.f32.gmra.mrb[0].mxu0 %v1374
  %v2108 = vpop.f32.mrb[0].mxu0
  %v2109 = vadd.f32 0.0, %v2108
  %v2110 = vpop.f32.mrb[0].mxu0
  %v2111 = vadd.f32 0.0, %v2110
  %2112 = vmatprep.mubr.f32.mxu0 0.0
  %2113 = vmatmul.mubr.f32.gmra.mrb[0].mxu0 %v1376
  %v2114 = vpop.f32.mrb[0].mxu0
  %v2115 = vadd.f32 0.0, %v2114
  %v2116 = vpop.f32.mrb[0].mxu0
  %v2117 = vadd.f32 0.0, %v2116
  %2118 = vmatprep.mubr.f32.mxu0 0.0
  %2119 = vmatmul.mubr.f32.gmra.mrb[0].mxu0 %v1378
  %v2120 = vpop.f32.mrb[0].mxu0
  %v2121 = vadd.f32 0.0, %v2120
  %v2122 = vpop.f32.mrb[0].mxu0
  %v2123 = vadd.f32 0.0, %v2122
  %2124 = vmatprep.mubr.f32.mxu0 0.0
  %2125 = vmatmul.mubr.f32.gmra.mrb[0].mxu0 %v1380
  %v2126 = vpop.f32.mrb[0].mxu0
  %v2127 = vadd.f32 0.0, %v2126
  %v2128 = vpop.f32.mrb[0].mxu0
  %v2129 = vadd.f32 0.0, %v2128
  %2130 = vmatprep.mubr.f32.mxu0 0.0
  %2131 = vmatmul.mubr.f32.gmra.mrb[0].mxu0 %v1382
  %v2132 = vpop.f32.mrb[0].mxu0
  %v2133 = vadd.f32 0.0, %v2132
  %v2134 = vpop.f32.mrb[0].mxu0
  %v2135 = vadd.f32 0.0, %v2134
  %2136 = vmatprep.mubr.f32.mxu0 0.0
  %2137 = vmatmul.mubr.f32.gmra.mrb[0].mxu0 %v1384
  %v2138 = vpop.f32.mrb[0].mxu0
  %v2139 = vadd.f32 0.0, %v2138
  %v2140 = vpop.f32.mrb[0].mxu0
  %v2141 = vadd.f32 0.0, %v2140
  %2142 = vmatprep.mubr.f32.mxu0 0.0
  %2143 = vmatmul.mubr.f32.gmra.mrb[0].mxu0 %v1386
  %v2144 = vpop.f32.mrb[0].mxu0
  %v2145 = vadd.f32 0.0, %v2144
  %v2146 = vpop.f32.mrb[0].mxu0
  %v2147 = vadd.f32 0.0, %v2146
  %2148 = vmatprep.mubr.f32.mxu0 0.0
  %2149 = vmatmul.mubr.f32.gmra.mrb[0].mxu0 %v1388
  %v2150 = vpop.f32.mrb[0].mxu0
  %v2151 = vadd.f32 0.0, %v2150
  %v2152 = vpop.f32.mrb[0].mxu0
  %v2153 = vadd.f32 0.0, %v2152
  %2154 = vmatprep.mubr.f32.mxu0 0.0
  %2155 = vmatmul.mubr.f32.gmra.mrb[0].mxu0 %v1486
  %v2156 = vpop.f32.mrb[0].mxu0
  %v2157 = vadd.f32 0.0, %v2156
  %v2158 = vpop.f32.mrb[0].mxu0
  %v2159 = vadd.f32 0.0, %v2158
  %2160 = vdwg.mxu0
  %2161 = vmatprep.subr.mxu0 %v1070
  %2162 = vmatpush1.msra.mxu0 %v1069
  %2163 = vmatprep.subr.mxu0 %v1072
  %2164 = vmatpush1.msra.mxu0 %v1071
  %2165 = vmatprep.subr.mxu0 %v1074
  %2166 = vmatpush1.msra.mxu0 %v1073
  %2167 = vmatprep.subr.mxu0 %v1076
  %2168 = vmatpush1.msra.mxu0 %v1075
  %2169 = vmatprep.subr.mxu0 %v1078
  %2170 = vmatpush1.msra.mxu0 %v1077
  %2171 = vmatprep.subr.mxu0 %v1080
  %2172 = vmatpush1.msra.mxu0 %v1079
  %2173 = vmatprep.subr.mxu0 %v1082
  %2174 = vmatpush1.msra.mxu0 %v1081
  %2175 = vmatprep.subr.mxu0 %v1084
  %2176 = vmatpush1.msra.mxu0 %v1083
  %2177 = vmatprep.subr.mxu0 %v1086
  %2178 = vmatpush1.msra.mxu0 %v1085
  %2179 = vmatprep.subr.mxu0 %v1088
  %2180 = vmatpush1.msra.mxu0 %v1087
  %2181 = vmatprep.subr.mxu0 %v1090
  %2182 = vmatpush1.msra.mxu0 %v1089
  %2183 = vmatprep.subr.mxu0 %v1092
  %2184 = vmatpush1.msra.mxu0 %v1091
  %2185 = vmatprep.subr.mxu0 %v1094
  %2186 = vmatpush1.msra.mxu0 %v1093
  %2187 = vmatprep.subr.mxu0 %v1096
  %2188 = vmatpush1.msra.mxu0 %v1095
  %2189 = vmatprep.subr.mxu0 %v1098
  %2190 = vmatpush1.msra.mxu0 %v1097
  %2191 = vmatprep.subr.mxu0 %v1100
  %2192 = vmatpush1.msra.mxu0 %v1099
  %2193 = vmatprep.subr.mxu0 0.0
  %2194 = vmatpush1.msra.mxu0 0.0
  %2195 = vmatprep.subr.mxu0 0.0
  %2196 = vmatpush1.msra.mxu0 0.0
  %2197 = vmatprep.subr.mxu0 0.0
  %2198 = vmatpush1.msra.mxu0 0.0
  %2199 = vmatprep.subr.mxu0 0.0
  %2200 = vmatpush1.msra.mxu0 0.0
  %2201 = vmatprep.subr.mxu0 0.0
  %2202 = vmatpush1.msra.mxu0 0.0
  %2203 = vmatprep.subr.mxu0 0.0
  %2204 = vmatpush1.msra.mxu0 0.0
  %2205 = vmatprep.subr.mxu0 0.0
  %2206 = vmatpush1.msra.mxu0 0.0
  %2207 = vmatprep.subr.mxu0 0.0
  %2208 = vmatpush1.msra.mxu0 0.0
  %2209 = vmatprep.subr.mxu0 0.0
  %2210 = vmatpush1.msra.mxu0 0.0
  %2211 = vmatprep.subr.mxu0 0.0
  %2212 = vmatpush1.msra.mxu0 0.0
  %2213 = vmatprep.subr.mxu0 0.0
  %2214 = vmatpush1.msra.mxu0 0.0
  %2215 = vmatprep.subr.mxu0 0.0
  %2216 = vmatpush1.msra.mxu0 0.0
  %2217 = vmatprep.subr.mxu0 0.0
  %2218 = vmatpush1.msra.mxu0 0.0
  %2219 = vmatprep.subr.mxu0 0.0
  %2220 = vmatpush1.msra.mxu0 0.0
  %2221 = vmatprep.subr.mxu0 0.0
  %2222 = vmatpush1.msra.mxu0 0.0
  %2223 = vmatprep.subr.mxu0 0.0
  %2224 = vmatpush1.msra.mxu0 0.0
  %2225 = vmatprep.mubr.f32.mxu0 0.0
  %2226 = vmatmul.mubr.f32.gmra.mrb[0].mxu0 %v973
  %v2227 = vpop.f32.mrb[0].mxu0
  %v2228 = vadd.f32 %v1587, %v2227
  %v2229 = vpop.f32.mrb[0].mxu0
  %v2230 = vadd.f32 %v1589, %v2229
  %2231 = vmatprep.mubr.f32.mxu0 0.0
  %2232 = vmatmul.mubr.f32.gmra.mrb[0].mxu0 %v974
  %v2233 = vpop.f32.mrb[0].mxu0
  %v2234 = vadd.f32 %v1593, %v2233
  %v2235 = vpop.f32.mrb[0].mxu0
  %v2236 = vadd.f32 %v1595, %v2235
  %2237 = vmatprep.mubr.f32.mxu0 0.0
  %2238 = vmatmul.mubr.f32.gmra.mrb[0].mxu0 %v975
  %v2239 = vpop.f32.mrb[0].mxu0
  %v2240 = vadd.f32 %v1599, %v2239
  %v2241 = vpop.f32.mrb[0].mxu0
  %v2242 = vadd.f32 %v1601, %v2241
  %2243 = vmatprep.mubr.f32.mxu0 0.0
  %2244 = vmatmul.mubr.f32.gmra.mrb[0].mxu0 %v976
  %v2245 = vpop.f32.mrb[0].mxu0
  %v2246 = vadd.f32 %v1605, %v2245
  %v2247 = vpop.f32.mrb[0].mxu0
  %v2248 = vadd.f32 %v1607, %v2247
  %2249 = vmatprep.mubr.f32.mxu0 0.0
  %2250 = vmatmul.mubr.f32.gmra.mrb[0].mxu0 %v977
  %v2251 = vpop.f32.mrb[0].mxu0
  %v2252 = vadd.f32 %v1611, %v2251
  %v2253 = vpop.f32.mrb[0].mxu0
  %v2254 = vadd.f32 %v1613, %v2253
  %2255 = vmatprep.mubr.f32.mxu0 0.0
  %2256 = vmatmul.mubr.f32.gmra.mrb[0].mxu0 %v978
  %v2257 = vpop.f32.mrb[0].mxu0
  %v2258 = vadd.f32 %v1617, %v2257
  %v2259 = vpop.f32.mrb[0].mxu0
  %v2260 = vadd.f32 %v1619, %v2259
  %2261 = vmatprep.mubr.f32.mxu0 0.0
  %2262 = vmatmul.mubr.f32.gmra.mrb[0].mxu0 %v979
  %v2263 = vpop.f32.mrb[0].mxu0
  %v2264 = vadd.f32 %v1623, %v2263
  %v2265 = vpop.f32.mrb[0].mxu0
  %v2266 = vadd.f32 %v1625, %v2265
  %2267 = vmatprep.mubr.f32.mxu0 0.0
  %2268 = vmatmul.mubr.f32.gmra.mrb[0].mxu0 %v980
  %v2269 = vpop.f32.mrb[0].mxu0
  %v2270 = vadd.f32 %v1629, %v2269
  %v2271 = vpop.f32.mrb[0].mxu0
  %v2272 = vadd.f32 %v1631, %v2271
  %2273 = vmatprep.mubr.f32.mxu0 0.0
  %2274 = vmatmul.mubr.f32.gmra.mrb[0].mxu0 %v981
  %v2275 = vpop.f32.mrb[0].mxu0
  %v2276 = vadd.f32 %v1635, %v2275
  %v2277 = vpop.f32.mrb[0].mxu0
  %v2278 = vadd.f32 %v1637, %v2277
  %2279 = vmatprep.mubr.f32.mxu0 0.0
  %2280 = vmatmul.mubr.f32.gmra.mrb[0].mxu0 %v982
  %v2281 = vpop.f32.mrb[0].mxu0
  %v2282 = vadd.f32 %v1641, %v2281
  %v2283 = vpop.f32.mrb[0].mxu0
  %v2284 = vadd.f32 %v1643, %v2283
  %2285 = vmatprep.mubr.f32.mxu0 0.0
  %2286 = vmatmul.mubr.f32.gmra.mrb[0].mxu0 %v983
  %v2287 = vpop.f32.mrb[0].mxu0
  %v2288 = vadd.f32 %v1647, %v2287
  %v2289 = vpop.f32.mrb[0].mxu0
  %v2290 = vadd.f32 %v1649, %v2289
  %2291 = vmatprep.mubr.f32.mxu0 0.0
  %2292 = vmatmul.mubr.f32.gmra.mrb[0].mxu0 %v984
  %v2293 = vpop.f32.mrb[0].mxu0
  %v2294 = vadd.f32 %v1653, %v2293
  %v2295 = vpop.f32.mrb[0].mxu0
  %v2296 = vadd.f32 %v1655, %v2295
  %2297 = vmatprep.mubr.f32.mxu0 0.0
  %2298 = vmatmul.mubr.f32.gmra.mrb[0].mxu0 %v985
  %v2299 = vpop.f32.mrb[0].mxu0
  %v2300 = vadd.f32 %v1659, %v2299
  %v2301 = vpop.f32.mrb[0].mxu0
  %v2302 = vadd.f32 %v1661, %v2301
  %2303 = vmatprep.mubr.f32.mxu0 0.0
  %2304 = vmatmul.mubr.f32.gmra.mrb[0].mxu0 %v986
  %v2305 = vpop.f32.mrb[0].mxu0
  %v2306 = vadd.f32 %v1665, %v2305
  %v2307 = vpop.f32.mrb[0].mxu0
  %v2308 = vadd.f32 %v1667, %v2307
  %2309 = vmatprep.mubr.f32.mxu0 0.0
  %2310 = vmatmul.mubr.f32.gmra.mrb[0].mxu0 %v987
  %v2311 = vpop.f32.mrb[0].mxu0
  %v2312 = vadd.f32 %v1671, %v2311
  %v2313 = vpop.f32.mrb[0].mxu0
  %v2314 = vadd.f32 %v1673, %v2313
  %2315 = vmatprep.mubr.f32.mxu0 0.0
  %2316 = vmatmul.mubr.f32.gmra.mrb[0].mxu0 %v988
  %v2317 = vpop.f32.mrb[0].mxu0
  %v2318 = vadd.f32 %v1677, %v2317
  %v2319 = vpop.f32.mrb[0].mxu0
  %v2320 = vadd.f32 %v1679, %v2319
  %2321 = vmatprep.mubr.f32.mxu0 0.0
  %2322 = vmatmul.mubr.f32.gmra.mrb[0].mxu0 %v989
  %v2323 = vpop.f32.mrb[0].mxu0
  %v2324 = vadd.f32 %v1683, %v2323
  %v2325 = vpop.f32.mrb[0].mxu0
  %v2326 = vadd.f32 %v1685, %v2325
  %2327 = vmatprep.mubr.f32.mxu0 0.0
  %2328 = vmatmul.mubr.f32.gmra.mrb[0].mxu0 %v990
  %v2329 = vpop.f32.mrb[0].mxu0
  %v2330 = vadd.f32 %v1689, %v2329
  %v2331 = vpop.f32.mrb[0].mxu0
  %v2332 = vadd.f32 %v1691, %v2331
  %2333 = vmatprep.mubr.f32.mxu0 0.0
  %2334 = vmatmul.mubr.f32.gmra.mrb[0].mxu0 %v991
  %v2335 = vpop.f32.mrb[0].mxu0
  %v2336 = vadd.f32 %v1695, %v2335
  %v2337 = vpop.f32.mrb[0].mxu0
  %v2338 = vadd.f32 %v1697, %v2337
  %2339 = vmatprep.mubr.f32.mxu0 0.0
  %2340 = vmatmul.mubr.f32.gmra.mrb[0].mxu0 %v992
  %v2341 = vpop.f32.mrb[0].mxu0
  %v2342 = vadd.f32 %v1701, %v2341
  %v2343 = vpop.f32.mrb[0].mxu0
  %v2344 = vadd.f32 %v1703, %v2343
  %2345 = vmatprep.mubr.f32.mxu0 0.0
  %2346 = vmatmul.mubr.f32.gmra.mrb[0].mxu0 %v993
  %v2347 = vpop.f32.mrb[0].mxu0
  %v2348 = vadd.f32 %v1707, %v2347
  %v2349 = vpop.f32.mrb[0].mxu0
  %v2350 = vadd.f32 %v1709, %v2349
  %2351 = vmatprep.mubr.f32.mxu0 0.0
  %2352 = vmatmul.mubr.f32.gmra.mrb[0].mxu0 %v994
  %v2353 = vpop.f32.mrb[0].mxu0
  %v2354 = vadd.f32 %v1713, %v2353
  %v2355 = vpop.f32.mrb[0].mxu0
  %v2356 = vadd.f32 %v1715, %v2355
  %2357 = vmatprep.mubr.f32.mxu0 0.0
  %2358 = vmatmul.mubr.f32.gmra.mrb[0].mxu0 %v995
  %v2359 = vpop.f32.mrb[0].mxu0
  %v2360 = vadd.f32 %v1719, %v2359
  %v2361 = vpop.f32.mrb[0].mxu0
  %v2362 = vadd.f32 %v1721, %v2361
  %2363 = vmatprep.mubr.f32.mxu0 0.0
  %2364 = vmatmul.mubr.f32.gmra.mrb[0].mxu0 %v996
  %v2365 = vpop.f32.mrb[0].mxu0
  %v2366 = vadd.f32 %v1725, %v2365
  %v2367 = vpop.f32.mrb[0].mxu0
  %v2368 = vadd.f32 %v1727, %v2367
  %2369 = vmatprep.mubr.f32.mxu0 0.0
  %2370 = vmatmul.mubr.f32.gmra.mrb[0].mxu0 %v997
  %v2371 = vpop.f32.mrb[0].mxu0
  %v2372 = vadd.f32 %v1731, %v2371
  %v2373 = vpop.f32.mrb[0].mxu0
  %v2374 = vadd.f32 %v1733, %v2373
  %2375 = vmatprep.mubr.f32.mxu0 0.0
  %2376 = vmatmul.mubr.f32.gmra.mrb[0].mxu0 %v998
  %v2377 = vpop.f32.mrb[0].mxu0
  %v2378 = vadd.f32 %v1737, %v2377
  %v2379 = vpop.f32.mrb[0].mxu0
  %v2380 = vadd.f32 %v1739, %v2379
  %2381 = vmatprep.mubr.f32.mxu0 0.0
  %2382 = vmatmul.mubr.f32.gmra.mrb[0].mxu0 %v999
  %v2383 = vpop.f32.mrb[0].mxu0
  %v2384 = vadd.f32 %v1743, %v2383
  %v2385 = vpop.f32.mrb[0].mxu0
  %v2386 = vadd.f32 %v1745, %v2385
  %2387 = vmatprep.mubr.f32.mxu0 0.0
  %2388 = vmatmul.mubr.f32.gmra.mrb[0].mxu0 %v1000
  %v2389 = vpop.f32.mrb[0].mxu0
  %v2390 = vadd.f32 %v1749, %v2389
  %v2391 = vpop.f32.mrb[0].mxu0
  %v2392 = vadd.f32 %v1751, %v2391
  %2393 = vmatprep.mubr.f32.mxu0 0.0
  %2394 = vmatmul.mubr.f32.gmra.mrb[0].mxu0 %v1001
  %v2395 = vpop.f32.mrb[0].mxu0
  %v2396 = vadd.f32 %v1755, %v2395
  %v2397 = vpop.f32.mrb[0].mxu0
  %v2398 = vadd.f32 %v1757, %v2397
  %2399 = vmatprep.mubr.f32.mxu0 0.0
  %2400 = vmatmul.mubr.f32.gmra.mrb[0].mxu0 %v1002
  %v2401 = vpop.f32.mrb[0].mxu0
  %v2402 = vadd.f32 %v1761, %v2401
  %v2403 = vpop.f32.mrb[0].mxu0
  %v2404 = vadd.f32 %v1763, %v2403
  %2405 = vmatprep.mubr.f32.mxu0 0.0
  %2406 = vmatmul.mubr.f32.gmra.mrb[0].mxu0 %v1003
  %v2407 = vpop.f32.mrb[0].mxu0
  %v2408 = vadd.f32 %v1767, %v2407
  %v2409 = vpop.f32.mrb[0].mxu0
  %v2410 = vadd.f32 %v1769, %v2409
  %2411 = vmatprep.mubr.f32.mxu0 0.0
  %2412 = vmatmul.mubr.f32.gmra.mrb[0].mxu0 %v1004
  %v2413 = vpop.f32.mrb[0].mxu0
  %v2414 = vadd.f32 %v1773, %v2413
  %v2415 = vpop.f32.mrb[0].mxu0
  %v2416 = vadd.f32 %v1775, %v2415
  %2417 = vmatprep.mubr.f32.mxu0 0.0
  %2418 = vmatmul.mubr.f32.gmra.mrb[0].mxu0 %v1005
  %v2419 = vpop.f32.mrb[0].mxu0
  %v2420 = vadd.f32 %v1779, %v2419
  %v2421 = vpop.f32.mrb[0].mxu0
  %v2422 = vadd.f32 %v1781, %v2421
  %2423 = vmatprep.mubr.f32.mxu0 0.0
  %2424 = vmatmul.mubr.f32.gmra.mrb[0].mxu0 %v1006
  %v2425 = vpop.f32.mrb[0].mxu0
  %v2426 = vadd.f32 %v1785, %v2425
  %v2427 = vpop.f32.mrb[0].mxu0
  %v2428 = vadd.f32 %v1787, %v2427
  %2429 = vmatprep.mubr.f32.mxu0 0.0
  %2430 = vmatmul.mubr.f32.gmra.mrb[0].mxu0 %v1007
  %v2431 = vpop.f32.mrb[0].mxu0
  %v2432 = vadd.f32 %v1791, %v2431
  %v2433 = vpop.f32.mrb[0].mxu0
  %v2434 = vadd.f32 %v1793, %v2433
  %2435 = vmatprep.mubr.f32.mxu0 0.0
  %2436 = vmatmul.mubr.f32.gmra.mrb[0].mxu0 %v1008
  %v2437 = vpop.f32.mrb[0].mxu0
  %v2438 = vadd.f32 %v1797, %v2437
  %v2439 = vpop.f32.mrb[0].mxu0
  %v2440 = vadd.f32 %v1799, %v2439
  %2441 = vmatprep.mubr.f32.mxu0 0.0
  %2442 = vmatmul.mubr.f32.gmra.mrb[0].mxu0 %v1009
  %v2443 = vpop.f32.mrb[0].mxu0
  %v2444 = vadd.f32 %v1803, %v2443
  %v2445 = vpop.f32.mrb[0].mxu0
  %v2446 = vadd.f32 %v1805, %v2445
  %2447 = vmatprep.mubr.f32.mxu0 0.0
  %2448 = vmatmul.mubr.f32.gmra.mrb[0].mxu0 %v1010
  %v2449 = vpop.f32.mrb[0].mxu0
  %v2450 = vadd.f32 %v1809, %v2449
  %v2451 = vpop.f32.mrb[0].mxu0
  %v2452 = vadd.f32 %v1811, %v2451
  %2453 = vmatprep.mubr.f32.mxu0 0.0
  %2454 = vmatmul.mubr.f32.gmra.mrb[0].mxu0 %v1011
  %v2455 = vpop.f32.mrb[0].mxu0
  %v2456 = vadd.f32 %v1815, %v2455
  %v2457 = vpop.f32.mrb[0].mxu0
  %v2458 = vadd.f32 %v1817, %v2457
  %2459 = vmatprep.mubr.f32.mxu0 0.0
  %2460 = vmatmul.mubr.f32.gmra.mrb[0].mxu0 %v1012
  %v2461 = vpop.f32.mrb[0].mxu0
  %v2462 = vadd.f32 %v1821, %v2461
  %v2463 = vpop.f32.mrb[0].mxu0
  %v2464 = vadd.f32 %v1823, %v2463
  %2465 = vmatprep.mubr.f32.mxu0 0.0
  %2466 = vmatmul.mubr.f32.gmra.mrb[0].mxu0 %v1013
  %v2467 = vpop.f32.mrb[0].mxu0
  %v2468 = vadd.f32 %v1827, %v2467
  %v2469 = vpop.f32.mrb[0].mxu0
  %v2470 = vadd.f32 %v1829, %v2469
  %2471 = vmatprep.mubr.f32.mxu0 0.0
  %2472 = vmatmul.mubr.f32.gmra.mrb[0].mxu0 %v1014
  %v2473 = vpop.f32.mrb[0].mxu0
  %v2474 = vadd.f32 %v1833, %v2473
  %v2475 = vpop.f32.mrb[0].mxu0
  %v2476 = vadd.f32 %v1835, %v2475
  %2477 = vmatprep.mubr.f32.mxu0 0.0
  %2478 = vmatmul.mubr.f32.gmra.mrb[0].mxu0 %v1015
  %v2479 = vpop.f32.mrb[0].mxu0
  %v2480 = vadd.f32 %v1839, %v2479
  %v2481 = vpop.f32.mrb[0].mxu0
  %v2482 = vadd.f32 %v1841, %v2481
  %2483 = vmatprep.mubr.f32.mxu0 0.0
  %2484 = vmatmul.mubr.f32.gmra.mrb[0].mxu0 %v1016
  %v2485 = vpop.f32.mrb[0].mxu0
  %v2486 = vadd.f32 %v1845, %v2485
  %v2487 = vpop.f32.mrb[0].mxu0
  %v2488 = vadd.f32 %v1847, %v2487
  %2489 = vmatprep.mubr.f32.mxu0 0.0
  %2490 = vmatmul.mubr.f32.gmra.mrb[0].mxu0 %v1017
  %v2491 = vpop.f32.mrb[0].mxu0
  %v2492 = vadd.f32 %v1851, %v2491
  %v2493 = vpop.f32.mrb[0].mxu0
  %v2494 = vadd.f32 %v1853, %v2493
  %2495 = vmatprep.mubr.f32.mxu0 0.0
  %2496 = vmatmul.mubr.f32.gmra.mrb[0].mxu0 %v1018
  %v2497 = vpop.f32.mrb[0].mxu0
  %v2498 = vadd.f32 %v1857, %v2497
  %v2499 = vpop.f32.mrb[0].mxu0
  %v2500 = vadd.f32 %v1859, %v2499
  %2501 = vmatprep.mubr.f32.mxu0 0.0
  %2502 = vmatmul.mubr.f32.gmra.mrb[0].mxu0 %v1019
  %v2503 = vpop.f32.mrb[0].mxu0
  %v2504 = vadd.f32 %v1863, %v2503
  %v2505 = vpop.f32.mrb[0].mxu0
  %v2506 = vadd.f32 %v1865, %v2505
  %2507 = vmatprep.mubr.f32.mxu0 0.0
  %2508 = vmatmul.mubr.f32.gmra.mrb[0].mxu0 %v1020
  %v2509 = vpop.f32.mrb[0].mxu0
  %v2510 = vadd.f32 %v1869, %v2509
  %v2511 = vpop.f32.mrb[0].mxu0
  %v2512 = vadd.f32 %v1871, %v2511
  %2513 = vmatprep.mubr.f32.mxu0 0.0
  %2514 = vmatmul.mubr.f32.gmra.mrb[0].mxu0 %v1021
  %v2515 = vpop.f32.mrb[0].mxu0
  %v2516 = vadd.f32 %v1875, %v2515
  %v2517 = vpop.f32.mrb[0].mxu0
  %v2518 = vadd.f32 %v1877, %v2517
  %2519 = vmatprep.mubr.f32.mxu0 0.0
  %2520 = vmatmul.mubr.f32.gmra.mrb[0].mxu0 %v1022
  %v2521 = vpop.f32.mrb[0].mxu0
  %v2522 = vadd.f32 %v1881, %v2521
  %v2523 = vpop.f32.mrb[0].mxu0
  %v2524 = vadd.f32 %v1883, %v2523
  %2525 = vmatprep.mubr.f32.mxu0 0.0
  %2526 = vmatmul.mubr.f32.gmra.mrb[0].mxu0 %v1023
  %v2527 = vpop.f32.mrb[0].mxu0
  %v2528 = vadd.f32 %v1887, %v2527
  %v2529 = vpop.f32.mrb[0].mxu0
  %v2530 = vadd.f32 %v1889, %v2529
  %2531 = vmatprep.mubr.f32.mxu0 0.0
  %2532 = vmatmul.mubr.f32.gmra.mrb[0].mxu0 %v1024
  %v2533 = vpop.f32.mrb[0].mxu0
  %v2534 = vadd.f32 %v1893, %v2533
  %v2535 = vpop.f32.mrb[0].mxu0
  %v2536 = vadd.f32 %v1895, %v2535
  %2537 = vmatprep.mubr.f32.mxu0 0.0
  %2538 = vmatmul.mubr.f32.gmra.mrb[0].mxu0 %v1025
  %v2539 = vpop.f32.mrb[0].mxu0
  %v2540 = vadd.f32 %v1899, %v2539
  %v2541 = vpop.f32.mrb[0].mxu0
  %v2542 = vadd.f32 %v1901, %v2541
  %2543 = vmatprep.mubr.f32.mxu0 0.0
  %2544 = vmatmul.mubr.f32.gmra.mrb[0].mxu0 %v1026
  %v2545 = vpop.f32.mrb[0].mxu0
  %v2546 = vadd.f32 %v1905, %v2545
  %v2547 = vpop.f32.mrb[0].mxu0
  %v2548 = vadd.f32 %v1907, %v2547
  %2549 = vmatprep.mubr.f32.mxu0 0.0
  %2550 = vmatmul.mubr.f32.gmra.mrb[0].mxu0 %v1027
  %v2551 = vpop.f32.mrb[0].mxu0
  %v2552 = vadd.f32 %v1911, %v2551
  %v2553 = vpop.f32.mrb[0].mxu0
  %v2554 = vadd.f32 %v1913, %v2553
  %2555 = vmatprep.mubr.f32.mxu0 0.0
  %2556 = vmatmul.mubr.f32.gmra.mrb[0].mxu0 %v1028
  %v2557 = vpop.f32.mrb[0].mxu0
  %v2558 = vadd.f32 %v1917, %v2557
  %v2559 = vpop.f32.mrb[0].mxu0
  %v2560 = vadd.f32 %v1919, %v2559
  %2561 = vmatprep.mubr.f32.mxu0 0.0
  %2562 = vmatmul.mubr.f32.gmra.mrb[0].mxu0 %v1029
  %v2563 = vpop.f32.mrb[0].mxu0
  %v2564 = vadd.f32 %v1923, %v2563
  %v2565 = vpop.f32.mrb[0].mxu0
  %v2566 = vadd.f32 %v1925, %v2565
  %2567 = vmatprep.mubr.f32.mxu0 0.0
  %2568 = vmatmul.mubr.f32.gmra.mrb[0].mxu0 %v1030
  %v2569 = vpop.f32.mrb[0].mxu0
  %v2570 = vadd.f32 %v1929, %v2569
  %v2571 = vpop.f32.mrb[0].mxu0
  %v2572 = vadd.f32 %v1931, %v2571
  %2573 = vmatprep.mubr.f32.mxu0 0.0
  %2574 = vmatmul.mubr.f32.gmra.mrb[0].mxu0 %v1031
  %v2575 = vpop.f32.mrb[0].mxu0
  %v2576 = vadd.f32 %v1935, %v2575
  %v2577 = vpop.f32.mrb[0].mxu0
  %v2578 = vadd.f32 %v1937, %v2577
  %2579 = vmatprep.mubr.f32.mxu0 0.0
  %2580 = vmatmul.mubr.f32.gmra.mrb[0].mxu0 %v1032
  %v2581 = vpop.f32.mrb[0].mxu0
  %v2582 = vadd.f32 %v1941, %v2581
  %v2583 = vpop.f32.mrb[0].mxu0
  %v2584 = vadd.f32 %v1943, %v2583
  %2585 = vmatprep.mubr.f32.mxu0 0.0
  %2586 = vmatmul.mubr.f32.gmra.mrb[0].mxu0 %v1033
  %v2587 = vpop.f32.mrb[0].mxu0
  %v2588 = vadd.f32 %v1947, %v2587
  %v2589 = vpop.f32.mrb[0].mxu0
  %v2590 = vadd.f32 %v1949, %v2589
  %2591 = vmatprep.mubr.f32.mxu0 0.0
  %2592 = vmatmul.mubr.f32.gmra.mrb[0].mxu0 %v1034
  %v2593 = vpop.f32.mrb[0].mxu0
  %v2594 = vadd.f32 %v1953, %v2593
  %v2595 = vpop.f32.mrb[0].mxu0
  %v2596 = vadd.f32 %v1955, %v2595
  %2597 = vmatprep.mubr.f32.mxu0 0.0
  %2598 = vmatmul.mubr.f32.gmra.mrb[0].mxu0 %v1035
  %v2599 = vpop.f32.mrb[0].mxu0
  %v2600 = vadd.f32 %v1959, %v2599
  %v2601 = vpop.f32.mrb[0].mxu0
  %v2602 = vadd.f32 %v1961, %v2601
  %2603 = vmatprep.mubr.f32.mxu0 0.0
  %2604 = vmatmul.mubr.f32.gmra.mrb[0].mxu0 %v1036
  %v2605 = vpop.f32.mrb[0].mxu0
  %v2606 = vadd.f32 %v1965, %v2605
  %v2607 = vpop.f32.mrb[0].mxu0
  %v2608 = vadd.f32 %v1967, %v2607
  %2609 = vmatprep.mubr.f32.mxu0 0.0
  %2610 = vmatmul.mubr.f32.gmra.mrb[0].mxu0 %v1037
  %v2611 = vpop.f32.mrb[0].mxu0
  %v2612 = vadd.f32 %v1971, %v2611
  %v2613 = vpop.f32.mrb[0].mxu0
  %v2614 = vadd.f32 %v1973, %v2613
  %2615 = vmatprep.mubr.f32.mxu0 0.0
  %2616 = vmatmul.mubr.f32.gmra.mrb[0].mxu0 %v1038
  %v2617 = vpop.f32.mrb[0].mxu0
  %v2618 = vadd.f32 %v1977, %v2617
  %v2619 = vpop.f32.mrb[0].mxu0
  %v2620 = vadd.f32 %v1979, %v2619
  %2621 = vmatprep.mubr.f32.mxu0 0.0
  %2622 = vmatmul.mubr.f32.gmra.mrb[0].mxu0 %v1039
  %v2623 = vpop.f32.mrb[0].mxu0
  %v2624 = vadd.f32 %v1983, %v2623
  %v2625 = vpop.f32.mrb[0].mxu0
  %v2626 = vadd.f32 %v1985, %v2625
  %2627 = vmatprep.mubr.f32.mxu0 0.0
  %2628 = vmatmul.mubr.f32.gmra.mrb[0].mxu0 %v1040
  %v2629 = vpop.f32.mrb[0].mxu0
  %v2630 = vadd.f32 %v1989, %v2629
  %v2631 = vpop.f32.mrb[0].mxu0
  %v2632 = vadd.f32 %v1991, %v2631
  %2633 = vmatprep.mubr.f32.mxu0 0.0
  %2634 = vmatmul.mubr.f32.gmra.mrb[0].mxu0 %v1041
  %v2635 = vpop.f32.mrb[0].mxu0
  %v2636 = vadd.f32 %v1995, %v2635
  %v2637 = vpop.f32.mrb[0].mxu0
  %v2638 = vadd.f32 %v1997, %v2637
  %2639 = vmatprep.mubr.f32.mxu0 0.0
  %2640 = vmatmul.mubr.f32.gmra.mrb[0].mxu0 %v1042
  %v2641 = vpop.f32.mrb[0].mxu0
  %v2642 = vadd.f32 %v2001, %v2641
  %v2643 = vpop.f32.mrb[0].mxu0
  %v2644 = vadd.f32 %v2003, %v2643
  %2645 = vmatprep.mubr.f32.mxu0 0.0
  %2646 = vmatmul.mubr.f32.gmra.mrb[0].mxu0 %v1043
  %v2647 = vpop.f32.mrb[0].mxu0
  %v2648 = vadd.f32 %v2007, %v2647
  %v2649 = vpop.f32.mrb[0].mxu0
  %v2650 = vadd.f32 %v2009, %v2649
  %2651 = vmatprep.mubr.f32.mxu0 0.0
  %2652 = vmatmul.mubr.f32.gmra.mrb[0].mxu0 %v1044
  %v2653 = vpop.f32.mrb[0].mxu0
  %v2654 = vadd.f32 %v2013, %v2653
  %v2655 = vpop.f32.mrb[0].mxu0
  %v2656 = vadd.f32 %v2015, %v2655
  %2657 = vmatprep.mubr.f32.mxu0 0.0
  %2658 = vmatmul.mubr.f32.gmra.mrb[0].mxu0 %v1045
  %v2659 = vpop.f32.mrb[0].mxu0
  %v2660 = vadd.f32 %v2019, %v2659
  %v2661 = vpop.f32.mrb[0].mxu0
  %v2662 = vadd.f32 %v2021, %v2661
  %2663 = vmatprep.mubr.f32.mxu0 0.0
  %2664 = vmatmul.mubr.f32.gmra.mrb[0].mxu0 %v1046
  %v2665 = vpop.f32.mrb[0].mxu0
  %v2666 = vadd.f32 %v2025, %v2665
  %v2667 = vpop.f32.mrb[0].mxu0
  %v2668 = vadd.f32 %v2027, %v2667
  %2669 = vmatprep.mubr.f32.mxu0 0.0
  %2670 = vmatmul.mubr.f32.gmra.mrb[0].mxu0 %v1047
  %v2671 = vpop.f32.mrb[0].mxu0
  %v2672 = vadd.f32 %v2031, %v2671
  %v2673 = vpop.f32.mrb[0].mxu0
  %v2674 = vadd.f32 %v2033, %v2673
  %2675 = vmatprep.mubr.f32.mxu0 0.0
  %2676 = vmatmul.mubr.f32.gmra.mrb[0].mxu0 %v1048
  %v2677 = vpop.f32.mrb[0].mxu0
  %v2678 = vadd.f32 %v2037, %v2677
  %v2679 = vpop.f32.mrb[0].mxu0
  %v2680 = vadd.f32 %v2039, %v2679
  %2681 = vmatprep.mubr.f32.mxu0 0.0
  %2682 = vmatmul.mubr.f32.gmra.mrb[0].mxu0 %v1049
  %v2683 = vpop.f32.mrb[0].mxu0
  %v2684 = vadd.f32 %v2043, %v2683
  %v2685 = vpop.f32.mrb[0].mxu0
  %v2686 = vadd.f32 %v2045, %v2685
  %2687 = vmatprep.mubr.f32.mxu0 0.0
  %2688 = vmatmul.mubr.f32.gmra.mrb[0].mxu0 %v1050
  %v2689 = vpop.f32.mrb[0].mxu0
  %v2690 = vadd.f32 %v2049, %v2689
  %v2691 = vpop.f32.mrb[0].mxu0
  %v2692 = vadd.f32 %v2051, %v2691
  %2693 = vmatprep.mubr.f32.mxu0 0.0
  %2694 = vmatmul.mubr.f32.gmra.mrb[0].mxu0 %v1051
  %v2695 = vpop.f32.mrb[0].mxu0
  %v2696 = vadd.f32 %v2055, %v2695
  %v2697 = vpop.f32.mrb[0].mxu0
  %v2698 = vadd.f32 %v2057, %v2697
  %2699 = vmatprep.mubr.f32.mxu0 0.0
  %2700 = vmatmul.mubr.f32.gmra.mrb[0].mxu0 %v1052
  %v2701 = vpop.f32.mrb[0].mxu0
  %v2702 = vadd.f32 %v2061, %v2701
  %v2703 = vpop.f32.mrb[0].mxu0
  %v2704 = vadd.f32 %v2063, %v2703
  %2705 = vmatprep.mubr.f32.mxu0 0.0
  %2706 = vmatmul.mubr.f32.gmra.mrb[0].mxu0 %v1053
  %v2707 = vpop.f32.mrb[0].mxu0
  %v2708 = vadd.f32 %v2067, %v2707
  %v2709 = vpop.f32.mrb[0].mxu0
  %v2710 = vadd.f32 %v2069, %v2709
  %2711 = vmatprep.mubr.f32.mxu0 0.0
  %2712 = vmatmul.mubr.f32.gmra.mrb[0].mxu0 %v1054
  %v2713 = vpop.f32.mrb[0].mxu0
  %v2714 = vadd.f32 %v2073, %v2713
  %v2715 = vpop.f32.mrb[0].mxu0
  %v2716 = vadd.f32 %v2075, %v2715
  %2717 = vmatprep.mubr.f32.mxu0 0.0
  %2718 = vmatmul.mubr.f32.gmra.mrb[0].mxu0 %v1055
  %v2719 = vpop.f32.mrb[0].mxu0
  %v2720 = vadd.f32 %v2079, %v2719
  %v2721 = vpop.f32.mrb[0].mxu0
  %v2722 = vadd.f32 %v2081, %v2721
  %2723 = vmatprep.mubr.f32.mxu0 0.0
  %2724 = vmatmul.mubr.f32.gmra.mrb[0].mxu0 %v1056
  %v2725 = vpop.f32.mrb[0].mxu0
  %v2726 = vadd.f32 %v2085, %v2725
  %v2727 = vpop.f32.mrb[0].mxu0
  %v2728 = vadd.f32 %v2087, %v2727
  %2729 = vmatprep.mubr.f32.mxu0 0.0
  %2730 = vmatmul.mubr.f32.gmra.mrb[0].mxu0 %v1057
  %v2731 = vpop.f32.mrb[0].mxu0
  %v2732 = vadd.f32 %v2091, %v2731
  %v2733 = vpop.f32.mrb[0].mxu0
  %v2734 = vadd.f32 %v2093, %v2733
  %2735 = vmatprep.mubr.f32.mxu0 0.0
  %2736 = vmatmul.mubr.f32.gmra.mrb[0].mxu0 %v1058
  %v2737 = vpop.f32.mrb[0].mxu0
  %v2738 = vadd.f32 %v2097, %v2737
  %v2739 = vpop.f32.mrb[0].mxu0
  %v2740 = vadd.f32 %v2099, %v2739
  %2741 = vmatprep.mubr.f32.mxu0 0.0
  %2742 = vmatmul.mubr.f32.gmra.mrb[0].mxu0 %v1059
  %v2743 = vpop.f32.mrb[0].mxu0
  %v2744 = vadd.f32 %v2103, %v2743
  %v2745 = vpop.f32.mrb[0].mxu0
  %v2746 = vadd.f32 %v2105, %v2745
  %2747 = vmatprep.mubr.f32.mxu0 0.0
  %2748 = vmatmul.mubr.f32.gmra.mrb[0].mxu0 %v1060
  %v2749 = vpop.f32.mrb[0].mxu0
  %v2750 = vadd.f32 %v2109, %v2749
  %v2751 = vpop.f32.mrb[0].mxu0
  %v2752 = vadd.f32 %v2111, %v2751
  %2753 = vmatprep.mubr.f32.mxu0 0.0
  %2754 = vmatmul.mubr.f32.gmra.mrb[0].mxu0 %v1061
  %v2755 = vpop.f32.mrb[0].mxu0
  %v2756 = vadd.f32 %v2115, %v2755
  %v2757 = vpop.f32.mrb[0].mxu0
  %v2758 = vadd.f32 %v2117, %v2757
  %2759 = vmatprep.mubr.f32.mxu0 0.0
  %2760 = vmatmul.mubr.f32.gmra.mrb[0].mxu0 %v1062
  %v2761 = vpop.f32.mrb[0].mxu0
  %v2762 = vadd.f32 %v2121, %v2761
  %v2763 = vpop.f32.mrb[0].mxu0
  %v2764 = vadd.f32 %v2123, %v2763
  %2765 = vmatprep.mubr.f32.mxu0 0.0
  %2766 = vmatmul.mubr.f32.gmra.mrb[0].mxu0 %v1063
  %v2767 = vpop.f32.mrb[0].mxu0
  %v2768 = vadd.f32 %v2127, %v2767
  %v2769 = vpop.f32.mrb[0].mxu0
  %v2770 = vadd.f32 %v2129, %v2769
  %2771 = vmatprep.mubr.f32.mxu0 0.0
  %2772 = vmatmul.mubr.f32.gmra.mrb[0].mxu0 %v1064
  %v2773 = vpop.f32.mrb[0].mxu0
  %v2774 = vadd.f32 %v2133, %v2773
  %v2775 = vpop.f32.mrb[0].mxu0
  %v2776 = vadd.f32 %v2135, %v2775
  %2777 = vmatprep.mubr.f32.mxu0 0.0
  %2778 = vmatmul.mubr.f32.gmra.mrb[0].mxu0 %v1065
  %v2779 = vpop.f32.mrb[0].mxu0
  %v2780 = vadd.f32 %v2139, %v2779
  %v2781 = vpop.f32.mrb[0].mxu0
  %v2782 = vadd.f32 %v2141, %v2781
  %2783 = vmatprep.mubr.f32.mxu0 0.0
  %2784 = vmatmul.mubr.f32.gmra.mrb[0].mxu0 %v1066
  %v2785 = vpop.f32.mrb[0].mxu0
  %v2786 = vadd.f32 %v2145, %v2785
  %v2787 = vpop.f32.mrb[0].mxu0
  %v2788 = vadd.f32 %v2147, %v2787
  %2789 = vmatprep.mubr.f32.mxu0 0.0
  %2790 = vmatmul.mubr.f32.gmra.mrb[0].mxu0 %v1067
  %v2791 = vpop.f32.mrb[0].mxu0
  %v2792 = vadd.f32 %v2151, %v2791
  %v2793 = vpop.f32.mrb[0].mxu0
  %v2794 = vadd.f32 %v2153, %v2793
  %2795 = vmatprep.mubr.f32.mxu0 0.0
  %2796 = vmatmul.mubr.f32.gmra.mrb[0].mxu0 %v1068
  %v2797 = vpop.f32.mrb[0].mxu0
  %v2798 = vadd.f32 %v2157, %v2797
  %v2799 = vpop.f32.mrb[0].mxu0
  %v2800 = vadd.f32 %v2159, %v2799
  %2801 = vdwg.mxu0
  %vm2802 = vcmask 1045504
  %v2803 = vrot.slane %v973, 2
  %v2804 = vrot.slane %v974, 2
  %v2805 = vsel %vm2802, %v2803, %v2804
  %v2806 = vrot.slane %v975, 2
  %v2807 = vsel %vm2802, %v2804, %v2806
  %v2808 = vrot.slane %v976, 2
  %v2809 = vsel %vm2802, %v2806, %v2808
  %v2810 = vrot.slane %v977, 2
  %v2811 = vsel %vm2802, %v2808, %v2810
  %v2812 = vrot.slane %v978, 2
  %v2813 = vsel %vm2802, %v2810, %v2812
  %v2814 = vrot.slane %v979, 2
  %v2815 = vsel %vm2802, %v2812, %v2814
  %v2816 = vrot.slane %v980, 2
  %v2817 = vsel %vm2802, %v2814, %v2816
  %v2818 = vrot.slane %v981, 2
  %v2819 = vsel %vm2802, %v2816, %v2818
  %v2820 = vrot.slane %v982, 2
  %v2821 = vsel %vm2802, %v2818, %v2820
  %v2822 = vrot.slane %v983, 2
  %v2823 = vsel %vm2802, %v2820, %v2822
  %v2824 = vrot.slane %v984, 2
  %v2825 = vsel %vm2802, %v2822, %v2824
  %v2826 = vrot.slane %v985, 2
  %v2827 = vsel %vm2802, %v2824, %v2826
  %v2828 = vrot.slane %v986, 2
  %v2829 = vsel %vm2802, %v2826, %v2828
  %v2830 = vrot.slane %v987, 2
  %v2831 = vsel %vm2802, %v2828, %v2830
  %v2832 = vrot.slane %v988, 2
  %v2833 = vsel %vm2802, %v2830, %v2832
  %v2834 = vrot.slane %v989, 2
  %v2835 = vsel %vm2802, %v2832, %v2834
  %v2836 = vrot.slane %v990, 2
  %v2837 = vsel %vm2802, %v2834, %v2836
  %v2838 = vrot.slane %v991, 2
  %v2839 = vsel %vm2802, %v2836, %v2838
  %v2840 = vrot.slane %v992, 2
  %v2841 = vsel %vm2802, %v2838, %v2840
  %v2842 = vrot.slane %v993, 2
  %v2843 = vsel %vm2802, %v2840, %v2842
  %v2844 = vrot.slane %v994, 2
  %v2845 = vsel %vm2802, %v2842, %v2844
  %v2846 = vrot.slane %v995, 2
  %v2847 = vsel %vm2802, %v2844, %v2846
  %v2848 = vrot.slane %v996, 2
  %v2849 = vsel %vm2802, %v2846, %v2848
  %v2850 = vrot.slane %v997, 2
  %v2851 = vsel %vm2802, %v2848, %v2850
  %v2852 = vrot.slane %v998, 2
  %v2853 = vsel %vm2802, %v2850, %v2852
  %v2854 = vrot.slane %v999, 2
  %v2855 = vsel %vm2802, %v2852, %v2854
  %v2856 = vrot.slane %v1000, 2
  %v2857 = vsel %vm2802, %v2854, %v2856
  %v2858 = vrot.slane %v1001, 2
  %v2859 = vsel %vm2802, %v2856, %v2858
  %v2860 = vrot.slane %v1002, 2
  %v2861 = vsel %vm2802, %v2858, %v2860
  %v2862 = vrot.slane %v1003, 2
  %v2863 = vsel %vm2802, %v2860, %v2862
  %v2864 = vrot.slane %v1004, 2
  %v2865 = vsel %vm2802, %v2862, %v2864
  %v2866 = vrot.slane %v1005, 2
  %v2867 = vsel %vm2802, %v2864, %v2866
  %v2868 = vrot.slane %v1006, 2
  %v2869 = vsel %vm2802, %v2866, %v2868
  %v2870 = vrot.slane %v1007, 2
  %v2871 = vsel %vm2802, %v2868, %v2870
  %v2872 = vrot.slane %v1008, 2
  %v2873 = vsel %vm2802, %v2870, %v2872
  %v2874 = vrot.slane %v1009, 2
  %v2875 = vsel %vm2802, %v2872, %v2874
  %v2876 = vrot.slane %v1010, 2
  %v2877 = vsel %vm2802, %v2874, %v2876
  %v2878 = vrot.slane %v1011, 2
  %v2879 = vsel %vm2802, %v2876, %v2878
  %v2880 = vrot.slane %v1012, 2
  %v2881 = vsel %vm2802, %v2878, %v2880
  %v2882 = vrot.slane %v1013, 2
  %v2883 = vsel %vm2802, %v2880, %v2882
  %v2884 = vrot.slane %v1014, 2
  %v2885 = vsel %vm2802, %v2882, %v2884
  %v2886 = vrot.slane %v1015, 2
  %v2887 = vsel %vm2802, %v2884, %v2886
  %v2888 = vrot.slane %v1016, 2
  %v2889 = vsel %vm2802, %v2886, %v2888
  %v2890 = vrot.slane %v1017, 2
  %v2891 = vsel %vm2802, %v2888, %v2890
  %v2892 = vrot.slane %v1018, 2
  %v2893 = vsel %vm2802, %v2890, %v2892
  %v2894 = vrot.slane %v1019, 2
  %v2895 = vsel %vm2802, %v2892, %v2894
  %v2896 = vrot.slane %v1020, 2
  %v2897 = vsel %vm2802, %v2894, %v2896
  %v2898 = vrot.slane %v1021, 2
  %v2899 = vsel %vm2802, %v2896, %v2898
  %v2900 = vrot.slane %v1022, 2
  %v2901 = vsel %vm2802, %v2898, %v2900
  %v2902 = vrot.slane %v1023, 2
  %v2903 = vsel %vm2802, %v2900, %v2902
  %v2904 = vrot.slane %v1024, 2
  %v2905 = vsel %vm2802, %v2902, %v2904
  %v2906 = vrot.slane %v1025, 2
  %v2907 = vsel %vm2802, %v2904, %v2906
  %v2908 = vrot.slane %v1026, 2
  %v2909 = vsel %vm2802, %v2906, %v2908
  %v2910 = vrot.slane %v1027, 2
  %v2911 = vsel %vm2802, %v2908, %v2910
  %v2912 = vrot.slane %v1028, 2
  %v2913 = vsel %vm2802, %v2910, %v2912
  %v2914 = vrot.slane %v1029, 2
  %v2915 = vsel %vm2802, %v2912, %v2914
  %v2916 = vrot.slane %v1030, 2
  %v2917 = vsel %vm2802, %v2914, %v2916
  %v2918 = vrot.slane %v1031, 2
  %v2919 = vsel %vm2802, %v2916, %v2918
  %v2920 = vrot.slane %v1032, 2
  %v2921 = vsel %vm2802, %v2918, %v2920
  %v2922 = vrot.slane %v1033, 2
  %v2923 = vsel %vm2802, %v2920, %v2922
  %v2924 = vrot.slane %v1034, 2
  %v2925 = vsel %vm2802, %v2922, %v2924
  %v2926 = vrot.slane %v1035, 2
  %v2927 = vsel %vm2802, %v2924, %v2926
  %v2928 = vrot.slane %v1036, 2
  %v2929 = vsel %vm2802, %v2926, %v2928
  %v2930 = vrot.slane %v1037, 2
  %v2931 = vsel %vm2802, %v2928, %v2930
  %v2932 = vrot.slane %v1038, 2
  %v2933 = vsel %vm2802, %v2930, %v2932
  %v2934 = vrot.slane %v1039, 2
  %v2935 = vsel %vm2802, %v2932, %v2934
  %v2936 = vrot.slane %v1040, 2
  %v2937 = vsel %vm2802, %v2934, %v2936
  %v2938 = vrot.slane %v1041, 2
  %v2939 = vsel %vm2802, %v2936, %v2938
  %v2940 = vrot.slane %v1042, 2
  %v2941 = vsel %vm2802, %v2938, %v2940
  %v2942 = vrot.slane %v1043, 2
  %v2943 = vsel %vm2802, %v2940, %v2942
  %v2944 = vrot.slane %v1044, 2
  %v2945 = vsel %vm2802, %v2942, %v2944
  %v2946 = vrot.slane %v1045, 2
  %v2947 = vsel %vm2802, %v2944, %v2946
  %v2948 = vrot.slane %v1046, 2
  %v2949 = vsel %vm2802, %v2946, %v2948
  %v2950 = vrot.slane %v1047, 2
  %v2951 = vsel %vm2802, %v2948, %v2950
  %v2952 = vrot.slane %v1048, 2
  %v2953 = vsel %vm2802, %v2950, %v2952
  %v2954 = vrot.slane %v1049, 2
  %v2955 = vsel %vm2802, %v2952, %v2954
  %v2956 = vrot.slane %v1050, 2
  %v2957 = vsel %vm2802, %v2954, %v2956
  %v2958 = vrot.slane %v1051, 2
  %v2959 = vsel %vm2802, %v2956, %v2958
  %v2960 = vrot.slane %v1052, 2
  %v2961 = vsel %vm2802, %v2958, %v2960
  %v2962 = vrot.slane %v1053, 2
  %v2963 = vsel %vm2802, %v2960, %v2962
  %v2964 = vrot.slane %v1054, 2
  %v2965 = vsel %vm2802, %v2962, %v2964
  %v2966 = vrot.slane %v1055, 2
  %v2967 = vsel %vm2802, %v2964, %v2966
  %v2968 = vrot.slane %v1056, 2
  %v2969 = vsel %vm2802, %v2966, %v2968
  %v2970 = vrot.slane %v1057, 2
  %v2971 = vsel %vm2802, %v2968, %v2970
  %v2972 = vrot.slane %v1058, 2
  %v2973 = vsel %vm2802, %v2970, %v2972
  %v2974 = vrot.slane %v1059, 2
  %v2975 = vsel %vm2802, %v2972, %v2974
  %v2976 = vrot.slane %v1060, 2
  %v2977 = vsel %vm2802, %v2974, %v2976
  %v2978 = vrot.slane %v1061, 2
  %v2979 = vsel %vm2802, %v2976, %v2978
  %v2980 = vrot.slane %v1062, 2
  %v2981 = vsel %vm2802, %v2978, %v2980
  %v2982 = vrot.slane %v1063, 2
  %v2983 = vsel %vm2802, %v2980, %v2982
  %v2984 = vrot.slane %v1064, 2
  %v2985 = vsel %vm2802, %v2982, %v2984
  %v2986 = vrot.slane %v1065, 2
  %v2987 = vsel %vm2802, %v2984, %v2986
  %v2988 = vrot.slane %v1066, 2
  %v2989 = vsel %vm2802, %v2986, %v2988
  %v2990 = vrot.slane %v1067, 2
  %v2991 = vsel %vm2802, %v2988, %v2990
  %v2992 = vrot.slane %v1068, 2
  %v2993 = vsel %vm2802, %v2990, %v2992
  %v3091 = vsel %vm2802, %v2992, %v2803
  %s3092 = scalar_lea.vmem %s3, 512
  %v3093 = vld [vmem:[%s3092] sm:$0xff]
  %v3094 = vld [vmem:[%s3092 + $0x8] sm:$0xff]
  %v3095 = vld [vmem:[%s3092 + $0x10] sm:$0xff]
  %v3096 = vld [vmem:[%s3092 + $0x18] sm:$0xff]
  %v3097 = vld [vmem:[%s3092 + $0x20] sm:$0xff]
  %v3098 = vld [vmem:[%s3092 + $0x28] sm:$0xff]
  %v3099 = vld [vmem:[%s3092 + $0x30] sm:$0xff]
  %v3100 = vld [vmem:[%s3092 + $0x38] sm:$0xff]
  %v3101 = vld [vmem:[%s3092 + $0x40] sm:$0xff]
  %v3102 = vld [vmem:[%s3092 + $0x48] sm:$0xff]
  %v3103 = vld [vmem:[%s3092 + $0x50] sm:$0xff]
  %v3104 = vld [vmem:[%s3092 + $0x58] sm:$0xff]
  %v3105 = vld [vmem:[%s3092 + $0x60] sm:$0xff]
  %v3106 = vld [vmem:[%s3092 + $0x68] sm:$0xff]
  %v3107 = vld [vmem:[%s3092 + $0x70] sm:$0xff]
  %v3108 = vld [vmem:[%s3092 + $0x78] sm:$0xff]
  %v3109 = vld [vmem:[%s3092 + $0x80] sm:$0xff]
  %v3110 = vld [vmem:[%s3092 + $0x88] sm:$0xff]
  %v3111 = vld [vmem:[%s3092 + $0x90] sm:$0xff]
  %v3112 = vld [vmem:[%s3092 + $0x98] sm:$0xff]
  %v3113 = vld [vmem:[%s3092 + $0xa0] sm:$0xff]
  %v3114 = vld [vmem:[%s3092 + $0xa8] sm:$0xff]
  %v3115 = vld [vmem:[%s3092 + $0xb0] sm:$0xff]
  %v3116 = vld [vmem:[%s3092 + $0xb8] sm:$0xff]
  %v3117 = vld [vmem:[%s3092 + $0xc0] sm:$0xff]
  %v3118 = vld [vmem:[%s3092 + $0xc8] sm:$0xff]
  %v3119 = vld [vmem:[%s3092 + $0xd0] sm:$0xff]
  %v3120 = vld [vmem:[%s3092 + $0xd8] sm:$0xff]
  %v3121 = vld [vmem:[%s3092 + $0xe0] sm:$0xff]
  %v3122 = vld [vmem:[%s3092 + $0xe8] sm:$0xff]
  %v3123 = vld [vmem:[%s3092 + $0xf0] sm:$0xff]
  %v3124 = vld [vmem:[%s3092 + $0xf8] sm:$0xff]
  %3125 = vmatprep.subr.mxu0 %v3094
  %3126 = vmatpush1.msra.mxu0 %v3093
  %3127 = vmatprep.subr.mxu0 %v3096
  %3128 = vmatpush1.msra.mxu0 %v3095
  %3129 = vmatprep.subr.mxu0 %v3098
  %3130 = vmatpush1.msra.mxu0 %v3097
  %3131 = vmatprep.subr.mxu0 %v3100
  %3132 = vmatpush1.msra.mxu0 %v3099
  %3133 = vmatprep.subr.mxu0 %v3102
  %3134 = vmatpush1.msra.mxu0 %v3101
  %3135 = vmatprep.subr.mxu0 %v3104
  %3136 = vmatpush1.msra.mxu0 %v3103
  %3137 = vmatprep.subr.mxu0 %v3106
  %3138 = vmatpush1.msra.mxu0 %v3105
  %3139 = vmatprep.subr.mxu0 %v3108
  %3140 = vmatpush1.msra.mxu0 %v3107
  %3141 = vmatprep.subr.mxu0 %v3110
  %3142 = vmatpush1.msra.mxu0 %v3109
  %3143 = vmatprep.subr.mxu0 %v3112
  %3144 = vmatpush1.msra.mxu0 %v3111
  %3145 = vmatprep.subr.mxu0 %v3114
  %3146 = vmatpush1.msra.mxu0 %v3113
  %3147 = vmatprep.subr.mxu0 %v3116
  %3148 = vmatpush1.msra.mxu0 %v3115
  %3149 = vmatprep.subr.mxu0 %v3118
  %3150 = vmatpush1.msra.mxu0 %v3117
  %3151 = vmatprep.subr.mxu0 %v3120
  %3152 = vmatpush1.msra.mxu0 %v3119
  %3153 = vmatprep.subr.mxu0 %v3122
  %3154 = vmatpush1.msra.mxu0 %v3121
  %3155 = vmatprep.subr.mxu0 %v3124
  %3156 = vmatpush1.msra.mxu0 %v3123
  %3157 = vmatprep.subr.mxu0 0.0
  %3158 = vmatpush1.msra.mxu0 0.0
  %3159 = vmatprep.subr.mxu0 0.0
  %3160 = vmatpush1.msra.mxu0 0.0
  %3161 = vmatprep.subr.mxu0 0.0
  %3162 = vmatpush1.msra.mxu0 0.0
  %3163 = vmatprep.subr.mxu0 0.0
  %3164 = vmatpush1.msra.mxu0 0.0
  %3165 = vmatprep.subr.mxu0 0.0
  %3166 = vmatpush1.msra.mxu0 0.0
  %3167 = vmatprep.subr.mxu0 0.0
  %3168 = vmatpush1.msra.mxu0 0.0
  %3169 = vmatprep.subr.mxu0 0.0
  %3170 = vmatpush1.msra.mxu0 0.0
  %3171 = vmatprep.subr.mxu0 0.0
  %3172 = vmatpush1.msra.mxu0 0.0
  %3173 = vmatprep.subr.mxu0 0.0
  %3174 = vmatpush1.msra.mxu0 0.0
  %3175 = vmatprep.subr.mxu0 0.0
  %3176 = vmatpush1.msra.mxu0 0.0
  %3177 = vmatprep.subr.mxu0 0.0
  %3178 = vmatpush1.msra.mxu0 0.0
  %3179 = vmatprep.subr.mxu0 0.0
  %3180 = vmatpush1.msra.mxu0 0.0
  %3181 = vmatprep.subr.mxu0 0.0
  %3182 = vmatpush1.msra.mxu0 0.0
  %3183 = vmatprep.subr.mxu0 0.0
  %3184 = vmatpush1.msra.mxu0 0.0
  %3185 = vmatprep.subr.mxu0 0.0
  %3186 = vmatpush1.msra.mxu0 0.0
  %3187 = vmatprep.subr.mxu0 0.0
  %3188 = vmatpush1.msra.mxu0 0.0
  %3189 = vmatprep.mubr.f32.mxu0 0.0
  %3190 = vmatmul.mubr.f32.gmra.mrb[0].mxu0 %v2805
  %v3191 = vpop.f32.mrb[0].mxu0
  %v3192 = vadd.f32 0.0, %v3191
  %v3193 = vpop.f32.mrb[0].mxu0
  %v3194 = vadd.f32 0.0, %v3193
  %3195 = vmatprep.mubr.f32.mxu0 0.0
  %3196 = vmatmul.mubr.f32.gmra.mrb[0].mxu0 %v2807
  %v3197 = vpop.f32.mrb[0].mxu0
  %v3198 = vadd.f32 0.0, %v3197
  %v3199 = vpop.f32.mrb[0].mxu0
  %v3200 = vadd.f32 0.0, %v3199
  %3201 = vmatprep.mubr.f32.mxu0 0.0
  %3202 = vmatmul.mubr.f32.gmra.mrb[0].mxu0 %v2809
  %v3203 = vpop.f32.mrb[0].mxu0
  %v3204 = vadd.f32 0.0, %v3203
  %v3205 = vpop.f32.mrb[0].mxu0
  %v3206 = vadd.f32 0.0, %v3205
  %3207 = vmatprep.mubr.f32.mxu0 0.0
  %3208 = vmatmul.mubr.f32.gmra.mrb[0].mxu0 %v2811
  %v3209 = vpop.f32.mrb[0].mxu0
  %v3210 = vadd.f32 0.0, %v3209
  %v3211 = vpop.f32.mrb[0].mxu0
  %v3212 = vadd.f32 0.0, %v3211
  %3213 = vmatprep.mubr.f32.mxu0 0.0
  %3214 = vmatmul.mubr.f32.gmra.mrb[0].mxu0 %v2813
  %v3215 = vpop.f32.mrb[0].mxu0
  %v3216 = vadd.f32 0.0, %v3215
  %v3217 = vpop.f32.mrb[0].mxu0
  %v3218 = vadd.f32 0.0, %v3217
  %3219 = vmatprep.mubr.f32.mxu0 0.0
  %3220 = vmatmul.mubr.f32.gmra.mrb[0].mxu0 %v2815
  %v3221 = vpop.f32.mrb[0].mxu0
  %v3222 = vadd.f32 0.0, %v3221
  %v3223 = vpop.f32.mrb[0].mxu0
  %v3224 = vadd.f32 0.0, %v3223
  %3225 = vmatprep.mubr.f32.mxu0 0.0
  %3226 = vmatmul.mubr.f32.gmra.mrb[0].mxu0 %v2817
  %v3227 = vpop.f32.mrb[0].mxu0
  %v3228 = vadd.f32 0.0, %v3227
  %v3229 = vpop.f32.mrb[0].mxu0
  %v3230 = vadd.f32 0.0, %v3229
  %3231 = vmatprep.mubr.f32.mxu0 0.0
  %3232 = vmatmul.mubr.f32.gmra.mrb[0].mxu0 %v2819
  %v3233 = vpop.f32.mrb[0].mxu0
  %v3234 = vadd.f32 0.0, %v3233
  %v3235 = vpop.f32.mrb[0].mxu0
  %v3236 = vadd.f32 0.0, %v3235
  %3237 = vmatprep.mubr.f32.mxu0 0.0
  %3238 = vmatmul.mubr.f32.gmra.mrb[0].mxu0 %v2821
  %v3239 = vpop.f32.mrb[0].mxu0
  %v3240 = vadd.f32 0.0, %v3239
  %v3241 = vpop.f32.mrb[0].mxu0
  %v3242 = vadd.f32 0.0, %v3241
  %3243 = vmatprep.mubr.f32.mxu0 0.0
  %3244 = vmatmul.mubr.f32.gmra.mrb[0].mxu0 %v2823
  %v3245 = vpop.f32.mrb[0].mxu0
  %v3246 = vadd.f32 0.0, %v3245
  %v3247 = vpop.f32.mrb[0].mxu0
  %v3248 = vadd.f32 0.0, %v3247
  %3249 = vmatprep.mubr.f32.mxu0 0.0
  %3250 = vmatmul.mubr.f32.gmra.mrb[0].mxu0 %v2825
  %v3251 = vpop.f32.mrb[0].mxu0
  %v3252 = vadd.f32 0.0, %v3251
  %v3253 = vpop.f32.mrb[0].mxu0
  %v3254 = vadd.f32 0.0, %v3253
  %3255 = vmatprep.mubr.f32.mxu0 0.0
  %3256 = vmatmul.mubr.f32.gmra.mrb[0].mxu0 %v2827
  %v3257 = vpop.f32.mrb[0].mxu0
  %v3258 = vadd.f32 0.0, %v3257
  %v3259 = vpop.f32.mrb[0].mxu0
  %v3260 = vadd.f32 0.0, %v3259
  %3261 = vmatprep.mubr.f32.mxu0 0.0
  %3262 = vmatmul.mubr.f32.gmra.mrb[0].mxu0 %v2829
  %v3263 = vpop.f32.mrb[0].mxu0
  %v3264 = vadd.f32 0.0, %v3263
  %v3265 = vpop.f32.mrb[0].mxu0
  %v3266 = vadd.f32 0.0, %v3265
  %3267 = vmatprep.mubr.f32.mxu0 0.0
  %3268 = vmatmul.mubr.f32.gmra.mrb[0].mxu0 %v2831
  %v3269 = vpop.f32.mrb[0].mxu0
  %v3270 = vadd.f32 0.0, %v3269
  %v3271 = vpop.f32.mrb[0].mxu0
  %v3272 = vadd.f32 0.0, %v3271
  %3273 = vmatprep.mubr.f32.mxu0 0.0
  %3274 = vmatmul.mubr.f32.gmra.mrb[0].mxu0 %v2833
  %v3275 = vpop.f32.mrb[0].mxu0
  %v3276 = vadd.f32 0.0, %v3275
  %v3277 = vpop.f32.mrb[0].mxu0
  %v3278 = vadd.f32 0.0, %v3277
  %3279 = vmatprep.mubr.f32.mxu0 0.0
  %3280 = vmatmul.mubr.f32.gmra.mrb[0].mxu0 %v2835
  %v3281 = vpop.f32.mrb[0].mxu0
  %v3282 = vadd.f32 0.0, %v3281
  %v3283 = vpop.f32.mrb[0].mxu0
  %v3284 = vadd.f32 0.0, %v3283
  %3285 = vmatprep.mubr.f32.mxu0 0.0
  %3286 = vmatmul.mubr.f32.gmra.mrb[0].mxu0 %v2837
  %v3287 = vpop.f32.mrb[0].mxu0
  %v3288 = vadd.f32 0.0, %v3287
  %v3289 = vpop.f32.mrb[0].mxu0
  %v3290 = vadd.f32 0.0, %v3289
  %3291 = vmatprep.mubr.f32.mxu0 0.0
  %3292 = vmatmul.mubr.f32.gmra.mrb[0].mxu0 %v2839
  %v3293 = vpop.f32.mrb[0].mxu0
  %v3294 = vadd.f32 0.0, %v3293
  %v3295 = vpop.f32.mrb[0].mxu0
  %v3296 = vadd.f32 0.0, %v3295
  %3297 = vmatprep.mubr.f32.mxu0 0.0
  %3298 = vmatmul.mubr.f32.gmra.mrb[0].mxu0 %v2841
  %v3299 = vpop.f32.mrb[0].mxu0
  %v3300 = vadd.f32 0.0, %v3299
  %v3301 = vpop.f32.mrb[0].mxu0
  %v3302 = vadd.f32 0.0, %v3301
  %3303 = vmatprep.mubr.f32.mxu0 0.0
  %3304 = vmatmul.mubr.f32.gmra.mrb[0].mxu0 %v2843
  %v3305 = vpop.f32.mrb[0].mxu0
  %v3306 = vadd.f32 0.0, %v3305
  %v3307 = vpop.f32.mrb[0].mxu0
  %v3308 = vadd.f32 0.0, %v3307
  %3309 = vmatprep.mubr.f32.mxu0 0.0
  %3310 = vmatmul.mubr.f32.gmra.mrb[0].mxu0 %v2845
  %v3311 = vpop.f32.mrb[0].mxu0
  %v3312 = vadd.f32 0.0, %v3311
  %v3313 = vpop.f32.mrb[0].mxu0
  %v3314 = vadd.f32 0.0, %v3313
  %3315 = vmatprep.mubr.f32.mxu0 0.0
  %3316 = vmatmul.mubr.f32.gmra.mrb[0].mxu0 %v2847
  %v3317 = vpop.f32.mrb[0].mxu0
  %v3318 = vadd.f32 0.0, %v3317
  %v3319 = vpop.f32.mrb[0].mxu0
  %v3320 = vadd.f32 0.0, %v3319
  %3321 = vmatprep.mubr.f32.mxu0 0.0
  %3322 = vmatmul.mubr.f32.gmra.mrb[0].mxu0 %v2849
  %v3323 = vpop.f32.mrb[0].mxu0
  %v3324 = vadd.f32 0.0, %v3323
  %v3325 = vpop.f32.mrb[0].mxu0
  %v3326 = vadd.f32 0.0, %v3325
  %3327 = vmatprep.mubr.f32.mxu0 0.0
  %3328 = vmatmul.mubr.f32.gmra.mrb[0].mxu0 %v2851
  %v3329 = vpop.f32.mrb[0].mxu0
  %v3330 = vadd.f32 0.0, %v3329
  %v3331 = vpop.f32.mrb[0].mxu0
  %v3332 = vadd.f32 0.0, %v3331
  %3333 = vmatprep.mubr.f32.mxu0 0.0
  %3334 = vmatmul.mubr.f32.gmra.mrb[0].mxu0 %v2853
  %v3335 = vpop.f32.mrb[0].mxu0
  %v3336 = vadd.f32 0.0, %v3335
  %v3337 = vpop.f32.mrb[0].mxu0
  %v3338 = vadd.f32 0.0, %v3337
  %3339 = vmatprep.mubr.f32.mxu0 0.0
  %3340 = vmatmul.mubr.f32.gmra.mrb[0].mxu0 %v2855
  %v3341 = vpop.f32.mrb[0].mxu0
  %v3342 = vadd.f32 0.0, %v3341
  %v3343 = vpop.f32.mrb[0].mxu0
  %v3344 = vadd.f32 0.0, %v3343
  %3345 = vmatprep.mubr.f32.mxu0 0.0
  %3346 = vmatmul.mubr.f32.gmra.mrb[0].mxu0 %v2857
  %v3347 = vpop.f32.mrb[0].mxu0
  %v3348 = vadd.f32 0.0, %v3347
  %v3349 = vpop.f32.mrb[0].mxu0
  %v3350 = vadd.f32 0.0, %v3349
  %3351 = vmatprep.mubr.f32.mxu0 0.0
  %3352 = vmatmul.mubr.f32.gmra.mrb[0].mxu0 %v2859
  %v3353 = vpop.f32.mrb[0].mxu0
  %v3354 = vadd.f32 0.0, %v3353
  %v3355 = vpop.f32.mrb[0].mxu0
  %v3356 = vadd.f32 0.0, %v3355
  %3357 = vmatprep.mubr.f32.mxu0 0.0
  %3358 = vmatmul.mubr.f32.gmra.mrb[0].mxu0 %v2861
  %v3359 = vpop.f32.mrb[0].mxu0
  %v3360 = vadd.f32 0.0, %v3359
  %v3361 = vpop.f32.mrb[0].mxu0
  %v3362 = vadd.f32 0.0, %v3361
  %3363 = vmatprep.mubr.f32.mxu0 0.0
  %3364 = vmatmul.mubr.f32.gmra.mrb[0].mxu0 %v2863
  %v3365 = vpop.f32.mrb[0].mxu0
  %v3366 = vadd.f32 0.0, %v3365
  %v3367 = vpop.f32.mrb[0].mxu0
  %v3368 = vadd.f32 0.0, %v3367
  %3369 = vmatprep.mubr.f32.mxu0 0.0
  %3370 = vmatmul.mubr.f32.gmra.mrb[0].mxu0 %v2865
  %v3371 = vpop.f32.mrb[0].mxu0
  %v3372 = vadd.f32 0.0, %v3371
  %v3373 = vpop.f32.mrb[0].mxu0
  %v3374 = vadd.f32 0.0, %v3373
  %3375 = vmatprep.mubr.f32.mxu0 0.0
  %3376 = vmatmul.mubr.f32.gmra.mrb[0].mxu0 %v2867
  %v3377 = vpop.f32.mrb[0].mxu0
  %v3378 = vadd.f32 0.0, %v3377
  %v3379 = vpop.f32.mrb[0].mxu0
  %v3380 = vadd.f32 0.0, %v3379
  %3381 = vmatprep.mubr.f32.mxu0 0.0
  %3382 = vmatmul.mubr.f32.gmra.mrb[0].mxu0 %v2869
  %v3383 = vpop.f32.mrb[0].mxu0
  %v3384 = vadd.f32 0.0, %v3383
  %v3385 = vpop.f32.mrb[0].mxu0
  %v3386 = vadd.f32 0.0, %v3385
  %3387 = vmatprep.mubr.f32.mxu0 0.0
  %3388 = vmatmul.mubr.f32.gmra.mrb[0].mxu0 %v2871
  %v3389 = vpop.f32.mrb[0].mxu0
  %v3390 = vadd.f32 0.0, %v3389
  %v3391 = vpop.f32.mrb[0].mxu0
  %v3392 = vadd.f32 0.0, %v3391
  %3393 = vmatprep.mubr.f32.mxu0 0.0
  %3394 = vmatmul.mubr.f32.gmra.mrb[0].mxu0 %v2873
  %v3395 = vpop.f32.mrb[0].mxu0
  %v3396 = vadd.f32 0.0, %v3395
  %v3397 = vpop.f32.mrb[0].mxu0
  %v3398 = vadd.f32 0.0, %v3397
  %3399 = vmatprep.mubr.f32.mxu0 0.0
  %3400 = vmatmul.mubr.f32.gmra.mrb[0].mxu0 %v2875
  %v3401 = vpop.f32.mrb[0].mxu0
  %v3402 = vadd.f32 0.0, %v3401
  %v3403 = vpop.f32.mrb[0].mxu0
  %v3404 = vadd.f32 0.0, %v3403
  %3405 = vmatprep.mubr.f32.mxu0 0.0
  %3406 = vmatmul.mubr.f32.gmra.mrb[0].mxu0 %v2877
  %v3407 = vpop.f32.mrb[0].mxu0
  %v3408 = vadd.f32 0.0, %v3407
  %v3409 = vpop.f32.mrb[0].mxu0
  %v3410 = vadd.f32 0.0, %v3409
  %3411 = vmatprep.mubr.f32.mxu0 0.0
  %3412 = vmatmul.mubr.f32.gmra.mrb[0].mxu0 %v2879
  %v3413 = vpop.f32.mrb[0].mxu0
  %v3414 = vadd.f32 0.0, %v3413
  %v3415 = vpop.f32.mrb[0].mxu0
  %v3416 = vadd.f32 0.0, %v3415
  %3417 = vmatprep.mubr.f32.mxu0 0.0
  %3418 = vmatmul.mubr.f32.gmra.mrb[0].mxu0 %v2881
  %v3419 = vpop.f32.mrb[0].mxu0
  %v3420 = vadd.f32 0.0, %v3419
  %v3421 = vpop.f32.mrb[0].mxu0
  %v3422 = vadd.f32 0.0, %v3421
  %3423 = vmatprep.mubr.f32.mxu0 0.0
  %3424 = vmatmul.mubr.f32.gmra.mrb[0].mxu0 %v2883
  %v3425 = vpop.f32.mrb[0].mxu0
  %v3426 = vadd.f32 0.0, %v3425
  %v3427 = vpop.f32.mrb[0].mxu0
  %v3428 = vadd.f32 0.0, %v3427
  %3429 = vmatprep.mubr.f32.mxu0 0.0
  %3430 = vmatmul.mubr.f32.gmra.mrb[0].mxu0 %v2885
  %v3431 = vpop.f32.mrb[0].mxu0
  %v3432 = vadd.f32 0.0, %v3431
  %v3433 = vpop.f32.mrb[0].mxu0
  %v3434 = vadd.f32 0.0, %v3433
  %3435 = vmatprep.mubr.f32.mxu0 0.0
  %3436 = vmatmul.mubr.f32.gmra.mrb[0].mxu0 %v2887
  %v3437 = vpop.f32.mrb[0].mxu0
  %v3438 = vadd.f32 0.0, %v3437
  %v3439 = vpop.f32.mrb[0].mxu0
  %v3440 = vadd.f32 0.0, %v3439
  %3441 = vmatprep.mubr.f32.mxu0 0.0
  %3442 = vmatmul.mubr.f32.gmra.mrb[0].mxu0 %v2889
  %v3443 = vpop.f32.mrb[0].mxu0
  %v3444 = vadd.f32 0.0, %v3443
  %v3445 = vpop.f32.mrb[0].mxu0
  %v3446 = vadd.f32 0.0, %v3445
  %3447 = vmatprep.mubr.f32.mxu0 0.0
  %3448 = vmatmul.mubr.f32.gmra.mrb[0].mxu0 %v2891
  %v3449 = vpop.f32.mrb[0].mxu0
  %v3450 = vadd.f32 0.0, %v3449
  %v3451 = vpop.f32.mrb[0].mxu0
  %v3452 = vadd.f32 0.0, %v3451
  %3453 = vmatprep.mubr.f32.mxu0 0.0
  %3454 = vmatmul.mubr.f32.gmra.mrb[0].mxu0 %v2893
  %v3455 = vpop.f32.mrb[0].mxu0
  %v3456 = vadd.f32 0.0, %v3455
  %v3457 = vpop.f32.mrb[0].mxu0
  %v3458 = vadd.f32 0.0, %v3457
  %3459 = vmatprep.mubr.f32.mxu0 0.0
  %3460 = vmatmul.mubr.f32.gmra.mrb[0].mxu0 %v2895
  %v3461 = vpop.f32.mrb[0].mxu0
  %v3462 = vadd.f32 0.0, %v3461
  %v3463 = vpop.f32.mrb[0].mxu0
  %v3464 = vadd.f32 0.0, %v3463
  %3465 = vmatprep.mubr.f32.mxu0 0.0
  %3466 = vmatmul.mubr.f32.gmra.mrb[0].mxu0 %v2897
  %v3467 = vpop.f32.mrb[0].mxu0
  %v3468 = vadd.f32 0.0, %v3467
  %v3469 = vpop.f32.mrb[0].mxu0
  %v3470 = vadd.f32 0.0, %v3469
  %3471 = vmatprep.mubr.f32.mxu0 0.0
  %3472 = vmatmul.mubr.f32.gmra.mrb[0].mxu0 %v2899
  %v3473 = vpop.f32.mrb[0].mxu0
  %v3474 = vadd.f32 0.0, %v3473
  %v3475 = vpop.f32.mrb[0].mxu0
  %v3476 = vadd.f32 0.0, %v3475
  %3477 = vmatprep.mubr.f32.mxu0 0.0
  %3478 = vmatmul.mubr.f32.gmra.mrb[0].mxu0 %v2901
  %v3479 = vpop.f32.mrb[0].mxu0
  %v3480 = vadd.f32 0.0, %v3479
  %v3481 = vpop.f32.mrb[0].mxu0
  %v3482 = vadd.f32 0.0, %v3481
  %3483 = vmatprep.mubr.f32.mxu0 0.0
  %3484 = vmatmul.mubr.f32.gmra.mrb[0].mxu0 %v2903
  %v3485 = vpop.f32.mrb[0].mxu0
  %v3486 = vadd.f32 0.0, %v3485
  %v3487 = vpop.f32.mrb[0].mxu0
  %v3488 = vadd.f32 0.0, %v3487
  %3489 = vmatprep.mubr.f32.mxu0 0.0
  %3490 = vmatmul.mubr.f32.gmra.mrb[0].mxu0 %v2905
  %v3491 = vpop.f32.mrb[0].mxu0
  %v3492 = vadd.f32 0.0, %v3491
  %v3493 = vpop.f32.mrb[0].mxu0
  %v3494 = vadd.f32 0.0, %v3493
  %3495 = vmatprep.mubr.f32.mxu0 0.0
  %3496 = vmatmul.mubr.f32.gmra.mrb[0].mxu0 %v2907
  %v3497 = vpop.f32.mrb[0].mxu0
  %v3498 = vadd.f32 0.0, %v3497
  %v3499 = vpop.f32.mrb[0].mxu0
  %v3500 = vadd.f32 0.0, %v3499
  %3501 = vmatprep.mubr.f32.mxu0 0.0
  %3502 = vmatmul.mubr.f32.gmra.mrb[0].mxu0 %v2909
  %v3503 = vpop.f32.mrb[0].mxu0
  %v3504 = vadd.f32 0.0, %v3503
  %v3505 = vpop.f32.mrb[0].mxu0
  %v3506 = vadd.f32 0.0, %v3505
  %3507 = vmatprep.mubr.f32.mxu0 0.0
  %3508 = vmatmul.mubr.f32.gmra.mrb[0].mxu0 %v2911
  %v3509 = vpop.f32.mrb[0].mxu0
  %v3510 = vadd.f32 0.0, %v3509
  %v3511 = vpop.f32.mrb[0].mxu0
  %v3512 = vadd.f32 0.0, %v3511
  %3513 = vmatprep.mubr.f32.mxu0 0.0
  %3514 = vmatmul.mubr.f32.gmra.mrb[0].mxu0 %v2913
  %v3515 = vpop.f32.mrb[0].mxu0
  %v3516 = vadd.f32 0.0, %v3515
  %v3517 = vpop.f32.mrb[0].mxu0
  %v3518 = vadd.f32 0.0, %v3517
  %3519 = vmatprep.mubr.f32.mxu0 0.0
  %3520 = vmatmul.mubr.f32.gmra.mrb[0].mxu0 %v2915
  %v3521 = vpop.f32.mrb[0].mxu0
  %v3522 = vadd.f32 0.0, %v3521
  %v3523 = vpop.f32.mrb[0].mxu0
  %v3524 = vadd.f32 0.0, %v3523
  %3525 = vmatprep.mubr.f32.mxu0 0.0
  %3526 = vmatmul.mubr.f32.gmra.mrb[0].mxu0 %v2917
  %v3527 = vpop.f32.mrb[0].mxu0
  %v3528 = vadd.f32 0.0, %v3527
  %v3529 = vpop.f32.mrb[0].mxu0
  %v3530 = vadd.f32 0.0, %v3529
  %3531 = vmatprep.mubr.f32.mxu0 0.0
  %3532 = vmatmul.mubr.f32.gmra.mrb[0].mxu0 %v2919
  %v3533 = vpop.f32.mrb[0].mxu0
  %v3534 = vadd.f32 0.0, %v3533
  %v3535 = vpop.f32.mrb[0].mxu0
  %v3536 = vadd.f32 0.0, %v3535
  %3537 = vmatprep.mubr.f32.mxu0 0.0
  %3538 = vmatmul.mubr.f32.gmra.mrb[0].mxu0 %v2921
  %v3539 = vpop.f32.mrb[0].mxu0
  %v3540 = vadd.f32 0.0, %v3539
  %v3541 = vpop.f32.mrb[0].mxu0
  %v3542 = vadd.f32 0.0, %v3541
  %3543 = vmatprep.mubr.f32.mxu0 0.0
  %3544 = vmatmul.mubr.f32.gmra.mrb[0].mxu0 %v2923
  %v3545 = vpop.f32.mrb[0].mxu0
  %v3546 = vadd.f32 0.0, %v3545
  %v3547 = vpop.f32.mrb[0].mxu0
  %v3548 = vadd.f32 0.0, %v3547
  %3549 = vmatprep.mubr.f32.mxu0 0.0
  %3550 = vmatmul.mubr.f32.gmra.mrb[0].mxu0 %v2925
  %v3551 = vpop.f32.mrb[0].mxu0
  %v3552 = vadd.f32 0.0, %v3551
  %v3553 = vpop.f32.mrb[0].mxu0
  %v3554 = vadd.f32 0.0, %v3553
  %3555 = vmatprep.mubr.f32.mxu0 0.0
  %3556 = vmatmul.mubr.f32.gmra.mrb[0].mxu0 %v2927
  %v3557 = vpop.f32.mrb[0].mxu0
  %v3558 = vadd.f32 0.0, %v3557
  %v3559 = vpop.f32.mrb[0].mxu0
  %v3560 = vadd.f32 0.0, %v3559
  %3561 = vmatprep.mubr.f32.mxu0 0.0
  %3562 = vmatmul.mubr.f32.gmra.mrb[0].mxu0 %v2929
  %v3563 = vpop.f32.mrb[0].mxu0
  %v3564 = vadd.f32 0.0, %v3563
  %v3565 = vpop.f32.mrb[0].mxu0
  %v3566 = vadd.f32 0.0, %v3565
  %3567 = vmatprep.mubr.f32.mxu0 0.0
  %3568 = vmatmul.mubr.f32.gmra.mrb[0].mxu0 %v2931
  %v3569 = vpop.f32.mrb[0].mxu0
  %v3570 = vadd.f32 0.0, %v3569
  %v3571 = vpop.f32.mrb[0].mxu0
  %v3572 = vadd.f32 0.0, %v3571
  %3573 = vmatprep.mubr.f32.mxu0 0.0
  %3574 = vmatmul.mubr.f32.gmra.mrb[0].mxu0 %v2933
  %v3575 = vpop.f32.mrb[0].mxu0
  %v3576 = vadd.f32 0.0, %v3575
  %v3577 = vpop.f32.mrb[0].mxu0
  %v3578 = vadd.f32 0.0, %v3577
  %3579 = vmatprep.mubr.f32.mxu0 0.0
  %3580 = vmatmul.mubr.f32.gmra.mrb[0].mxu0 %v2935
  %v3581 = vpop.f32.mrb[0].mxu0
  %v3582 = vadd.f32 0.0, %v3581
  %v3583 = vpop.f32.mrb[0].mxu0
  %v3584 = vadd.f32 0.0, %v3583
  %3585 = vmatprep.mubr.f32.mxu0 0.0
  %3586 = vmatmul.mubr.f32.gmra.mrb[0].mxu0 %v2937
  %v3587 = vpop.f32.mrb[0].mxu0
  %v3588 = vadd.f32 0.0, %v3587
  %v3589 = vpop.f32.mrb[0].mxu0
  %v3590 = vadd.f32 0.0, %v3589
  %3591 = vmatprep.mubr.f32.mxu0 0.0
  %3592 = vmatmul.mubr.f32.gmra.mrb[0].mxu0 %v2939
  %v3593 = vpop.f32.mrb[0].mxu0
  %v3594 = vadd.f32 0.0, %v3593
  %v3595 = vpop.f32.mrb[0].mxu0
  %v3596 = vadd.f32 0.0, %v3595
  %3597 = vmatprep.mubr.f32.mxu0 0.0
  %3598 = vmatmul.mubr.f32.gmra.mrb[0].mxu0 %v2941
  %v3599 = vpop.f32.mrb[0].mxu0
  %v3600 = vadd.f32 0.0, %v3599
  %v3601 = vpop.f32.mrb[0].mxu0
  %v3602 = vadd.f32 0.0, %v3601
  %3603 = vmatprep.mubr.f32.mxu0 0.0
  %3604 = vmatmul.mubr.f32.gmra.mrb[0].mxu0 %v2943
  %v3605 = vpop.f32.mrb[0].mxu0
  %v3606 = vadd.f32 0.0, %v3605
  %v3607 = vpop.f32.mrb[0].mxu0
  %v3608 = vadd.f32 0.0, %v3607
  %3609 = vmatprep.mubr.f32.mxu0 0.0
  %3610 = vmatmul.mubr.f32.gmra.mrb[0].mxu0 %v2945
  %v3611 = vpop.f32.mrb[0].mxu0
  %v3612 = vadd.f32 0.0, %v3611
  %v3613 = vpop.f32.mrb[0].mxu0
  %v3614 = vadd.f32 0.0, %v3613
  %3615 = vmatprep.mubr.f32.mxu0 0.0
  %3616 = vmatmul.mubr.f32.gmra.mrb[0].mxu0 %v2947
  %v3617 = vpop.f32.mrb[0].mxu0
  %v3618 = vadd.f32 0.0, %v3617
  %v3619 = vpop.f32.mrb[0].mxu0
  %v3620 = vadd.f32 0.0, %v3619
  %3621 = vmatprep.mubr.f32.mxu0 0.0
  %3622 = vmatmul.mubr.f32.gmra.mrb[0].mxu0 %v2949
  %v3623 = vpop.f32.mrb[0].mxu0
  %v3624 = vadd.f32 0.0, %v3623
  %v3625 = vpop.f32.mrb[0].mxu0
  %v3626 = vadd.f32 0.0, %v3625
  %3627 = vmatprep.mubr.f32.mxu0 0.0
  %3628 = vmatmul.mubr.f32.gmra.mrb[0].mxu0 %v2951
  %v3629 = vpop.f32.mrb[0].mxu0
  %v3630 = vadd.f32 0.0, %v3629
  %v3631 = vpop.f32.mrb[0].mxu0
  %v3632 = vadd.f32 0.0, %v3631
  %3633 = vmatprep.mubr.f32.mxu0 0.0
  %3634 = vmatmul.mubr.f32.gmra.mrb[0].mxu0 %v2953
  %v3635 = vpop.f32.mrb[0].mxu0
  %v3636 = vadd.f32 0.0, %v3635
  %v3637 = vpop.f32.mrb[0].mxu0
  %v3638 = vadd.f32 0.0, %v3637
  %3639 = vmatprep.mubr.f32.mxu0 0.0
  %3640 = vmatmul.mubr.f32.gmra.mrb[0].mxu0 %v2955
  %v3641 = vpop.f32.mrb[0].mxu0
  %v3642 = vadd.f32 0.0, %v3641
  %v3643 = vpop.f32.mrb[0].mxu0
  %v3644 = vadd.f32 0.0, %v3643
  %3645 = vmatprep.mubr.f32.mxu0 0.0
  %3646 = vmatmul.mubr.f32.gmra.mrb[0].mxu0 %v2957
  %v3647 = vpop.f32.mrb[0].mxu0
  %v3648 = vadd.f32 0.0, %v3647
  %v3649 = vpop.f32.mrb[0].mxu0
  %v3650 = vadd.f32 0.0, %v3649
  %3651 = vmatprep.mubr.f32.mxu0 0.0
  %3652 = vmatmul.mubr.f32.gmra.mrb[0].mxu0 %v2959
  %v3653 = vpop.f32.mrb[0].mxu0
  %v3654 = vadd.f32 0.0, %v3653
  %v3655 = vpop.f32.mrb[0].mxu0
  %v3656 = vadd.f32 0.0, %v3655
  %3657 = vmatprep.mubr.f32.mxu0 0.0
  %3658 = vmatmul.mubr.f32.gmra.mrb[0].mxu0 %v2961
  %v3659 = vpop.f32.mrb[0].mxu0
  %v3660 = vadd.f32 0.0, %v3659
  %v3661 = vpop.f32.mrb[0].mxu0
  %v3662 = vadd.f32 0.0, %v3661
  %3663 = vmatprep.mubr.f32.mxu0 0.0
  %3664 = vmatmul.mubr.f32.gmra.mrb[0].mxu0 %v2963
  %v3665 = vpop.f32.mrb[0].mxu0
  %v3666 = vadd.f32 0.0, %v3665
  %v3667 = vpop.f32.mrb[0].mxu0
  %v3668 = vadd.f32 0.0, %v3667
  %3669 = vmatprep.mubr.f32.mxu0 0.0
  %3670 = vmatmul.mubr.f32.gmra.mrb[0].mxu0 %v2965
  %v3671 = vpop.f32.mrb[0].mxu0
  %v3672 = vadd.f32 0.0, %v3671
  %v3673 = vpop.f32.mrb[0].mxu0
  %v3674 = vadd.f32 0.0, %v3673
  %3675 = vmatprep.mubr.f32.mxu0 0.0
  %3676 = vmatmul.mubr.f32.gmra.mrb[0].mxu0 %v2967
  %v3677 = vpop.f32.mrb[0].mxu0
  %v3678 = vadd.f32 0.0, %v3677
  %v3679 = vpop.f32.mrb[0].mxu0
  %v3680 = vadd.f32 0.0, %v3679
  %3681 = vmatprep.mubr.f32.mxu0 0.0
  %3682 = vmatmul.mubr.f32.gmra.mrb[0].mxu0 %v2969
  %v3683 = vpop.f32.mrb[0].mxu0
  %v3684 = vadd.f32 0.0, %v3683
  %v3685 = vpop.f32.mrb[0].mxu0
  %v3686 = vadd.f32 0.0, %v3685
  %3687 = vmatprep.mubr.f32.mxu0 0.0
  %3688 = vmatmul.mubr.f32.gmra.mrb[0].mxu0 %v2971
  %v3689 = vpop.f32.mrb[0].mxu0
  %v3690 = vadd.f32 0.0, %v3689
  %v3691 = vpop.f32.mrb[0].mxu0
  %v3692 = vadd.f32 0.0, %v3691
  %3693 = vmatprep.mubr.f32.mxu0 0.0
  %3694 = vmatmul.mubr.f32.gmra.mrb[0].mxu0 %v2973
  %v3695 = vpop.f32.mrb[0].mxu0
  %v3696 = vadd.f32 0.0, %v3695
  %v3697 = vpop.f32.mrb[0].mxu0
  %v3698 = vadd.f32 0.0, %v3697
  %3699 = vmatprep.mubr.f32.mxu0 0.0
  %3700 = vmatmul.mubr.f32.gmra.mrb[0].mxu0 %v2975
  %v3701 = vpop.f32.mrb[0].mxu0
  %v3702 = vadd.f32 0.0, %v3701
  %v3703 = vpop.f32.mrb[0].mxu0
  %v3704 = vadd.f32 0.0, %v3703
  %3705 = vmatprep.mubr.f32.mxu0 0.0
  %3706 = vmatmul.mubr.f32.gmra.mrb[0].mxu0 %v2977
  %v3707 = vpop.f32.mrb[0].mxu0
  %v3708 = vadd.f32 0.0, %v3707
  %v3709 = vpop.f32.mrb[0].mxu0
  %v3710 = vadd.f32 0.0, %v3709
  %3711 = vmatprep.mubr.f32.mxu0 0.0
  %3712 = vmatmul.mubr.f32.gmra.mrb[0].mxu0 %v2979
  %v3713 = vpop.f32.mrb[0].mxu0
  %v3714 = vadd.f32 0.0, %v3713
  %v3715 = vpop.f32.mrb[0].mxu0
  %v3716 = vadd.f32 0.0, %v3715
  %3717 = vmatprep.mubr.f32.mxu0 0.0
  %3718 = vmatmul.mubr.f32.gmra.mrb[0].mxu0 %v2981
  %v3719 = vpop.f32.mrb[0].mxu0
  %v3720 = vadd.f32 0.0, %v3719
  %v3721 = vpop.f32.mrb[0].mxu0
  %v3722 = vadd.f32 0.0, %v3721
  %3723 = vmatprep.mubr.f32.mxu0 0.0
  %3724 = vmatmul.mubr.f32.gmra.mrb[0].mxu0 %v2983
  %v3725 = vpop.f32.mrb[0].mxu0
  %v3726 = vadd.f32 0.0, %v3725
  %v3727 = vpop.f32.mrb[0].mxu0
  %v3728 = vadd.f32 0.0, %v3727
  %3729 = vmatprep.mubr.f32.mxu0 0.0
  %3730 = vmatmul.mubr.f32.gmra.mrb[0].mxu0 %v2985
  %v3731 = vpop.f32.mrb[0].mxu0
  %v3732 = vadd.f32 0.0, %v3731
  %v3733 = vpop.f32.mrb[0].mxu0
  %v3734 = vadd.f32 0.0, %v3733
  %3735 = vmatprep.mubr.f32.mxu0 0.0
  %3736 = vmatmul.mubr.f32.gmra.mrb[0].mxu0 %v2987
  %v3737 = vpop.f32.mrb[0].mxu0
  %v3738 = vadd.f32 0.0, %v3737
  %v3739 = vpop.f32.mrb[0].mxu0
  %v3740 = vadd.f32 0.0, %v3739
  %3741 = vmatprep.mubr.f32.mxu0 0.0
  %3742 = vmatmul.mubr.f32.gmra.mrb[0].mxu0 %v2989
  %v3743 = vpop.f32.mrb[0].mxu0
  %v3744 = vadd.f32 0.0, %v3743
  %v3745 = vpop.f32.mrb[0].mxu0
  %v3746 = vadd.f32 0.0, %v3745
  %3747 = vmatprep.mubr.f32.mxu0 0.0
  %3748 = vmatmul.mubr.f32.gmra.mrb[0].mxu0 %v2991
  %v3749 = vpop.f32.mrb[0].mxu0
  %v3750 = vadd.f32 0.0, %v3749
  %v3751 = vpop.f32.mrb[0].mxu0
  %v3752 = vadd.f32 0.0, %v3751
  %3753 = vmatprep.mubr.f32.mxu0 0.0
  %3754 = vmatmul.mubr.f32.gmra.mrb[0].mxu0 %v2993
  %v3755 = vpop.f32.mrb[0].mxu0
  %v3756 = vadd.f32 0.0, %v3755
  %v3757 = vpop.f32.mrb[0].mxu0
  %v3758 = vadd.f32 0.0, %v3757
  %3759 = vmatprep.mubr.f32.mxu0 0.0
  %3760 = vmatmul.mubr.f32.gmra.mrb[0].mxu0 %v3091
  %v3761 = vpop.f32.mrb[0].mxu0
  %v3762 = vadd.f32 0.0, %v3761
  %v3763 = vpop.f32.mrb[0].mxu0
  %v3764 = vadd.f32 0.0, %v3763
  %3765 = vdwg.mxu0
  %v3766 = vadd.f32 %v2228, %v3192
  %v3767 = vadd.f32 %v2230, %v3194
  %v3768 = vadd.f32 %v2234, %v3198
  %v3769 = vadd.f32 %v2236, %v3200
  %v3770 = vadd.f32 %v2240, %v3204
  %v3771 = vadd.f32 %v2242, %v3206
  %v3772 = vadd.f32 %v2246, %v3210
  %v3773 = vadd.f32 %v2248, %v3212
  %v3774 = vadd.f32 %v2252, %v3216
  %v3775 = vadd.f32 %v2254, %v3218
  %v3776 = vadd.f32 %v2258, %v3222
  %v3777 = vadd.f32 %v2260, %v3224
  %v3778 = vadd.f32 %v2264, %v3228
  %v3779 = vadd.f32 %v2266, %v3230
  %v3780 = vadd.f32 %v2270, %v3234
  %v3781 = vadd.f32 %v2272, %v3236
  %v3782 = vadd.f32 %v2276, %v3240
  %v3783 = vadd.f32 %v2278, %v3242
  %v3784 = vadd.f32 %v2282, %v3246
  %v3785 = vadd.f32 %v2284, %v3248
  %v3786 = vadd.f32 %v2288, %v3252
  %v3787 = vadd.f32 %v2290, %v3254
  %v3788 = vadd.f32 %v2294, %v3258
  %v3789 = vadd.f32 %v2296, %v3260
  %v3790 = vadd.f32 %v2300, %v3264
  %v3791 = vadd.f32 %v2302, %v3266
  %v3792 = vadd.f32 %v2306, %v3270
  %v3793 = vadd.f32 %v2308, %v3272
  %v3794 = vadd.f32 %v2312, %v3276
  %v3795 = vadd.f32 %v2314, %v3278
  %v3796 = vadd.f32 %v2318, %v3282
  %v3797 = vadd.f32 %v2320, %v3284
  %v3798 = vadd.f32 %v2324, %v3288
  %v3799 = vadd.f32 %v2326, %v3290
  %v3800 = vadd.f32 %v2330, %v3294
  %v3801 = vadd.f32 %v2332, %v3296
  %v3802 = vadd.f32 %v2336, %v3300
  %v3803 = vadd.f32 %v2338, %v3302
  %v3804 = vadd.f32 %v2342, %v3306
  %v3805 = vadd.f32 %v2344, %v3308
  %v3806 = vadd.f32 %v2348, %v3312
  %v3807 = vadd.f32 %v2350, %v3314
  %v3808 = vadd.f32 %v2354, %v3318
  %v3809 = vadd.f32 %v2356, %v3320
  %v3810 = vadd.f32 %v2360, %v3324
  %v3811 = vadd.f32 %v2362, %v3326
  %v3812 = vadd.f32 %v2366, %v3330
  %v3813 = vadd.f32 %v2368, %v3332
  %v3814 = vadd.f32 %v2372, %v3336
  %v3815 = vadd.f32 %v2374, %v3338
  %v3816 = vadd.f32 %v2378, %v3342
  %v3817 = vadd.f32 %v2380, %v3344
  %v3818 = vadd.f32 %v2384, %v3348
  %v3819 = vadd.f32 %v2386, %v3350
  %v3820 = vadd.f32 %v2390, %v3354
  %v3821 = vadd.f32 %v2392, %v3356
  %v3822 = vadd.f32 %v2396, %v3360
  %v3823 = vadd.f32 %v2398, %v3362
  %v3824 = vadd.f32 %v2402, %v3366
  %v3825 = vadd.f32 %v2404, %v3368
  %v3826 = vadd.f32 %v2408, %v3372
  %v3827 = vadd.f32 %v2410, %v3374
  %v3828 = vadd.f32 %v2414, %v3378
  %v3829 = vadd.f32 %v2416, %v3380
  %v3830 = vadd.f32 %v2420, %v3384
  %v3831 = vadd.f32 %v2422, %v3386
  %v3832 = vadd.f32 %v2426, %v3390
  %v3833 = vadd.f32 %v2428, %v3392
  %v3834 = vadd.f32 %v2432, %v3396
  %v3835 = vadd.f32 %v2434, %v3398
  %v3836 = vadd.f32 %v2438, %v3402
  %v3837 = vadd.f32 %v2440, %v3404
  %v3838 = vadd.f32 %v2444, %v3408
  %v3839 = vadd.f32 %v2446, %v3410
  %v3840 = vadd.f32 %v2450, %v3414
  %v3841 = vadd.f32 %v2452, %v3416
  %v3842 = vadd.f32 %v2456, %v3420
  %v3843 = vadd.f32 %v2458, %v3422
  %v3844 = vadd.f32 %v2462, %v3426
  %v3845 = vadd.f32 %v2464, %v3428
  %v3846 = vadd.f32 %v2468, %v3432
  %v3847 = vadd.f32 %v2470, %v3434
  %v3848 = vadd.f32 %v2474, %v3438
  %v3849 = vadd.f32 %v2476, %v3440
  %v3850 = vadd.f32 %v2480, %v3444
  %v3851 = vadd.f32 %v2482, %v3446
  %v3852 = vadd.f32 %v2486, %v3450
  %v3853 = vadd.f32 %v2488, %v3452
  %v3854 = vadd.f32 %v2492, %v3456
  %v3855 = vadd.f32 %v2494, %v3458
  %v3856 = vadd.f32 %v2498, %v3462
  %v3857 = vadd.f32 %v2500, %v3464
  %v3858 = vadd.f32 %v2504, %v3468
  %v3859 = vadd.f32 %v2506, %v3470
  %v3860 = vadd.f32 %v2510, %v3474
  %v3861 = vadd.f32 %v2512, %v3476
  %v3862 = vadd.f32 %v2516, %v3480
  %v3863 = vadd.f32 %v2518, %v3482
  %v3864 = vadd.f32 %v2522, %v3486
  %v3865 = vadd.f32 %v2524, %v3488
  %v3866 = vadd.f32 %v2528, %v3492
  %v3867 = vadd.f32 %v2530, %v3494
  %v3868 = vadd.f32 %v2534, %v3498
  %v3869 = vadd.f32 %v2536, %v3500
  %v3870 = vadd.f32 %v2540, %v3504
  %v3871 = vadd.f32 %v2542, %v3506
  %v3872 = vadd.f32 %v2546, %v3510
  %v3873 = vadd.f32 %v2548, %v3512
  %v3874 = vadd.f32 %v2552, %v3516
  %v3875 = vadd.f32 %v2554, %v3518
  %v3876 = vadd.f32 %v2558, %v3522
  %v3877 = vadd.f32 %v2560, %v3524
  %v3878 = vadd.f32 %v2564, %v3528
  %v3879 = vadd.f32 %v2566, %v3530
  %v3880 = vadd.f32 %v2570, %v3534
  %v3881 = vadd.f32 %v2572, %v3536
  %v3882 = vadd.f32 %v2576, %v3540
  %v3883 = vadd.f32 %v2578, %v3542
  %v3884 = vadd.f32 %v2582, %v3546
  %v3885 = vadd.f32 %v2584, %v3548
  %v3886 = vadd.f32 %v2588, %v3552
  %v3887 = vadd.f32 %v2590, %v3554
  %v3888 = vadd.f32 %v2594, %v3558
  %v3889 = vadd.f32 %v2596, %v3560
  %v3890 = vadd.f32 %v2600, %v3564
  %v3891 = vadd.f32 %v2602, %v3566
  %v3892 = vadd.f32 %v2606, %v3570
  %v3893 = vadd.f32 %v2608, %v3572
  %v3894 = vadd.f32 %v2612, %v3576
  %v3895 = vadd.f32 %v2614, %v3578
  %v3896 = vadd.f32 %v2618, %v3582
  %v3897 = vadd.f32 %v2620, %v3584
  %v3898 = vadd.f32 %v2624, %v3588
  %v3899 = vadd.f32 %v2626, %v3590
  %v3900 = vadd.f32 %v2630, %v3594
  %v3901 = vadd.f32 %v2632, %v3596
  %v3902 = vadd.f32 %v2636, %v3600
  %v3903 = vadd.f32 %v2638, %v3602
  %v3904 = vadd.f32 %v2642, %v3606
  %v3905 = vadd.f32 %v2644, %v3608
  %v3906 = vadd.f32 %v2648, %v3612
  %v3907 = vadd.f32 %v2650, %v3614
  %v3908 = vadd.f32 %v2654, %v3618
  %v3909 = vadd.f32 %v2656, %v3620
  %v3910 = vadd.f32 %v2660, %v3624
  %v3911 = vadd.f32 %v2662, %v3626
  %v3912 = vadd.f32 %v2666, %v3630
  %v3913 = vadd.f32 %v2668, %v3632
  %v3914 = vadd.f32 %v2672, %v3636
  %v3915 = vadd.f32 %v2674, %v3638
  %v3916 = vadd.f32 %v2678, %v3642
  %v3917 = vadd.f32 %v2680, %v3644
  %v3918 = vadd.f32 %v2684, %v3648
  %v3919 = vadd.f32 %v2686, %v3650
  %v3920 = vadd.f32 %v2690, %v3654
  %v3921 = vadd.f32 %v2692, %v3656
  %v3922 = vadd.f32 %v2696, %v3660
  %v3923 = vadd.f32 %v2698, %v3662
  %v3924 = vadd.f32 %v2702, %v3666
  %v3925 = vadd.f32 %v2704, %v3668
  %v3926 = vadd.f32 %v2708, %v3672
  %v3927 = vadd.f32 %v2710, %v3674
  %v3928 = vadd.f32 %v2714, %v3678
  %v3929 = vadd.f32 %v2716, %v3680
  %v3930 = vadd.f32 %v2720, %v3684
  %v3931 = vadd.f32 %v2722, %v3686
  %v3932 = vadd.f32 %v2726, %v3690
  %v3933 = vadd.f32 %v2728, %v3692
  %v3934 = vadd.f32 %v2732, %v3696
  %v3935 = vadd.f32 %v2734, %v3698
  %v3936 = vadd.f32 %v2738, %v3702
  %v3937 = vadd.f32 %v2740, %v3704
  %v3938 = vadd.f32 %v2744, %v3708
  %v3939 = vadd.f32 %v2746, %v3710
  %v3940 = vadd.f32 %v2750, %v3714
  %v3941 = vadd.f32 %v2752, %v3716
  %v3942 = vadd.f32 %v2756, %v3720
  %v3943 = vadd.f32 %v2758, %v3722
  %v3944 = vadd.f32 %v2762, %v3726
  %v3945 = vadd.f32 %v2764, %v3728
  %v3946 = vadd.f32 %v2768, %v3732
  %v3947 = vadd.f32 %v2770, %v3734
  %v3948 = vadd.f32 %v2774, %v3738
  %v3949 = vadd.f32 %v2776, %v3740
  %v3950 = vadd.f32 %v2780, %v3744
  %v3951 = vadd.f32 %v2782, %v3746
  %v3952 = vadd.f32 %v2786, %v3750
  %v3953 = vadd.f32 %v2788, %v3752
  %v3954 = vadd.f32 %v2792, %v3756
  %v3955 = vadd.f32 %v2794, %v3758
  %v3956 = vadd.f32 %v2798, %v3762
  %v3957 = vadd.f32 %v2800, %v3764
  %v3958 = vld [vmem:[%s4] sm:$0x3]
  %v3960 = vlaneseq
  %v3961 = vshrl.u32 %v3960, 7
  %v3962 = vsub.s32 0, %v3961
  %v3963 = vrot.slane %v3958, %v3962
  %v3964 = vlaneseq
  %v3965 = vshrl.u32 %v3964, 7
  %v3966 = vsub.s32 1, %v3965
  %v3967 = vrot.slane %v3958, %v3966
  %v3970 = vadd.f32 %v3766, %v3963
  %v3971 = vadd.f32 %v3767, %v3967
  %v3972 = vadd.f32 %v3768, %v3963
  %v3973 = vadd.f32 %v3769, %v3967
  %v3974 = vadd.f32 %v3770, %v3963
  %v3975 = vadd.f32 %v3771, %v3967
  %v3976 = vadd.f32 %v3772, %v3963
  %v3977 = vadd.f32 %v3773, %v3967
  %v3978 = vadd.f32 %v3774, %v3963
  %v3979 = vadd.f32 %v3775, %v3967
  %v3980 = vadd.f32 %v3776, %v3963
  %v3981 = vadd.f32 %v3777, %v3967
  %v3982 = vadd.f32 %v3778, %v3963
  %v3983 = vadd.f32 %v3779, %v3967
  %v3984 = vadd.f32 %v3780, %v3963
  %v3985 = vadd.f32 %v3781, %v3967
  %v3986 = vadd.f32 %v3782, %v3963
  %v3987 = vadd.f32 %v3783, %v3967
  %v3988 = vadd.f32 %v3784, %v3963
  %v3989 = vadd.f32 %v3785, %v3967
  %v3990 = vadd.f32 %v3786, %v3963
  %v3991 = vadd.f32 %v3787, %v3967
  %v3992 = vadd.f32 %v3788, %v3963
  %v3993 = vadd.f32 %v3789, %v3967
  %v3994 = vadd.f32 %v3790, %v3963
  %v3995 = vadd.f32 %v3791, %v3967
  %v3996 = vadd.f32 %v3792, %v3963
  %v3997 = vadd.f32 %v3793, %v3967
  %v3998 = vadd.f32 %v3794, %v3963
  %v3999 = vadd.f32 %v3795, %v3967
  %v4000 = vadd.f32 %v3796, %v3963
  %v4001 = vadd.f32 %v3797, %v3967
  %v4002 = vadd.f32 %v3798, %v3963
  %v4003 = vadd.f32 %v3799, %v3967
  %v4004 = vadd.f32 %v3800, %v3963
  %v4005 = vadd.f32 %v3801, %v3967
  %v4006 = vadd.f32 %v3802, %v3963
  %v4007 = vadd.f32 %v3803, %v3967
  %v4008 = vadd.f32 %v3804, %v3963
  %v4009 = vadd.f32 %v3805, %v3967
  %v4010 = vadd.f32 %v3806, %v3963
  %v4011 = vadd.f32 %v3807, %v3967
  %v4012 = vadd.f32 %v3808, %v3963
  %v4013 = vadd.f32 %v3809, %v3967
  %v4014 = vadd.f32 %v3810, %v3963
  %v4015 = vadd.f32 %v3811, %v3967
  %v4016 = vadd.f32 %v3812, %v3963
  %v4017 = vadd.f32 %v3813, %v3967
  %v4018 = vadd.f32 %v3814, %v3963
  %v4019 = vadd.f32 %v3815, %v3967
  %v4020 = vadd.f32 %v3816, %v3963
  %v4021 = vadd.f32 %v3817, %v3967
  %v4022 = vadd.f32 %v3818, %v3963
  %v4023 = vadd.f32 %v3819, %v3967
  %v4024 = vadd.f32 %v3820, %v3963
  %v4025 = vadd.f32 %v3821, %v3967
  %v4026 = vadd.f32 %v3822, %v3963
  %v4027 = vadd.f32 %v3823, %v3967
  %v4028 = vadd.f32 %v3824, %v3963
  %v4029 = vadd.f32 %v3825, %v3967
  %v4030 = vadd.f32 %v3826, %v3963
  %v4031 = vadd.f32 %v3827, %v3967
  %v4032 = vadd.f32 %v3828, %v3963
  %v4033 = vadd.f32 %v3829, %v3967
  %v4034 = vadd.f32 %v3830, %v3963
  %v4035 = vadd.f32 %v3831, %v3967
  %v4036 = vadd.f32 %v3832, %v3963
  %v4037 = vadd.f32 %v3833, %v3967
  %v4038 = vadd.f32 %v3834, %v3963
  %v4039 = vadd.f32 %v3835, %v3967
  %v4040 = vadd.f32 %v3836, %v3963
  %v4041 = vadd.f32 %v3837, %v3967
  %v4042 = vadd.f32 %v3838, %v3963
  %v4043 = vadd.f32 %v3839, %v3967
  %v4044 = vadd.f32 %v3840, %v3963
  %v4045 = vadd.f32 %v3841, %v3967
  %v4046 = vadd.f32 %v3842, %v3963
  %v4047 = vadd.f32 %v3843, %v3967
  %v4048 = vadd.f32 %v3844, %v3963
  %v4049 = vadd.f32 %v3845, %v3967
  %v4050 = vadd.f32 %v3846, %v3963
  %v4051 = vadd.f32 %v3847, %v3967
  %v4052 = vadd.f32 %v3848, %v3963
  %v4053 = vadd.f32 %v3849, %v3967
  %v4054 = vadd.f32 %v3850, %v3963
  %v4055 = vadd.f32 %v3851, %v3967
  %v4056 = vadd.f32 %v3852, %v3963
  %v4057 = vadd.f32 %v3853, %v3967
  %v4058 = vadd.f32 %v3854, %v3963
  %v4059 = vadd.f32 %v3855, %v3967
  %v4060 = vadd.f32 %v3856, %v3963
  %v4061 = vadd.f32 %v3857, %v3967
  %v4062 = vadd.f32 %v3858, %v3963
  %v4063 = vadd.f32 %v3859, %v3967
  %v4064 = vadd.f32 %v3860, %v3963
  %v4065 = vadd.f32 %v3861, %v3967
  %v4066 = vadd.f32 %v3862, %v3963
  %v4067 = vadd.f32 %v3863, %v3967
  %v4068 = vadd.f32 %v3864, %v3963
  %v4069 = vadd.f32 %v3865, %v3967
  %v4070 = vadd.f32 %v3866, %v3963
  %v4071 = vadd.f32 %v3867, %v3967
  %v4072 = vadd.f32 %v3868, %v3963
  %v4073 = vadd.f32 %v3869, %v3967
  %v4074 = vadd.f32 %v3870, %v3963
  %v4075 = vadd.f32 %v3871, %v3967
  %v4076 = vadd.f32 %v3872, %v3963
  %v4077 = vadd.f32 %v3873, %v3967
  %v4078 = vadd.f32 %v3874, %v3963
  %v4079 = vadd.f32 %v3875, %v3967
  %v4080 = vadd.f32 %v3876, %v3963
  %v4081 = vadd.f32 %v3877, %v3967
  %v4082 = vadd.f32 %v3878, %v3963
  %v4083 = vadd.f32 %v3879, %v3967
  %v4084 = vadd.f32 %v3880, %v3963
  %v4085 = vadd.f32 %v3881, %v3967
  %v4086 = vadd.f32 %v3882, %v3963
  %v4087 = vadd.f32 %v3883, %v3967
  %v4088 = vadd.f32 %v3884, %v3963
  %v4089 = vadd.f32 %v3885, %v3967
  %v4090 = vadd.f32 %v3886, %v3963
  %v4091 = vadd.f32 %v3887, %v3967
  %v4092 = vadd.f32 %v3888, %v3963
  %v4093 = vadd.f32 %v3889, %v3967
  %v4094 = vadd.f32 %v3890, %v3963
  %v4095 = vadd.f32 %v3891, %v3967
  %v4096 = vadd.f32 %v3892, %v3963
  %v4097 = vadd.f32 %v3893, %v3967
  %v4098 = vadd.f32 %v3894, %v3963
  %v4099 = vadd.f32 %v3895, %v3967
  %v4100 = vadd.f32 %v3896, %v3963
  %v4101 = vadd.f32 %v3897, %v3967
  %v4102 = vadd.f32 %v3898, %v3963
  %v4103 = vadd.f32 %v3899, %v3967
  %v4104 = vadd.f32 %v3900, %v3963
  %v4105 = vadd.f32 %v3901, %v3967
  %v4106 = vadd.f32 %v3902, %v3963
  %v4107 = vadd.f32 %v3903, %v3967
  %v4108 = vadd.f32 %v3904, %v3963
  %v4109 = vadd.f32 %v3905, %v3967
  %v4110 = vadd.f32 %v3906, %v3963
  %v4111 = vadd.f32 %v3907, %v3967
  %v4112 = vadd.f32 %v3908, %v3963
  %v4113 = vadd.f32 %v3909, %v3967
  %v4114 = vadd.f32 %v3910, %v3963
  %v4115 = vadd.f32 %v3911, %v3967
  %v4116 = vadd.f32 %v3912, %v3963
  %v4117 = vadd.f32 %v3913, %v3967
  %v4118 = vadd.f32 %v3914, %v3963
  %v4119 = vadd.f32 %v3915, %v3967
  %v4120 = vadd.f32 %v3916, %v3963
  %v4121 = vadd.f32 %v3917, %v3967
  %v4122 = vadd.f32 %v3918, %v3963
  %v4123 = vadd.f32 %v3919, %v3967
  %v4124 = vadd.f32 %v3920, %v3963
  %v4125 = vadd.f32 %v3921, %v3967
  %v4126 = vadd.f32 %v3922, %v3963
  %v4127 = vadd.f32 %v3923, %v3967
  %v4128 = vadd.f32 %v3924, %v3963
  %v4129 = vadd.f32 %v3925, %v3967
  %v4130 = vadd.f32 %v3926, %v3963
  %v4131 = vadd.f32 %v3927, %v3967
  %v4132 = vadd.f32 %v3928, %v3963
  %v4133 = vadd.f32 %v3929, %v3967
  %v4134 = vadd.f32 %v3930, %v3963
  %v4135 = vadd.f32 %v3931, %v3967
  %v4136 = vadd.f32 %v3932, %v3963
  %v4137 = vadd.f32 %v3933, %v3967
  %v4138 = vadd.f32 %v3934, %v3963
  %v4139 = vadd.f32 %v3935, %v3967
  %v4140 = vadd.f32 %v3936, %v3963
  %v4141 = vadd.f32 %v3937, %v3967
  %v4142 = vadd.f32 %v3938, %v3963
  %v4143 = vadd.f32 %v3939, %v3967
  %v4144 = vadd.f32 %v3940, %v3963
  %v4145 = vadd.f32 %v3941, %v3967
  %v4146 = vadd.f32 %v3942, %v3963
  %v4147 = vadd.f32 %v3943, %v3967
  %v4148 = vadd.f32 %v3944, %v3963
  %v4149 = vadd.f32 %v3945, %v3967
  %v4150 = vadd.f32 %v3946, %v3963
  %v4151 = vadd.f32 %v3947, %v3967
  %v4152 = vadd.f32 %v3948, %v3963
  %v4153 = vadd.f32 %v3949, %v3967
  %v4154 = vadd.f32 %v3950, %v3963
  %v4155 = vadd.f32 %v3951, %v3967
  %v4156 = vadd.f32 %v3952, %v3963
  %v4157 = vadd.f32 %v3953, %v3967
  %v4158 = vadd.f32 %v3954, %v3963
  %v4159 = vadd.f32 %v3955, %v3967
  %v4160 = vadd.f32 %v3956, %v3963
  %v4161 = vadd.f32 %v3957, %v3967
  %v4162 = vmax.f32 %v3970, 0.0
  %v4163 = vmax.f32 %v3971, 0.0
  %v4164 = vmax.f32 %v3972, 0.0
  %v4165 = vmax.f32 %v3973, 0.0
  %v4166 = vmax.f32 %v3974, 0.0
  %v4167 = vmax.f32 %v3975, 0.0
  %v4168 = vmax.f32 %v3976, 0.0
  %v4169 = vmax.f32 %v3977, 0.0
  %v4170 = vmax.f32 %v3978, 0.0
  %v4171 = vmax.f32 %v3979, 0.0
  %v4172 = vmax.f32 %v3980, 0.0
  %v4173 = vmax.f32 %v3981, 0.0
  %v4174 = vmax.f32 %v3982, 0.0
  %v4175 = vmax.f32 %v3983, 0.0
  %v4176 = vmax.f32 %v3984, 0.0
  %v4177 = vmax.f32 %v3985, 0.0
  %v4178 = vmax.f32 %v3986, 0.0
  %v4179 = vmax.f32 %v3987, 0.0
  %v4180 = vmax.f32 %v3988, 0.0
  %v4181 = vmax.f32 %v3989, 0.0
  %v4182 = vmax.f32 %v3990, 0.0
  %v4183 = vmax.f32 %v3991, 0.0
  %v4184 = vmax.f32 %v3992, 0.0
  %v4185 = vmax.f32 %v3993, 0.0
  %v4186 = vmax.f32 %v3994, 0.0
  %v4187 = vmax.f32 %v3995, 0.0
  %v4188 = vmax.f32 %v3996, 0.0
  %v4189 = vmax.f32 %v3997, 0.0
  %v4190 = vmax.f32 %v3998, 0.0
  %v4191 = vmax.f32 %v3999, 0.0
  %v4192 = vmax.f32 %v4000, 0.0
  %v4193 = vmax.f32 %v4001, 0.0
  %v4194 = vmax.f32 %v4002, 0.0
  %v4195 = vmax.f32 %v4003, 0.0
  %v4196 = vmax.f32 %v4004, 0.0
  %v4197 = vmax.f32 %v4005, 0.0
  %v4198 = vmax.f32 %v4006, 0.0
  %v4199 = vmax.f32 %v4007, 0.0
  %v4200 = vmax.f32 %v4008, 0.0
  %v4201 = vmax.f32 %v4009, 0.0
  %v4202 = vmax.f32 %v4010, 0.0
  %v4203 = vmax.f32 %v4011, 0.0
  %v4204 = vmax.f32 %v4012, 0.0
  %v4205 = vmax.f32 %v4013, 0.0
  %v4206 = vmax.f32 %v4014, 0.0
  %v4207 = vmax.f32 %v4015, 0.0
  %v4208 = vmax.f32 %v4016, 0.0
  %v4209 = vmax.f32 %v4017, 0.0
  %v4210 = vmax.f32 %v4018, 0.0
  %v4211 = vmax.f32 %v4019, 0.0
  %v4212 = vmax.f32 %v4020, 0.0
  %v4213 = vmax.f32 %v4021, 0.0
  %v4214 = vmax.f32 %v4022, 0.0
  %v4215 = vmax.f32 %v4023, 0.0
  %v4216 = vmax.f32 %v4024, 0.0
  %v4217 = vmax.f32 %v4025, 0.0
  %v4218 = vmax.f32 %v4026, 0.0
  %v4219 = vmax.f32 %v4027, 0.0
  %v4220 = vmax.f32 %v4028, 0.0
  %v4221 = vmax.f32 %v4029, 0.0
  %v4222 = vmax.f32 %v4030, 0.0
  %v4223 = vmax.f32 %v4031, 0.0
  %v4224 = vmax.f32 %v4032, 0.0
  %v4225 = vmax.f32 %v4033, 0.0
  %v4226 = vmax.f32 %v4034, 0.0
  %v4227 = vmax.f32 %v4035, 0.0
  %v4228 = vmax.f32 %v4036, 0.0
  %v4229 = vmax.f32 %v4037, 0.0
  %v4230 = vmax.f32 %v4038, 0.0
  %v4231 = vmax.f32 %v4039, 0.0
  %v4232 = vmax.f32 %v4040, 0.0
  %v4233 = vmax.f32 %v4041, 0.0
  %v4234 = vmax.f32 %v4042, 0.0
  %v4235 = vmax.f32 %v4043, 0.0
  %v4236 = vmax.f32 %v4044, 0.0
  %v4237 = vmax.f32 %v4045, 0.0
  %v4238 = vmax.f32 %v4046, 0.0
  %v4239 = vmax.f32 %v4047, 0.0
  %v4240 = vmax.f32 %v4048, 0.0
  %v4241 = vmax.f32 %v4049, 0.0
  %v4242 = vmax.f32 %v4050, 0.0
  %v4243 = vmax.f32 %v4051, 0.0
  %v4244 = vmax.f32 %v4052, 0.0
  %v4245 = vmax.f32 %v4053, 0.0
  %v4246 = vmax.f32 %v4054, 0.0
  %v4247 = vmax.f32 %v4055, 0.0
  %v4248 = vmax.f32 %v4056, 0.0
  %v4249 = vmax.f32 %v4057, 0.0
  %v4250 = vmax.f32 %v4058, 0.0
  %v4251 = vmax.f32 %v4059, 0.0
  %v4252 = vmax.f32 %v4060, 0.0
  %v4253 = vmax.f32 %v4061, 0.0
  %v4254 = vmax.f32 %v4062, 0.0
  %v4255 = vmax.f32 %v4063, 0.0
  %v4256 = vmax.f32 %v4064, 0.0
  %v4257 = vmax.f32 %v4065, 0.0
  %v4258 = vmax.f32 %v4066, 0.0
  %v4259 = vmax.f32 %v4067, 0.0
  %v4260 = vmax.f32 %v4068, 0.0
  %v4261 = vmax.f32 %v4069, 0.0
  %v4262 = vmax.f32 %v4070, 0.0
  %v4263 = vmax.f32 %v4071, 0.0
  %v4264 = vmax.f32 %v4072, 0.0
  %v4265 = vmax.f32 %v4073, 0.0
  %v4266 = vmax.f32 %v4074, 0.0
  %v4267 = vmax.f32 %v4075, 0.0
  %v4268 = vmax.f32 %v4076, 0.0
  %v4269 = vmax.f32 %v4077, 0.0
  %v4270 = vmax.f32 %v4078, 0.0
  %v4271 = vmax.f32 %v4079, 0.0
  %v4272 = vmax.f32 %v4080, 0.0
  %v4273 = vmax.f32 %v4081, 0.0
  %v4274 = vmax.f32 %v4082, 0.0
  %v4275 = vmax.f32 %v4083, 0.0
  %v4276 = vmax.f32 %v4084, 0.0
  %v4277 = vmax.f32 %v4085, 0.0
  %v4278 = vmax.f32 %v4086, 0.0
  %v4279 = vmax.f32 %v4087, 0.0
  %v4280 = vmax.f32 %v4088, 0.0
  %v4281 = vmax.f32 %v4089, 0.0
  %v4282 = vmax.f32 %v4090, 0.0
  %v4283 = vmax.f32 %v4091, 0.0
  %v4284 = vmax.f32 %v4092, 0.0
  %v4285 = vmax.f32 %v4093, 0.0
  %v4286 = vmax.f32 %v4094, 0.0
  %v4287 = vmax.f32 %v4095, 0.0
  %v4288 = vmax.f32 %v4096, 0.0
  %v4289 = vmax.f32 %v4097, 0.0
  %v4290 = vmax.f32 %v4098, 0.0
  %v4291 = vmax.f32 %v4099, 0.0
  %v4292 = vmax.f32 %v4100, 0.0
  %v4293 = vmax.f32 %v4101, 0.0
  %v4294 = vmax.f32 %v4102, 0.0
  %v4295 = vmax.f32 %v4103, 0.0
  %v4296 = vmax.f32 %v4104, 0.0
  %v4297 = vmax.f32 %v4105, 0.0
  %v4298 = vmax.f32 %v4106, 0.0
  %v4299 = vmax.f32 %v4107, 0.0
  %v4300 = vmax.f32 %v4108, 0.0
  %v4301 = vmax.f32 %v4109, 0.0
  %v4302 = vmax.f32 %v4110, 0.0
  %v4303 = vmax.f32 %v4111, 0.0
  %v4304 = vmax.f32 %v4112, 0.0
  %v4305 = vmax.f32 %v4113, 0.0
  %v4306 = vmax.f32 %v4114, 0.0
  %v4307 = vmax.f32 %v4115, 0.0
  %v4308 = vmax.f32 %v4116, 0.0
  %v4309 = vmax.f32 %v4117, 0.0
  %v4310 = vmax.f32 %v4118, 0.0
  %v4311 = vmax.f32 %v4119, 0.0
  %v4312 = vmax.f32 %v4120, 0.0
  %v4313 = vmax.f32 %v4121, 0.0
  %v4314 = vmax.f32 %v4122, 0.0
  %v4315 = vmax.f32 %v4123, 0.0
  %v4316 = vmax.f32 %v4124, 0.0
  %v4317 = vmax.f32 %v4125, 0.0
  %v4318 = vmax.f32 %v4126, 0.0
  %v4319 = vmax.f32 %v4127, 0.0
  %v4320 = vmax.f32 %v4128, 0.0
  %v4321 = vmax.f32 %v4129, 0.0
  %v4322 = vmax.f32 %v4130, 0.0
  %v4323 = vmax.f32 %v4131, 0.0
  %v4324 = vmax.f32 %v4132, 0.0
  %v4325 = vmax.f32 %v4133, 0.0
  %v4326 = vmax.f32 %v4134, 0.0
  %v4327 = vmax.f32 %v4135, 0.0
  %v4328 = vmax.f32 %v4136, 0.0
  %v4329 = vmax.f32 %v4137, 0.0
  %v4330 = vmax.f32 %v4138, 0.0
  %v4331 = vmax.f32 %v4139, 0.0
  %v4332 = vmax.f32 %v4140, 0.0
  %v4333 = vmax.f32 %v4141, 0.0
  %v4334 = vmax.f32 %v4142, 0.0
  %v4335 = vmax.f32 %v4143, 0.0
  %v4336 = vmax.f32 %v4144, 0.0
  %v4337 = vmax.f32 %v4145, 0.0
  %v4338 = vmax.f32 %v4146, 0.0
  %v4339 = vmax.f32 %v4147, 0.0
  %v4340 = vmax.f32 %v4148, 0.0
  %v4341 = vmax.f32 %v4149, 0.0
  %v4342 = vmax.f32 %v4150, 0.0
  %v4343 = vmax.f32 %v4151, 0.0
  %v4344 = vmax.f32 %v4152, 0.0
  %v4345 = vmax.f32 %v4153, 0.0
  %v4346 = vmax.f32 %v4154, 0.0
  %v4347 = vmax.f32 %v4155, 0.0
  %v4348 = vmax.f32 %v4156, 0.0
  %v4349 = vmax.f32 %v4157, 0.0
  %v4350 = vmax.f32 %v4158, 0.0
  %v4351 = vmax.f32 %v4159, 0.0
  %v4352 = vmax.f32 %v4160, 0.0
  %v4353 = vmax.f32 %v4161, 0.0
  %v4354 = vld [vmem:[%s5] sm:$0xff]
  %v4355 = vld [vmem:[%s5 + $0x8] sm:$0xff]
  %v4356 = vld [vmem:[%s5 + $0x10] sm:$0xff]
  %v4357 = vld [vmem:[%s5 + $0x18] sm:$0xff]
  %v4358 = vld [vmem:[%s5 + $0x20] sm:$0xff]
  %v4359 = vld [vmem:[%s5 + $0x28] sm:$0xff]
  %v4360 = vld [vmem:[%s5 + $0x30] sm:$0xff]
  %v4361 = vld [vmem:[%s5 + $0x38] sm:$0xff]
  %v4362 = vld [vmem:[%s5 + $0x40] sm:$0xff]
  %v4363 = vld [vmem:[%s5 + $0x48] sm:$0xff]
  %v4364 = vld [vmem:[%s5 + $0x50] sm:$0xff]
  %v4365 = vld [vmem:[%s5 + $0x58] sm:$0xff]
  %v4366 = vld [vmem:[%s5 + $0x60] sm:$0xff]
  %v4367 = vld [vmem:[%s5 + $0x68] sm:$0xff]
  %v4368 = vld [vmem:[%s5 + $0x70] sm:$0xff]
  %v4369 = vld [vmem:[%s5 + $0x78] sm:$0xff]
  %v4370 = vld [vmem:[%s5 + $0x80] sm:$0xff]
  %v4371 = vld [vmem:[%s5 + $0x88] sm:$0xff]
  %v4372 = vld [vmem:[%s5 + $0x90] sm:$0xff]
  %v4373 = vld [vmem:[%s5 + $0x98] sm:$0xff]
  %v4374 = vld [vmem:[%s5 + $0xa0] sm:$0xff]
  %v4375 = vld [vmem:[%s5 + $0xa8] sm:$0xff]
  %v4376 = vld [vmem:[%s5 + $0xb0] sm:$0xff]
  %v4377 = vld [vmem:[%s5 + $0xb8] sm:$0xff]
  %v4378 = vmul.f32 %v4162, %v4354
  %v4379 = vmul.f32 %v4163, %v4355
  %v4380 = vmul.f32 %v4164, %v4356
  %v4381 = vmul.f32 %v4165, %v4357
  %v4382 = vmul.f32 %v4166, %v4358
  %v4383 = vmul.f32 %v4167, %v4359
  %v4384 = vmul.f32 %v4168, %v4360
  %v4385 = vmul.f32 %v4169, %v4361
  %v4386 = vmul.f32 %v4170, %v4362
  %v4387 = vmul.f32 %v4171, %v4363
  %v4388 = vmul.f32 %v4172, %v4364
  %v4389 = vmul.f32 %v4173, %v4365
  %v4390 = vmul.f32 %v4174, %v4366
  %v4391 = vmul.f32 %v4175, %v4367
  %v4392 = vmul.f32 %v4176, %v4368
  %v4393 = vmul.f32 %v4177, %v4369
  %v4394 = vmul.f32 %v4178, %v4370
  %v4395 = vmul.f32 %v4179, %v4371
  %v4396 = vmul.f32 %v4180, %v4372
  %v4397 = vmul.f32 %v4181, %v4373
  %v4398 = vmul.f32 %v4182, %v4374
  %v4399 = vmul.f32 %v4183, %v4375
  %v4400 = vmul.f32 %v4184, %v4376
  %v4401 = vmul.f32 %v4185, %v4377
  %v4402 = vmul.f32 %v4186, %v4354
  %v4403 = vmul.f32 %v4187, %v4355
  %v4404 = vmul.f32 %v4188, %v4356
  %v4405 = vmul.f32 %v4189, %v4357
  %v4406 = vmul.f32 %v4190, %v4358
  %v4407 = vmul.f32 %v4191, %v4359
  %v4408 = vmul.f32 %v4192, %v4360
  %v4409 = vmul.f32 %v4193, %v4361
  %v4410 = vmul.f32 %v4194, %v4362
  %v4411 = vmul.f32 %v4195, %v4363
  %v4412 = vmul.f32 %v4196, %v4364
  %v4413 = vmul.f32 %v4197, %v4365
  %v4414 = vmul.f32 %v4198, %v4366
  %v4415 = vmul.f32 %v4199, %v4367
  %v4416 = vmul.f32 %v4200, %v4368
  %v4417 = vmul.f32 %v4201, %v4369
  %v4418 = vmul.f32 %v4202, %v4370
  %v4419 = vmul.f32 %v4203, %v4371
  %v4420 = vmul.f32 %v4204, %v4372
  %v4421 = vmul.f32 %v4205, %v4373
  %v4422 = vmul.f32 %v4206, %v4374
  %v4423 = vmul.f32 %v4207, %v4375
  %v4424 = vmul.f32 %v4208, %v4376
  %v4425 = vmul.f32 %v4209, %v4377
  %v4426 = vmul.f32 %v4210, %v4354
  %v4427 = vmul.f32 %v4211, %v4355
  %v4428 = vmul.f32 %v4212, %v4356
  %v4429 = vmul.f32 %v4213, %v4357
  %v4430 = vmul.f32 %v4214, %v4358
  %v4431 = vmul.f32 %v4215, %v4359
  %v4432 = vmul.f32 %v4216, %v4360
  %v4433 = vmul.f32 %v4217, %v4361
  %v4434 = vmul.f32 %v4218, %v4362
  %v4435 = vmul.f32 %v4219, %v4363
  %v4436 = vmul.f32 %v4220, %v4364
  %v4437 = vmul.f32 %v4221, %v4365
  %v4438 = vmul.f32 %v4222, %v4366
  %v4439 = vmul.f32 %v4223, %v4367
  %v4440 = vmul.f32 %v4224, %v4368
  %v4441 = vmul.f32 %v4225, %v4369
  %v4442 = vmul.f32 %v4226, %v4370
  %v4443 = vmul.f32 %v4227, %v4371
  %v4444 = vmul.f32 %v4228, %v4372
  %v4445 = vmul.f32 %v4229, %v4373
  %v4446 = vmul.f32 %v4230, %v4374
  %v4447 = vmul.f32 %v4231, %v4375
  %v4448 = vmul.f32 %v4232, %v4376
  %v4449 = vmul.f32 %v4233, %v4377
  %v4450 = vmul.f32 %v4234, %v4354
  %v4451 = vmul.f32 %v4235, %v4355
  %v4452 = vmul.f32 %v4236, %v4356
  %v4453 = vmul.f32 %v4237, %v4357
  %v4454 = vmul.f32 %v4238, %v4358
  %v4455 = vmul.f32 %v4239, %v4359
  %v4456 = vmul.f32 %v4240, %v4360
  %v4457 = vmul.f32 %v4241, %v4361
  %v4458 = vmul.f32 %v4242, %v4362
  %v4459 = vmul.f32 %v4243, %v4363
  %v4460 = vmul.f32 %v4244, %v4364
  %v4461 = vmul.f32 %v4245, %v4365
  %v4462 = vmul.f32 %v4246, %v4366
  %v4463 = vmul.f32 %v4247, %v4367
  %v4464 = vmul.f32 %v4248, %v4368
  %v4465 = vmul.f32 %v4249, %v4369
  %v4466 = vmul.f32 %v4250, %v4370
  %v4467 = vmul.f32 %v4251, %v4371
  %v4468 = vmul.f32 %v4252, %v4372
  %v4469 = vmul.f32 %v4253, %v4373
  %v4470 = vmul.f32 %v4254, %v4374
  %v4471 = vmul.f32 %v4255, %v4375
  %v4472 = vmul.f32 %v4256, %v4376
  %v4473 = vmul.f32 %v4257, %v4377
  %v4474 = vmul.f32 %v4258, %v4354
  %v4475 = vmul.f32 %v4259, %v4355
  %v4476 = vmul.f32 %v4260, %v4356
  %v4477 = vmul.f32 %v4261, %v4357
  %v4478 = vmul.f32 %v4262, %v4358
  %v4479 = vmul.f32 %v4263, %v4359
  %v4480 = vmul.f32 %v4264, %v4360
  %v4481 = vmul.f32 %v4265, %v4361
  %v4482 = vmul.f32 %v4266, %v4362
  %v4483 = vmul.f32 %v4267, %v4363
  %v4484 = vmul.f32 %v4268, %v4364
  %v4485 = vmul.f32 %v4269, %v4365
  %v4486 = vmul.f32 %v4270, %v4366
  %v4487 = vmul.f32 %v4271, %v4367
  %v4488 = vmul.f32 %v4272, %v4368
  %v4489 = vmul.f32 %v4273, %v4369
  %v4490 = vmul.f32 %v4274, %v4370
  %v4491 = vmul.f32 %v4275, %v4371
  %v4492 = vmul.f32 %v4276, %v4372
  %v4493 = vmul.f32 %v4277, %v4373
  %v4494 = vmul.f32 %v4278, %v4374
  %v4495 = vmul.f32 %v4279, %v4375
  %v4496 = vmul.f32 %v4280, %v4376
  %v4497 = vmul.f32 %v4281, %v4377
  %v4498 = vmul.f32 %v4282, %v4354
  %v4499 = vmul.f32 %v4283, %v4355
  %v4500 = vmul.f32 %v4284, %v4356
  %v4501 = vmul.f32 %v4285, %v4357
  %v4502 = vmul.f32 %v4286, %v4358
  %v4503 = vmul.f32 %v4287, %v4359
  %v4504 = vmul.f32 %v4288, %v4360
  %v4505 = vmul.f32 %v4289, %v4361
  %v4506 = vmul.f32 %v4290, %v4362
  %v4507 = vmul.f32 %v4291, %v4363
  %v4508 = vmul.f32 %v4292, %v4364
  %v4509 = vmul.f32 %v4293, %v4365
  %v4510 = vmul.f32 %v4294, %v4366
  %v4511 = vmul.f32 %v4295, %v4367
  %v4512 = vmul.f32 %v4296, %v4368
  %v4513 = vmul.f32 %v4297, %v4369
  %v4514 = vmul.f32 %v4298, %v4370
  %v4515 = vmul.f32 %v4299, %v4371
  %v4516 = vmul.f32 %v4300, %v4372
  %v4517 = vmul.f32 %v4301, %v4373
  %v4518 = vmul.f32 %v4302, %v4374
  %v4519 = vmul.f32 %v4303, %v4375
  %v4520 = vmul.f32 %v4304, %v4376
  %v4521 = vmul.f32 %v4305, %v4377
  %v4522 = vmul.f32 %v4306, %v4354
  %v4523 = vmul.f32 %v4307, %v4355
  %v4524 = vmul.f32 %v4308, %v4356
  %v4525 = vmul.f32 %v4309, %v4357
  %v4526 = vmul.f32 %v4310, %v4358
  %v4527 = vmul.f32 %v4311, %v4359
  %v4528 = vmul.f32 %v4312, %v4360
  %v4529 = vmul.f32 %v4313, %v4361
  %v4530 = vmul.f32 %v4314, %v4362
  %v4531 = vmul.f32 %v4315, %v4363
  %v4532 = vmul.f32 %v4316, %v4364
  %v4533 = vmul.f32 %v4317, %v4365
  %v4534 = vmul.f32 %v4318, %v4366
  %v4535 = vmul.f32 %v4319, %v4367
  %v4536 = vmul.f32 %v4320, %v4368
  %v4537 = vmul.f32 %v4321, %v4369
  %v4538 = vmul.f32 %v4322, %v4370
  %v4539 = vmul.f32 %v4323, %v4371
  %v4540 = vmul.f32 %v4324, %v4372
  %v4541 = vmul.f32 %v4325, %v4373
  %v4542 = vmul.f32 %v4326, %v4374
  %v4543 = vmul.f32 %v4327, %v4375
  %v4544 = vmul.f32 %v4328, %v4376
  %v4545 = vmul.f32 %v4329, %v4377
  %v4546 = vmul.f32 %v4330, %v4354
  %v4547 = vmul.f32 %v4331, %v4355
  %v4548 = vmul.f32 %v4332, %v4356
  %v4549 = vmul.f32 %v4333, %v4357
  %v4550 = vmul.f32 %v4334, %v4358
  %v4551 = vmul.f32 %v4335, %v4359
  %v4552 = vmul.f32 %v4336, %v4360
  %v4553 = vmul.f32 %v4337, %v4361
  %v4554 = vmul.f32 %v4338, %v4362
  %v4555 = vmul.f32 %v4339, %v4363
  %v4556 = vmul.f32 %v4340, %v4364
  %v4557 = vmul.f32 %v4341, %v4365
  %v4558 = vmul.f32 %v4342, %v4366
  %v4559 = vmul.f32 %v4343, %v4367
  %v4560 = vmul.f32 %v4344, %v4368
  %v4561 = vmul.f32 %v4345, %v4369
  %v4562 = vmul.f32 %v4346, %v4370
  %v4563 = vmul.f32 %v4347, %v4371
  %v4564 = vmul.f32 %v4348, %v4372
  %v4565 = vmul.f32 %v4349, %v4373
  %v4566 = vmul.f32 %v4350, %v4374
  %v4567 = vmul.f32 %v4351, %v4375
  %v4568 = vmul.f32 %v4352, %v4376
  %v4569 = vmul.f32 %v4353, %v4377
  %v4570 = vadd.f32 %v4378, %v4380
  %v4571 = vadd.f32 %v4570, %v4382
  %v4572 = vadd.f32 %v4571, %v4384
  %v4573 = vadd.f32 %v4572, %v4386
  %v4574 = vadd.f32 %v4573, %v4388
  %v4575 = vadd.f32 %v4574, %v4390
  %v4576 = vadd.f32 %v4575, %v4392
  %v4577 = vadd.f32 %v4576, %v4394
  %v4578 = vadd.f32 %v4577, %v4396
  %v4579 = vadd.f32 %v4578, %v4398
  %v4580 = vadd.f32 %v4579, %v4400
  %v4581 = vrot.slane %v4580, 4
  %v4582 = vadd.f32 %v4580, %v4581
  %v4583 = vrot.slane %v4582, 2
  %v4584 = vadd.f32 %v4582, %v4583
  %v4585 = vrot.slane %v4584, 1
  %v4586 = vadd.f32 %v4584, %v4585
  %v4587 = vadd.f32 %v4379, %v4381
  %v4588 = vadd.f32 %v4587, %v4383
  %v4589 = vadd.f32 %v4588, %v4385
  %v4590 = vadd.f32 %v4589, %v4387
  %v4591 = vadd.f32 %v4590, %v4389
  %v4592 = vadd.f32 %v4591, %v4391
  %v4593 = vadd.f32 %v4592, %v4393
  %v4594 = vadd.f32 %v4593, %v4395
  %v4595 = vadd.f32 %v4594, %v4397
  %v4596 = vadd.f32 %v4595, %v4399
  %v4597 = vadd.f32 %v4596, %v4401
  %v4598 = vrot.slane %v4597, 4
  %v4599 = vadd.f32 %v4597, %v4598
  %v4600 = vrot.slane %v4599, 2
  %v4601 = vadd.f32 %v4599, %v4600
  %v4602 = vrot.slane %v4601, 1
  %v4603 = vadd.f32 %v4601, %v4602
  %v4604 = vadd.f32 %v4402, %v4404
  %v4605 = vadd.f32 %v4604, %v4406
  %v4606 = vadd.f32 %v4605, %v4408
  %v4607 = vadd.f32 %v4606, %v4410
  %v4608 = vadd.f32 %v4607, %v4412
  %v4609 = vadd.f32 %v4608, %v4414
  %v4610 = vadd.f32 %v4609, %v4416
  %v4611 = vadd.f32 %v4610, %v4418
  %v4612 = vadd.f32 %v4611, %v4420
  %v4613 = vadd.f32 %v4612, %v4422
  %v4614 = vadd.f32 %v4613, %v4424
  %v4615 = vrot.slane %v4614, 4
  %v4616 = vadd.f32 %v4614, %v4615
  %v4617 = vrot.slane %v4616, 2
  %v4618 = vadd.f32 %v4616, %v4617
  %v4619 = vrot.slane %v4618, 1
  %v4620 = vadd.f32 %v4618, %v4619
  %v4621 = vadd.f32 %v4403, %v4405
  %v4622 = vadd.f32 %v4621, %v4407
  %v4623 = vadd.f32 %v4622, %v4409
  %v4624 = vadd.f32 %v4623, %v4411
  %v4625 = vadd.f32 %v4624, %v4413
  %v4626 = vadd.f32 %v4625, %v4415
  %v4627 = vadd.f32 %v4626, %v4417
  %v4628 = vadd.f32 %v4627, %v4419
  %v4629 = vadd.f32 %v4628, %v4421
  %v4630 = vadd.f32 %v4629, %v4423
  %v4631 = vadd.f32 %v4630, %v4425
  %v4632 = vrot.slane %v4631, 4
  %v4633 = vadd.f32 %v4631, %v4632
  %v4634 = vrot.slane %v4633, 2
  %v4635 = vadd.f32 %v4633, %v4634
  %v4636 = vrot.slane %v4635, 1
  %v4637 = vadd.f32 %v4635, %v4636
  %v4638 = vadd.f32 %v4426, %v4428
  %v4639 = vadd.f32 %v4638, %v4430
  %v4640 = vadd.f32 %v4639, %v4432
  %v4641 = vadd.f32 %v4640, %v4434
  %v4642 = vadd.f32 %v4641, %v4436
  %v4643 = vadd.f32 %v4642, %v4438
  %v4644 = vadd.f32 %v4643, %v4440
  %v4645 = vadd.f32 %v4644, %v4442
  %v4646 = vadd.f32 %v4645, %v4444
  %v4647 = vadd.f32 %v4646, %v4446
  %v4648 = vadd.f32 %v4647, %v4448
  %v4649 = vrot.slane %v4648, 4
  %v4650 = vadd.f32 %v4648, %v4649
  %v4651 = vrot.slane %v4650, 2
  %v4652 = vadd.f32 %v4650, %v4651
  %v4653 = vrot.slane %v4652, 1
  %v4654 = vadd.f32 %v4652, %v4653
  %v4655 = vadd.f32 %v4427, %v4429
  %v4656 = vadd.f32 %v4655, %v4431
  %v4657 = vadd.f32 %v4656, %v4433
  %v4658 = vadd.f32 %v4657, %v4435
  %v4659 = vadd.f32 %v4658, %v4437
  %v4660 = vadd.f32 %v4659, %v4439
  %v4661 = vadd.f32 %v4660, %v4441
  %v4662 = vadd.f32 %v4661, %v4443
  %v4663 = vadd.f32 %v4662, %v4445
  %v4664 = vadd.f32 %v4663, %v4447
  %v4665 = vadd.f32 %v4664, %v4449
  %v4666 = vrot.slane %v4665, 4
  %v4667 = vadd.f32 %v4665, %v4666
  %v4668 = vrot.slane %v4667, 2
  %v4669 = vadd.f32 %v4667, %v4668
  %v4670 = vrot.slane %v4669, 1
  %v4671 = vadd.f32 %v4669, %v4670
  %v4672 = vadd.f32 %v4450, %v4452
  %v4673 = vadd.f32 %v4672, %v4454
  %v4674 = vadd.f32 %v4673, %v4456
  %v4675 = vadd.f32 %v4674, %v4458
  %v4676 = vadd.f32 %v4675, %v4460
  %v4677 = vadd.f32 %v4676, %v4462
  %v4678 = vadd.f32 %v4677, %v4464
  %v4679 = vadd.f32 %v4678, %v4466
  %v4680 = vadd.f32 %v4679, %v4468
  %v4681 = vadd.f32 %v4680, %v4470
  %v4682 = vadd.f32 %v4681, %v4472
  %v4683 = vrot.slane %v4682, 4
  %v4684 = vadd.f32 %v4682, %v4683
  %v4685 = vrot.slane %v4684, 2
  %v4686 = vadd.f32 %v4684, %v4685
  %v4687 = vrot.slane %v4686, 1
  %v4688 = vadd.f32 %v4686, %v4687
  %v4689 = vadd.f32 %v4451, %v4453
  %v4690 = vadd.f32 %v4689, %v4455
  %v4691 = vadd.f32 %v4690, %v4457
  %v4692 = vadd.f32 %v4691, %v4459
  %v4693 = vadd.f32 %v4692, %v4461
  %v4694 = vadd.f32 %v4693, %v4463
  %v4695 = vadd.f32 %v4694, %v4465
  %v4696 = vadd.f32 %v4695, %v4467
  %v4697 = vadd.f32 %v4696, %v4469
  %v4698 = vadd.f32 %v4697, %v4471
  %v4699 = vadd.f32 %v4698, %v4473
  %v4700 = vrot.slane %v4699, 4
  %v4701 = vadd.f32 %v4699, %v4700
  %v4702 = vrot.slane %v4701, 2
  %v4703 = vadd.f32 %v4701, %v4702
  %v4704 = vrot.slane %v4703, 1
  %v4705 = vadd.f32 %v4703, %v4704
  %v4706 = vadd.f32 %v4474, %v4476
  %v4707 = vadd.f32 %v4706, %v4478
  %v4708 = vadd.f32 %v4707, %v4480
  %v4709 = vadd.f32 %v4708, %v4482
  %v4710 = vadd.f32 %v4709, %v4484
  %v4711 = vadd.f32 %v4710, %v4486
  %v4712 = vadd.f32 %v4711, %v4488
  %v4713 = vadd.f32 %v4712, %v4490
  %v4714 = vadd.f32 %v4713, %v4492
  %v4715 = vadd.f32 %v4714, %v4494
  %v4716 = vadd.f32 %v4715, %v4496
  %v4717 = vrot.slane %v4716, 4
  %v4718 = vadd.f32 %v4716, %v4717
  %v4719 = vrot.slane %v4718, 2
  %v4720 = vadd.f32 %v4718, %v4719
  %v4721 = vrot.slane %v4720, 1
  %v4722 = vadd.f32 %v4720, %v4721
  %v4723 = vadd.f32 %v4475, %v4477
  %v4724 = vadd.f32 %v4723, %v4479
  %v4725 = vadd.f32 %v4724, %v4481
  %v4726 = vadd.f32 %v4725, %v4483
  %v4727 = vadd.f32 %v4726, %v4485
  %v4728 = vadd.f32 %v4727, %v4487
  %v4729 = vadd.f32 %v4728, %v4489
  %v4730 = vadd.f32 %v4729, %v4491
  %v4731 = vadd.f32 %v4730, %v4493
  %v4732 = vadd.f32 %v4731, %v4495
  %v4733 = vadd.f32 %v4732, %v4497
  %v4734 = vrot.slane %v4733, 4
  %v4735 = vadd.f32 %v4733, %v4734
  %v4736 = vrot.slane %v4735, 2
  %v4737 = vadd.f32 %v4735, %v4736
  %v4738 = vrot.slane %v4737, 1
  %v4739 = vadd.f32 %v4737, %v4738
  %v4740 = vadd.f32 %v4498, %v4500
  %v4741 = vadd.f32 %v4740, %v4502
  %v4742 = vadd.f32 %v4741, %v4504
  %v4743 = vadd.f32 %v4742, %v4506
  %v4744 = vadd.f32 %v4743, %v4508
  %v4745 = vadd.f32 %v4744, %v4510
  %v4746 = vadd.f32 %v4745, %v4512
  %v4747 = vadd.f32 %v4746, %v4514
  %v4748 = vadd.f32 %v4747, %v4516
  %v4749 = vadd.f32 %v4748, %v4518
  %v4750 = vadd.f32 %v4749, %v4520
  %v4751 = vrot.slane %v4750, 4
  %v4752 = vadd.f32 %v4750, %v4751
  %v4753 = vrot.slane %v4752, 2
  %v4754 = vadd.f32 %v4752, %v4753
  %v4755 = vrot.slane %v4754, 1
  %v4756 = vadd.f32 %v4754, %v4755
  %v4757 = vadd.f32 %v4499, %v4501
  %v4758 = vadd.f32 %v4757, %v4503
  %v4759 = vadd.f32 %v4758, %v4505
  %v4760 = vadd.f32 %v4759, %v4507
  %v4761 = vadd.f32 %v4760, %v4509
  %v4762 = vadd.f32 %v4761, %v4511
  %v4763 = vadd.f32 %v4762, %v4513
  %v4764 = vadd.f32 %v4763, %v4515
  %v4765 = vadd.f32 %v4764, %v4517
  %v4766 = vadd.f32 %v4765, %v4519
  %v4767 = vadd.f32 %v4766, %v4521
  %v4768 = vrot.slane %v4767, 4
  %v4769 = vadd.f32 %v4767, %v4768
  %v4770 = vrot.slane %v4769, 2
  %v4771 = vadd.f32 %v4769, %v4770
  %v4772 = vrot.slane %v4771, 1
  %v4773 = vadd.f32 %v4771, %v4772
  %v4774 = vadd.f32 %v4522, %v4524
  %v4775 = vadd.f32 %v4774, %v4526
  %v4776 = vadd.f32 %v4775, %v4528
  %v4777 = vadd.f32 %v4776, %v4530
  %v4778 = vadd.f32 %v4777, %v4532
  %v4779 = vadd.f32 %v4778, %v4534
  %v4780 = vadd.f32 %v4779, %v4536
  %v4781 = vadd.f32 %v4780, %v4538
  %v4782 = vadd.f32 %v4781, %v4540
  %v4783 = vadd.f32 %v4782, %v4542
  %v4784 = vadd.f32 %v4783, %v4544
  %v4785 = vrot.slane %v4784, 4
  %v4786 = vadd.f32 %v4784, %v4785
  %v4787 = vrot.slane %v4786, 2
  %v4788 = vadd.f32 %v4786, %v4787
  %v4789 = vrot.slane %v4788, 1
  %v4790 = vadd.f32 %v4788, %v4789
  %v4791 = vadd.f32 %v4523, %v4525
  %v4792 = vadd.f32 %v4791, %v4527
  %v4793 = vadd.f32 %v4792, %v4529
  %v4794 = vadd.f32 %v4793, %v4531
  %v4795 = vadd.f32 %v4794, %v4533
  %v4796 = vadd.f32 %v4795, %v4535
  %v4797 = vadd.f32 %v4796, %v4537
  %v4798 = vadd.f32 %v4797, %v4539
  %v4799 = vadd.f32 %v4798, %v4541
  %v4800 = vadd.f32 %v4799, %v4543
  %v4801 = vadd.f32 %v4800, %v4545
  %v4802 = vrot.slane %v4801, 4
  %v4803 = vadd.f32 %v4801, %v4802
  %v4804 = vrot.slane %v4803, 2
  %v4805 = vadd.f32 %v4803, %v4804
  %v4806 = vrot.slane %v4805, 1
  %v4807 = vadd.f32 %v4805, %v4806
  %v4808 = vadd.f32 %v4546, %v4548
  %v4809 = vadd.f32 %v4808, %v4550
  %v4810 = vadd.f32 %v4809, %v4552
  %v4811 = vadd.f32 %v4810, %v4554
  %v4812 = vadd.f32 %v4811, %v4556
  %v4813 = vadd.f32 %v4812, %v4558
  %v4814 = vadd.f32 %v4813, %v4560
  %v4815 = vadd.f32 %v4814, %v4562
  %v4816 = vadd.f32 %v4815, %v4564
  %v4817 = vadd.f32 %v4816, %v4566
  %v4818 = vadd.f32 %v4817, %v4568
  %v4819 = vrot.slane %v4818, 4
  %v4820 = vadd.f32 %v4818, %v4819
  %v4821 = vrot.slane %v4820, 2
  %v4822 = vadd.f32 %v4820, %v4821
  %v4823 = vrot.slane %v4822, 1
  %v4824 = vadd.f32 %v4822, %v4823
  %v4825 = vadd.f32 %v4547, %v4549
  %v4826 = vadd.f32 %v4825, %v4551
  %v4827 = vadd.f32 %v4826, %v4553
  %v4828 = vadd.f32 %v4827, %v4555
  %v4829 = vadd.f32 %v4828, %v4557
  %v4830 = vadd.f32 %v4829, %v4559
  %v4831 = vadd.f32 %v4830, %v4561
  %v4832 = vadd.f32 %v4831, %v4563
  %v4833 = vadd.f32 %v4832, %v4565
  %v4834 = vadd.f32 %v4833, %v4567
  %v4835 = vadd.f32 %v4834, %v4569
  %v4836 = vrot.slane %v4835, 4
  %v4837 = vadd.f32 %v4835, %v4836
  %v4838 = vrot.slane %v4837, 2
  %v4839 = vadd.f32 %v4837, %v4838
  %v4840 = vrot.slane %v4839, 1
  %v4841 = vadd.f32 %v4839, %v4840
  %v4842 = vld [vmem:[%s6] sm:$0x3]
  %v4844 = vlaneseq
  %v4845 = vshrl.u32 %v4844, 7
  %v4846 = vsub.s32 0, %v4845
  %v4847 = vrot.slane %v4842, %v4846
  %v4848 = vlaneseq
  %v4849 = vshrl.u32 %v4848, 7
  %v4850 = vsub.s32 1, %v4849
  %v4851 = vrot.slane %v4842, %v4850
  %v4854 = vmul.f32 %v4586, %v4847
  %v4855 = vmul.f32 %v4603, %v4851
  %v4856 = vmul.f32 %v4620, %v4847
  %v4857 = vmul.f32 %v4637, %v4851
  %v4858 = vmul.f32 %v4654, %v4847
  %v4859 = vmul.f32 %v4671, %v4851
  %v4860 = vmul.f32 %v4688, %v4847
  %v4861 = vmul.f32 %v4705, %v4851
  %v4862 = vmul.f32 %v4722, %v4847
  %v4863 = vmul.f32 %v4739, %v4851
  %v4864 = vmul.f32 %v4756, %v4847
  %v4865 = vmul.f32 %v4773, %v4851
  %v4866 = vmul.f32 %v4790, %v4847
  %v4867 = vmul.f32 %v4807, %v4851
  %v4868 = vmul.f32 %v4824, %v4847
  %v4869 = vmul.f32 %v4841, %v4851
  %v4886 = vrot.slane %v4856, 7
  %vm4887 = vcmask 1041409
  %v4888 = vsel %vm4887, %v4886, %v4854
  %v4889 = vrot.slane %v4858, 6
  %vm4890 = vcmask 1042434
  %v4891 = vsel %vm4890, %v4889, %v4888
  %v4892 = vrot.slane %v4860, 5
  %vm4893 = vcmask 1043459
  %v4894 = vsel %vm4893, %v4892, %v4891
  %v4895 = vrot.slane %v4862, 4
  %vm4896 = vcmask 1044484
  %v4897 = vsel %vm4896, %v4895, %v4894
  %v4898 = vrot.slane %v4864, 3
  %vm4899 = vcmask 1045509
  %v4900 = vsel %vm4899, %v4898, %v4897
  %v4901 = vrot.slane %v4866, 2
  %vm4902 = vcmask 1046534
  %v4903 = vsel %vm4902, %v4901, %v4900
  %v4904 = vrot.slane %v4868, 1
  %vm4905 = vcmask 1047559
  %v4906 = vsel %vm4905, %v4904, %v4903
  %v4907 = vrot.slane %v4857, 7
  %v4908 = vsel %vm4887, %v4907, %v4855
  %v4909 = vrot.slane %v4859, 6
  %v4910 = vsel %vm4890, %v4909, %v4908
  %v4911 = vrot.slane %v4861, 5
  %v4912 = vsel %vm4893, %v4911, %v4910
  %v4913 = vrot.slane %v4863, 4
  %v4914 = vsel %vm4896, %v4913, %v4912
  %v4915 = vrot.slane %v4865, 3
  %v4916 = vsel %vm4899, %v4915, %v4914
  %v4917 = vrot.slane %v4867, 2
  %v4918 = vsel %vm4902, %v4917, %v4916
  %v4919 = vrot.slane %v4869, 1
  %v4920 = vsel %vm4905, %v4919, %v4918
  %v4923 = vadd.f32 %v4906, %v4920
  %4924 = vadd.xlane.f32.xlu0 %v4923
  %v4925 = vpop.xlane.xlu0 %4924
  %v4926 = vld [vmem:[#allocation2] sm:$0x1]
  %v4928 = vlaneseq
  %v4929 = vshrl.u32 %v4928, 7
  %v4930 = vsub.s32 0, %v4929
  %v4931 = vrot.slane %v4926, %v4930
  %v4933 = vadd.f32 %v4925, %v4931
  %v4934 = vtanh.pop %v4933
  %v4935 = vlaneseq
  %v4936 = vshrl.u32 %v4935, 7
  %v4937 = vlaneseq
  %v4938 = vand.u32 %v4937, 127
  %vm4939 = vcmp.eq.s32.totalorder %v4936, %v4938
  %v4940 = vsel %vm4939, 1, 0
  %v4941 = vcvt.s32.f32 %v4940
  %4943 = vset.pattern.permute.xlu0 0
  %4944 = vperm.xlu0 %4943, %v4934
  %v4945 = vpop.permute.xlu0 %4944
  %v4947 = vmul.f32 %v4945, %v4941
  %vm4948 = vcmask 64512
  %v4949 = vsel %vm4948, %v4947, 0.0
  %v4950 = vrot.slane %v4949, 4
  %v4951 = vadd.f32 %v4949, %v4950
  %v4952 = vrot.slane %v4951, 2
  %v4953 = vadd.f32 %v4951, %v4952
  %v4954 = vrot.slane %v4953, 1
  %v4955 = vadd.f32 %v4953, %v4954
  %4956 = vst.msk [vmem:[%s8] sm:$0xff] %vm4948, %v4955
  // Predicated region
  $region34: #{pallas_forward.1} parent=0 // pred_check
    _
  $region35: #{pallas_forward.1} parent=0 // pred_check_branch
    %4958 = sbr.rel (0) target = $region37
  $region36: #{pallas_forward.1} parent=0 // pred_region
    _
  $region37: #{pallas_forward.1} parent=0 // pred_fallthru
    _
  // Predicated region
  $region38: #{pallas_forward.1} parent=0 // pred_check
    _
  $region39: #{pallas_forward.1} parent=0 // pred_check_branch
    %4960 = sbr.rel (0) target = $region41
  $region40: #{pallas_forward.1} parent=0 // pred_region
    _
  $region41: #{pallas_forward.1} parent=0 // pred_fallthru
    _

</llo_original>
